<compile_context>
chip_gen: v7x
topology: tpu7x:2x2x1
jax: 0.10.0
libtpu: 0.0.40
codegen_flags: <defaults>
</compile_context>

<pallas_src>
import functools
import numpy as np

import jax
import jax.numpy as jnp
from jax import lax
from jax.experimental import pallas as pl
from jax.experimental.pallas import tpu as pltpu

TAG_PAD = 128  # lane-dense classifier output width (real logits live in [:tag_size])


# ----------------------------------------------------------------------------
# Host-side graph construction (trace-time glue, mirrors edge_perms / batch_graphify)
# ----------------------------------------------------------------------------
def edge_perms(length, window_past, window_future):
    all_perms = set()
    array = np.arange(length)
    for j in range(length):
        if window_past == -1 and window_future == -1:
            eff = array
        elif window_past == -1:
            eff = array[: min(length, j + window_future + 1)]
        elif window_future == -1:
            eff = array[max(0, j - window_past):]
        else:
            eff = array[max(0, j - window_past): min(length, j + window_future + 1)]
        for item in eff:
            all_perms.add((j, int(item)))
    return sorted(all_perms)


def build_relation_adj_flat(lengths, L, speakers_np, wp, wf, n_speakers):
    """Stacked per-relation adjacency on PADDED indices: (R*BL, BL), row = r*BL + dst.
    PyG RGCNConv 'mean' normalization baked in."""
    B = len(lengths)
    BL = B * L
    R = 2 * n_speakers * n_speakers
    A = np.zeros((R, BL, BL), np.float32)
    for b, l in enumerate(lengths):
        off = b * L
        for (j, k) in edge_perms(l, wp, wf):
            s1 = int(speakers_np[b, j])
            s2 = int(speakers_np[b, k])
            c = 0 if j < k else 1                      # edge_type_to_idx '...0' / '...1'
            r = 2 * (s1 * n_speakers + s2) + c
            A[r, off + k, off + j] += 1.0              # message src=j -> dst=k
    deg = A.sum(axis=2, keepdims=True)
    A = A / np.maximum(deg, 1.0)
    return A.reshape(R * BL, BL)


# ----------------------------------------------------------------------------
# Fused Pallas kernel (one modality per grid step): transformer layer + out proj
# + EdgeAtt + RGCN + GraphConv + classifier
# ----------------------------------------------------------------------------
def fused_dialogue_gcn_kernel(
        invu_ref, x_ref, lenv_ref, astack_ref,
        wqkv_ref, bqkv_ref, wo_ref, bo_ref, g1_ref, be1_ref,
        w1_ref, bf1_ref, w2_ref, bf2_ref, g2_ref, be2_ref,
        wout_ref, bout_ref, wedge_ref,
        wrel_ref, root_ref, brg_ref, wg_ref, bg_ref,
        wc1_ref, bc1_ref, wc2_ref, bc2_ref,
        o_ref, *, L, wp, wf, R, U_pad):
    f32 = jnp.float32
    bf16 = jnp.bfloat16

    x = x_ref[...]                                     # (BL, U_pad) f32, zero-padded lanes
    BL = x.shape[0]
    inv_u = invu_ref[...]                              # (1,1) = 1 / u_real for this modality

    # ---- masks generated in-kernel from iota (no (BL,BL) mask DMAs) --------------
    row = lax.broadcasted_iota(jnp.int32, (BL, BL), 0).astype(f32)   # dst / query index k
    col = lax.broadcasted_iota(jnp.int32, (BL, BL), 1).astype(f32)   # src / key index j
    inv_L = f32(1.0 / L)
    dlg_r = jnp.floor(row * inv_L)
    dlg_c = jnp.floor(col * inv_L)
    pos_r = row - dlg_r * L
    pos_c = col - dlg_c * L
    same_dlg = dlg_r == dlg_c                          # block-diag per dialogue (incl. padding,
    #                                                    matches PyTorch: no key-padding mask)
    lenc = lenv_ref[...]                               # (1, BL): length of src token's dialogue
    win = (same_dlg & (pos_c < lenc) & (pos_r < lenc)
           & (pos_r >= pos_c - wp) & (pos_r <= pos_c + wf))          # EdgeAtt window (dst, src)

    # ---- SeqContext: TransformerEncoderLayer (post-LN, nhead=1, relu) + Linear ----
    x16 = x.astype(bf16)
    qkv = jnp.dot(x16, wqkv_ref[...], preferred_element_type=f32) + bqkv_ref[...]
    q = qkv[:, :U_pad]                                 # 1/sqrt(u) folded into wq on host
    k = qkv[:, U_pad:2 * U_pad]
    v = qkv[:, 2 * U_pad:]
    s = lax.dot_general(q.astype(bf16), k.astype(bf16), (((1,), (1,)), ((), ())),
                        preferred_element_type=f32)                  # (BL, BL), f32 logits
    s = jnp.where(same_dlg, s, f32(-1e30))             # mask constant kept in f32 only
    s = s - jnp.max(s, axis=-1, keepdims=True)
    es = jnp.exp(s)
    attn = es * pl.reciprocal(jnp.sum(es, axis=-1, keepdims=True), approx=True)
    ao = jnp.dot(attn.astype(bf16), v.astype(bf16), preferred_element_type=f32)
    ao = jnp.dot(ao.astype(bf16), wo_ref[...], preferred_element_type=f32) + bo_ref[...]
    h = x + ao                                         # dropout = identity (eval)
    # LayerNorm over the real u lanes only: padded lanes of h are exactly 0, so plain
    # sums are correct; divide by u_real (E[x^2] - E[x]^2 form avoids a lane mask).
    mu = jnp.sum(h, axis=-1, keepdims=True) * inv_u
    var = jnp.maximum(jnp.sum(h * h, axis=-1, keepdims=True) * inv_u - mu * mu, 0.0)
    h = (h - mu) * lax.rsqrt(var + 1e-5) * g1_ref[...] + be1_ref[...]
    ff = jnp.maximum(jnp.dot(h.astype(bf16), w1_ref[...], preferred_element_type=f32)
                     + bf1_ref[...], 0.0)
    ff = jnp.dot(ff.astype(bf16), w2_ref[...], preferred_element_type=f32) + bf2_ref[...]
    h2 = h + ff
    mu2 = jnp.sum(h2, axis=-1, keepdims=True) * inv_u
    var2 = jnp.maximum(jnp.sum(h2 * h2, axis=-1, keepdims=True) * inv_u - mu2 * mu2, 0.0)
    h2 = (h2 - mu2) * lax.rsqrt(var2 + 1e-5) * g2_ref[...] + be2_ref[...]
    hg = jnp.dot(h2.astype(bf16), wout_ref[...], preferred_element_type=f32) + bout_ref[...]
    hg16 = hg.astype(bf16)                             # (BL, G)

    # ---- EdgeAtt, computed directly as weighted adjacency A_w[dst=k, src=j] --------
    hw = jnp.dot(hg16, wedge_ref[...], preferred_element_type=f32)   # row j = W^T h_j
    st = lax.dot_general(hg16, hw.astype(bf16), (((1,), (1,)), ((), ())),
                         preferred_element_type=f32)                 # st[k, j] = h_j^T W h_k
    st = jnp.where(win, st, f32(-1e30))
    st = st - jnp.max(st, axis=0, keepdims=True)       # softmax over dst k, per src column j
    et = jnp.exp(st) * win.astype(f32)
    a_w = et * pl.reciprocal(jnp.maximum(jnp.sum(et, axis=0, keepdims=True), f32(1e-30)),
                             approx=True)              # exactly 0 on fully-masked (pad) columns

    # ---- RGCNConv (mean aggregation): one agg matmul + one batched relation dot ----
    aggs = jnp.dot(astack_ref[...], hg16, preferred_element_type=f32)          # (R*BL, G)
    aggs3 = aggs.reshape(R, BL, aggs.shape[-1]).astype(bf16)                   # leading split
    rel = lax.dot_general(aggs3, wrel_ref[...], (((2,), (1,)), ((0,), (0,))),
                          preferred_element_type=f32)                          # (R, BL, H)
    x1 = (jnp.dot(hg16, root_ref[...], preferred_element_type=f32) + brg_ref[...]
          + jnp.sum(rel, axis=0))

    # ---- GraphConv with edge weights a_w (rel/root weights merged into one matmul) --
    aggw = jnp.dot(a_w.astype(bf16), x1.astype(bf16), preferred_element_type=f32)
    gcat = jnp.concatenate([aggw, x1], axis=-1).astype(bf16)                   # (BL, 2H)
    x2 = jnp.dot(gcat, wg_ref[...], preferred_element_type=f32) + bg_ref[...]

    # ---- Classifier on concat([hg, x2]) (eval: dropout = identity), lane-dense out --
    ccat = jnp.concatenate([hg, x2], axis=-1).astype(bf16)                     # (BL, G+H)
    hc = jnp.maximum(jnp.dot(ccat, wc1_ref[...], preferred_element_type=f32)
                     + bc1_ref[...], 0.0)
    o_ref[...] = jnp.dot(hc.astype(bf16), wc2_ref[...], preferred_element_type=f32) + bc2_ref[...]


# ----------------------------------------------------------------------------
# pallas_call wrapper
# ----------------------------------------------------------------------------
_WEIGHT_ORDER = ("wqkv", "bqkv", "wo", "bo", "g1", "be1",
                 "w1", "bf1", "w2", "bf2", "g2", "be2",
                 "wout", "bout", "wedge",
                 "wrel", "root", "b_rgcn", "wg", "bg",
                 "wc1", "bc1", "wc2", "bc2")

_BF16_WEIGHTS = {"wqkv", "wo", "w1", "w2", "wout", "wedge", "wrel", "root",
                 "wg", "wc1", "wc2"}


def _mod_spec(arr):
    """Per-modality array (M, ...): squeeze the leading modality axis per grid step."""
    trail = tuple(arr.shape[1:])
    nz = len(trail)

    def idx(m):
        return (m,) + (0,) * nz
    return pl.BlockSpec((None,) + trail, idx)


def _shared_spec(arr):
    """Modality-shared array: same (full) block every grid step -> fetched once."""
    nd = arr.ndim

    def idx(m):
        return (0,) * nd
    return pl.BlockSpec(tuple(arr.shape), idx)


def run_fused(invu, x_stacked, lenv, astack, wstack, *, L, wp, wf):
    M, BL, U_pad = x_stacked.shape
    R = wstack["wrel"].shape[1]
    G = wstack["wout"].shape[-1]
    H = wstack["root"].shape[-1]
    dff = wstack["w1"].shape[-1]

    args = [invu, x_stacked, lenv, astack] + [wstack[n] for n in _WEIGHT_ORDER]
    is_mod = [True, True, False, False] + [True] * len(_WEIGHT_ORDER)
    in_specs = [(_mod_spec(a) if im else _shared_spec(a)) for a, im in zip(args, is_mod)]

    # vmem limit derived from actual per-step block bytes (+ headroom), capped for v7x
    block_bytes = 0
    for a, im in zip(args, is_mod):
        shp = a.shape[1:] if im else a.shape
        block_bytes += int(np.prod(shp)) * a.dtype.itemsize
    block_bytes += BL * TAG_PAD * 4
    vmem_limit = int(min(64 * 1024 * 1024, 2 * block_bytes + 16 * 1024 * 1024))

    mm = lambda m, k, n: 2 * m * k * n
    per_mod_flops = (mm(BL, U_pad, 3 * U_pad) + mm(BL, U_pad, BL) + mm(BL, BL, U_pad)
                     + mm(BL, U_pad, U_pad) + mm(BL, U_pad, dff) + mm(BL, dff, U_pad)
                     + mm(BL, U_pad, G) + mm(BL, G, G) + mm(BL, G, BL)
                     + mm(R * BL, BL, G) + mm(R * BL, G, H) + mm(BL, G, H)
                     + mm(BL, BL, H) + mm(BL, 2 * H, H)
                     + mm(BL, G + H, H) + mm(BL, H, TAG_PAD))
    bytes_accessed = sum(int(np.prod(a.shape)) * a.dtype.itemsize for a in args) \
        + M * BL * TAG_PAD * 4
    cost = pl.CostEstimate(flops=int(M * per_mod_flops),
                           transcendentals=int(M * (2 * BL * BL + 4 * BL)),
                           bytes_accessed=int(bytes_accessed))

    kernel = functools.partial(fused_dialogue_gcn_kernel,
                               L=L, wp=wp, wf=wf, R=R, U_pad=U_pad)
    return pl.pallas_call(
        kernel,
        out_shape=jax.ShapeDtypeStruct((M, BL, TAG_PAD), jnp.float32),
        grid=(M,),
        in_specs=in_specs,
        out_specs=pl.BlockSpec((None, BL, TAG_PAD), lambda m: (m, 0, 0)),
        compiler_params=pltpu.CompilerParams(
            dimension_semantics=("parallel",),        # one modality per TensorCore on v7x
            vmem_limit_bytes=vmem_limit),
        cost_estimate=cost,
    )(*args)


def make_forward(lengths, L, tag_size, wp, wf):
    lengths = tuple(int(l) for l in lengths)
    valid_idx = jnp.asarray(
        np.concatenate([b * L + np.arange(l) for b, l in enumerate(lengths)]).astype(np.int32))

    @jax.jit
    def fwd(x_stacked, invu, lenv, astack, wstack):
        out = run_fused(invu, x_stacked, lenv, astack, wstack, L=L, wp=wp, wf=wf)
        # one gather (no per-dialogue slice list), then slice off lane padding
        valid = jnp.take(out, valid_idx, axis=1)[:, :, :tag_size]    # (M, sum(len), tag)
        joint = jnp.sum(valid, axis=0)                               # (sum(len), tag)
        return joint, valid
    return fwd


# ----------------------------------------------------------------------------
# Parameter init (deterministic, synthetic); per-modality dims padded to U_pad
# ----------------------------------------------------------------------------
def init_params(key, u_dim, u_pad, g_dim, h_dim, tag_size, n_speakers,
                num_bases=30, d_ff=2048):
    n_rel = 2 * n_speakers * n_speakers
    keys = jax.random.split(key, 20)
    it = iter(keys)

    def nrm(shape, scale=0.05):
        return (scale * jax.random.normal(next(it), shape)).astype(jnp.float32)

    z = lambda s: jnp.zeros(s, jnp.float32)

    def pad_to(a, shape):
        return jnp.pad(a, [(0, t - s) for s, t in zip(a.shape, shape)])

    p = {}
    # SeqContext: TransformerEncoderLayer (nhead=1, d_ff, relu, post-LN). QKV merged;
    # the 1/sqrt(u) attention scale is folded into the Q block of wqkv.
    scale = 1.0 / float(u_dim) ** 0.5
    wq = pad_to(nrm((u_dim, u_dim)) * scale, (u_pad, u_pad))
    wk = pad_to(nrm((u_dim, u_dim)), (u_pad, u_pad))
    wv = pad_to(nrm((u_dim, u_dim)), (u_pad, u_pad))
    p["wqkv"] = jnp.concatenate([wq, wk, wv], axis=1)
    p["bqkv"] = z((1, 3 * u_pad))
    p["wo"] = pad_to(nrm((u_dim, u_dim)), (u_pad, u_pad)); p["bo"] = z((1, u_pad))
    p["g1"] = pad_to(jnp.ones((1, u_dim), jnp.float32), (1, u_pad)); p["be1"] = z((1, u_pad))
    p["w1"] = pad_to(nrm((u_dim, d_ff)), (u_pad, d_ff)); p["bf1"] = z((1, d_ff))
    p["w2"] = pad_to(nrm((d_ff, u_dim), scale=0.02), (d_ff, u_pad)); p["bf2"] = z((1, u_pad))
    p["g2"] = pad_to(jnp.ones((1, u_dim), jnp.float32), (1, u_pad)); p["be2"] = z((1, u_pad))
    p["wout"] = pad_to(nrm((u_dim, g_dim)), (u_pad, g_dim)); p["bout"] = z((1, g_dim))
    # EdgeAtt
    p["wedge"] = nrm((g_dim, g_dim), scale=2.0 / (g_dim + g_dim))
    # RGCNConv: basis decomposition composed once here (hoisted out of the forward)
    basis = nrm((num_bases, g_dim, h_dim))
    comp = nrm((n_rel, num_bases))
    p["wrel"] = jnp.einsum("rb,bgh->rgh", comp, basis)               # (R, G, H)
    p["root"] = nrm((g_dim, h_dim)); p["b_rgcn"] = z((1, h_dim))
    # GraphConv: lin_rel / lin_root merged into one (2H, H) weight on concat([agg, x])
    p["wg"] = jnp.concatenate([nrm((h_dim, h_dim)), nrm((h_dim, h_dim))], axis=0)
    p["bg"] = z((1, h_dim))
    # Classifier: lin1 on concat([hg, x2]) -> one (G+H, H) weight; lin2 padded lane-dense
    p["wc1"] = jnp.concatenate([nrm((g_dim, h_dim)), nrm((h_dim, h_dim))], axis=0)
    p["bc1"] = z((1, h_dim))
    p["wc2"] = jnp.pad(nrm((h_dim, tag_size)), ((0, 0), (0, TAG_PAD - tag_size)))
    p["bc2"] = z((1, TAG_PAD))
    return p


def stack_params(per_modality):
    """Stack per-modality params along a leading modality axis; weight matrices in bf16
    (MXU operands), biases / LayerNorm affine stay f32 (v5e-safe elementwise path)."""
    stacked = {}
    for name in _WEIGHT_ORDER:
        arr = jnp.stack([p[name] for p in per_modality], axis=0)
        if name in _BF16_WEIGHTS:
            arr = arr.astype(jnp.bfloat16)
        stacked[name] = arr
    return stacked


# ----------------------------------------------------------------------------
# Main
# ----------------------------------------------------------------------------
if __name__ == "__main__":
    key = jax.random.PRNGKey(0)

    # small shapes consistent with MultiDialogueGCN
    B, L = 2, 8
    lengths = [8, 6]
    modalities = ["a", "t"]
    u_dims = {"a": 16, "t": 24}
    U_PAD = 32
    g_dim, h_dim, tag_size = 32, 32, 4
    n_speakers, wp, wf = 2, 2, 2
    BL = B * L

    k_spk, k_x, k_p = jax.random.split(key, 3)
    speakers = jax.random.randint(k_spk, (B, L), 0, n_speakers)
    speakers_np = np.asarray(speakers)

    # padded utterance features (padding positions zeroed, as produced by pad_sequence)
    valid_np = np.zeros((B, L, 1), np.float32)
    for b, l in enumerate(lengths):
        valid_np[b, :l, 0] = 1.0
    valid_mask = jnp.asarray(valid_np)
    xk = jax.random.split(k_x, len(modalities))
    x_list = []
    for i, m in enumerate(modalities):
        xm = jax.random.normal(xk[i], (B, L, u_dims[m]), jnp.float32) * valid_mask
        xm = jnp.pad(xm, ((0, 0), (0, 0), (0, U_PAD - u_dims[m])))
        x_list.append(xm.reshape(BL, U_PAD))
    x_stacked = jnp.stack(x_list, axis=0)                            # (M, BL, U_pad)

    pk = jax.random.split(k_p, len(modalities))
    per_mod = [init_params(pk[i], u_dims[m], U_PAD, g_dim, h_dim, tag_size, n_speakers)
               for i, m in enumerate(modalities)]
    wstack = stack_params(per_mod)

    # tiny shared inputs: per-modality 1/u_real, per-token dialogue length, relation adj
    invu = jnp.asarray([[[1.0 / u_dims[m]]] for m in modalities], jnp.float32)   # (M,1,1)
    lenv = jnp.asarray(np.repeat(np.asarray(lengths, np.float32), L)[None, :])   # (1, BL)
    astack = jnp.asarray(
        build_relation_adj_flat(lengths, L, speakers_np, wp, wf, n_speakers)
    ).astype(jnp.bfloat16)                                                        # (R*BL, BL)

    fwd = make_forward(lengths, L, tag_size, wp, wf)
    joint, logits = fwd(x_stacked, invu, lenv, astack, wstack)
    jax.block_until_ready(joint)
    assert joint.shape == (sum(lengths), tag_size)
    assert logits.shape == (len(modalities), sum(lengths), tag_size)
    assert bool(jnp.all(jnp.isfinite(joint)))
    print("KERNEL_OK")
</pallas_src>

<mosaic_0001>
module attributes {stable_mosaic.version = 11 : i64} {
  func.func @fused_dialogue_gcn_kernel(%arg0: i32, %arg1: memref<1x1x1xf32, #tpu.memory_space<vmem>>, %arg2: memref<1x16x32xf32, #tpu.memory_space<vmem>>, %arg3: memref<1x16xf32, #tpu.memory_space<vmem>>, %arg4: memref<128x16xbf16, #tpu.memory_space<vmem>>, %arg5: memref<1x32x96xbf16, #tpu.memory_space<vmem>>, %arg6: memref<1x1x96xf32, #tpu.memory_space<vmem>>, %arg7: memref<1x32x32xbf16, #tpu.memory_space<vmem>>, %arg8: memref<1x1x32xf32, #tpu.memory_space<vmem>>, %arg9: memref<1x1x32xf32, #tpu.memory_space<vmem>>, %arg10: memref<1x1x32xf32, #tpu.memory_space<vmem>>, %arg11: memref<1x32x2048xbf16, #tpu.memory_space<vmem>>, %arg12: memref<1x1x2048xf32, #tpu.memory_space<vmem>>, %arg13: memref<1x2048x32xbf16, #tpu.memory_space<vmem>>, %arg14: memref<1x1x32xf32, #tpu.memory_space<vmem>>, %arg15: memref<1x1x32xf32, #tpu.memory_space<vmem>>, %arg16: memref<1x1x32xf32, #tpu.memory_space<vmem>>, %arg17: memref<1x32x32xbf16, #tpu.memory_space<vmem>>, %arg18: memref<1x1x32xf32, #tpu.memory_space<vmem>>, %arg19: memref<1x32x32xbf16, #tpu.memory_space<vmem>>, %arg20: memref<1x8x32x32xbf16, #tpu.memory_space<vmem>>, %arg21: memref<1x32x32xbf16, #tpu.memory_space<vmem>>, %arg22: memref<1x1x32xf32, #tpu.memory_space<vmem>>, %arg23: memref<1x64x32xbf16, #tpu.memory_space<vmem>>, %arg24: memref<1x1x32xf32, #tpu.memory_space<vmem>>, %arg25: memref<1x64x32xbf16, #tpu.memory_space<vmem>>, %arg26: memref<1x1x32xf32, #tpu.memory_space<vmem>>, %arg27: memref<1x32x128xbf16, #tpu.memory_space<vmem>>, %arg28: memref<1x1x128xf32, #tpu.memory_space<vmem>>, %arg29: memref<1x16x128xf32, #tpu.memory_space<vmem>>) attributes {dimension_semantics = [#tpu.dimension_semantics<parallel>], iteration_bounds = array<i64: 2>, scalar_prefetch = 0 : i64, scratch_operands = 0 : i64, tpu.core_type = #tpu.core_type<tc>, window_params = [{transform_indices = @transform_0, window_bounds = array<i64: 1, 1, 1>}, {transform_indices = @transform_1, window_bounds = array<i64: 1, 16, 32>}, {pipeline_mode = #tpu.pipeline_mode<synchronous>, transform_indices = @transform_2, window_bounds = array<i64: 1, 16>}, {pipeline_mode = #tpu.pipeline_mode<synchronous>, transform_indices = @transform_3, window_bounds = array<i64: 128, 16>}, {transform_indices = @transform_4, window_bounds = array<i64: 1, 32, 96>}, {transform_indices = @transform_5, window_bounds = array<i64: 1, 1, 96>}, {transform_indices = @transform_6, window_bounds = array<i64: 1, 32, 32>}, {transform_indices = @transform_7, window_bounds = array<i64: 1, 1, 32>}, {transform_indices = @transform_8, window_bounds = array<i64: 1, 1, 32>}, {transform_indices = @transform_9, window_bounds = array<i64: 1, 1, 32>}, {transform_indices = @transform_10, window_bounds = array<i64: 1, 32, 2048>}, {transform_indices = @transform_11, window_bounds = array<i64: 1, 1, 2048>}, {transform_indices = @transform_12, window_bounds = array<i64: 1, 2048, 32>}, {transform_indices = @transform_13, window_bounds = array<i64: 1, 1, 32>}, {transform_indices = @transform_14, window_bounds = array<i64: 1, 1, 32>}, {transform_indices = @transform_15, window_bounds = array<i64: 1, 1, 32>}, {transform_indices = @transform_16, window_bounds = array<i64: 1, 32, 32>}, {transform_indices = @transform_17, window_bounds = array<i64: 1, 1, 32>}, {transform_indices = @transform_18, window_bounds = array<i64: 1, 32, 32>}, {transform_indices = @transform_19, window_bounds = array<i64: 1, 8, 32, 32>}, {transform_indices = @transform_20, window_bounds = array<i64: 1, 32, 32>}, {transform_indices = @transform_21, window_bounds = array<i64: 1, 1, 32>}, {transform_indices = @transform_22, window_bounds = array<i64: 1, 64, 32>}, {transform_indices = @transform_23, window_bounds = array<i64: 1, 1, 32>}, {transform_indices = @transform_24, window_bounds = array<i64: 1, 64, 32>}, {transform_indices = @transform_25, window_bounds = array<i64: 1, 1, 32>}, {transform_indices = @transform_26, window_bounds = array<i64: 1, 32, 128>}, {transform_indices = @transform_27, window_bounds = array<i64: 1, 1, 128>}, {transform_indices = @transform_28, window_bounds = array<i64: 1, 16, 128>}]} {
    %c0 = arith.constant 0 : index
    %c0_0 = arith.constant 0 : index
    %c0_1 = arith.constant 0 : index
    %0 = vector.load %arg2[%c0, %c0_0, %c0_1] : memref<1x16x32xf32, #tpu.memory_space<vmem>>, vector<1x16x32xf32>
    %1 = vector.shape_cast %0 : vector<1x16x32xf32> to vector<16x32xf32>
    %c0_2 = arith.constant 0 : index
    %c0_3 = arith.constant 0 : index
    %c0_4 = arith.constant 0 : index
    %2 = vector.load %arg1[%c0_2, %c0_3, %c0_4] : memref<1x1x1xf32, #tpu.memory_space<vmem>>, vector<1x1x1xf32>
    %3 = vector.shape_cast %2 : vector<1x1x1xf32> to vector<1x1xf32>
    %4 = tpu.iota {dimensions = array<i32: 0>} : vector<16x16xi32>
    %5 = arith.sitofp %4 : vector<16x16xi32> to vector<16x16xf32>
    %6 = tpu.iota {dimensions = array<i32: 1>} : vector<16x16xi32>
    %7 = arith.sitofp %6 : vector<16x16xi32> to vector<16x16xf32>
    %cst = arith.constant 1.250000e-01 : f32
    %8 = vector.broadcast %cst : f32 to vector<16x16xf32>
    %9 = arith.mulf %5, %8 : vector<16x16xf32>
    %10 = math.floor %9 : vector<16x16xf32>
    %cst_5 = arith.constant 1.250000e-01 : f32
    %11 = vector.broadcast %cst_5 : f32 to vector<16x16xf32>
    %12 = arith.mulf %7, %11 : vector<16x16xf32>
    %13 = math.floor %12 : vector<16x16xf32>
    %cst_6 = arith.constant 8.000000e+00 : f32
    %14 = vector.broadcast %cst_6 : f32 to vector<16x16xf32>
    %15 = arith.mulf %10, %14 : vector<16x16xf32>
    %16 = arith.subf %5, %15 : vector<16x16xf32>
    %cst_7 = arith.constant 8.000000e+00 : f32
    %17 = vector.broadcast %cst_7 : f32 to vector<16x16xf32>
    %18 = arith.mulf %13, %17 : vector<16x16xf32>
    %19 = arith.subf %7, %18 : vector<16x16xf32>
    %20 = arith.cmpf oeq, %10, %13 : vector<16x16xf32>
    %c0_8 = arith.constant 0 : index
    %c0_9 = arith.constant 0 : index
    %21 = vector.load %arg3[%c0_8, %c0_9] : memref<1x16xf32, #tpu.memory_space<vmem>>, vector<1x16xf32>
    %22 = vector.broadcast %21 : vector<1x16xf32> to vector<16x16xf32>
    %23 = arith.cmpf olt, %19, %22 : vector<16x16xf32>
    %24 = arith.andi %20, %23 : vector<16x16xi1>
    %25 = vector.broadcast %21 : vector<1x16xf32> to vector<16x16xf32>
    %26 = arith.cmpf olt, %16, %25 : vector<16x16xf32>
    %27 = arith.andi %24, %26 : vector<16x16xi1>
    %cst_10 = arith.constant 2.000000e+00 : f32
    %28 = vector.broadcast %cst_10 : f32 to vector<16x16xf32>
    %29 = arith.subf %19, %28 : vector<16x16xf32>
    %30 = arith.cmpf oge, %16, %29 : vector<16x16xf32>
    %31 = arith.andi %27, %30 : vector<16x16xi1>
    %cst_11 = arith.constant 2.000000e+00 : f32
    %32 = vector.broadcast %cst_11 : f32 to vector<16x16xf32>
    %33 = arith.addf %19, %32 : vector<16x16xf32>
    %34 = arith.cmpf ole, %16, %33 : vector<16x16xf32>
    %35 = arith.andi %31, %34 : vector<16x16xi1>
    %36 = arith.truncf %1 : vector<16x32xf32> to vector<16x32xbf16>
    %c0_12 = arith.constant 0 : index
    %c0_13 = arith.constant 0 : index
    %c0_14 = arith.constant 0 : index
    %37 = vector.load %arg5[%c0_12, %c0_13, %c0_14] : memref<1x32x96xbf16, #tpu.memory_space<vmem>>, vector<1x32x96xbf16>
    %38 = vector.shape_cast %37 : vector<1x32x96xbf16> to vector<32x96xbf16>
    %cst_15 = arith.constant dense<0.000000e+00> : vector<16x96xf32>
    %39 = tpu.matmul %36, %38, %cst_15 {dimension_numbers = #tpu.dot_dimension_numbers<[1], [0], [0], [1], [0, 0, 1, 1], [], []>} : vector<16x32xbf16>, vector<32x96xbf16>, vector<16x96xf32> -> vector<16x96xf32>
    %c0_16 = arith.constant 0 : index
    %c0_17 = arith.constant 0 : index
    %c0_18 = arith.constant 0 : index
    %40 = vector.load %arg6[%c0_16, %c0_17, %c0_18] : memref<1x1x96xf32, #tpu.memory_space<vmem>>, vector<1x1x96xf32>
    %41 = vector.shape_cast %40 : vector<1x1x96xf32> to vector<1x96xf32>
    %42 = vector.broadcast %41 : vector<1x96xf32> to vector<16x96xf32>
    %43 = arith.addf %39, %42 : vector<16x96xf32>
    %44 = vector.extract_strided_slice %43 {offsets = [0, 0], sizes = [16, 32], strides = [1, 1]} : vector<16x96xf32> to vector<16x32xf32>
    %45 = vector.extract_strided_slice %43 {offsets = [0, 32], sizes = [16, 32], strides = [1, 1]} : vector<16x96xf32> to vector<16x32xf32>
    %46 = vector.extract_strided_slice %43 {offsets = [0, 64], sizes = [16, 32], strides = [1, 1]} : vector<16x96xf32> to vector<16x32xf32>
    %47 = arith.truncf %44 : vector<16x32xf32> to vector<16x32xbf16>
    %48 = arith.truncf %45 : vector<16x32xf32> to vector<16x32xbf16>
    %cst_19 = arith.constant dense<0.000000e+00> : vector<16x16xf32>
    %49 = tpu.matmul %47, %48, %cst_19 {dimension_numbers = #tpu.dot_dimension_numbers<[1], [1], [0], [0], [0, 0, 1, 0], [], []>} : vector<16x32xbf16>, vector<16x32xbf16>, vector<16x16xf32> -> vector<16x16xf32>
    %cst_20 = arith.constant -1.000000e+30 : f32
    %50 = vector.broadcast %cst_20 : f32 to vector<16x16xf32>
    %51 = arith.select %20, %49, %50 : vector<16x16xi1>, vector<16x16xf32>
    %cst_21 = arith.constant dense<0xFF800000> : vector<16xf32>
    %52 = vector.multi_reduction <maximumf>, %51, %cst_21 [1] : vector<16x16xf32> to vector<16xf32>
    %53 = vector.shape_cast %52 : vector<16xf32> to vector<16x1xf32>
    %54 = vector.broadcast %53 : vector<16x1xf32> to vector<16x16xf32>
    %55 = arith.subf %51, %54 : vector<16x16xf32>
    %56 = math.exp %55 : vector<16x16xf32>
    %cst_22 = arith.constant dense<0.000000e+00> : vector<16xf32>
    %57 = vector.multi_reduction <add>, %56, %cst_22 [1] : vector<16x16xf32> to vector<16xf32>
    %58 = vector.shape_cast %57 : vector<16xf32> to vector<16x1xf32>
    %59 = tpu.reciprocal %58 {approx = true} : vector<16x1xf32> -> vector<16x1xf32>
    %60 = vector.broadcast %59 : vector<16x1xf32> to vector<16x16xf32>
    %61 = arith.mulf %56, %60 : vector<16x16xf32>
    %62 = arith.truncf %61 : vector<16x16xf32> to vector<16x16xbf16>
    %63 = arith.truncf %46 : vector<16x32xf32> to vector<16x32xbf16>
    %cst_23 = arith.constant dense<0.000000e+00> : vector<16x32xf32>
    %64 = tpu.matmul %62, %63, %cst_23 {dimension_numbers = #tpu.dot_dimension_numbers<[1], [0], [0], [1], [0, 0, 1, 1], [], []>} : vector<16x16xbf16>, vector<16x32xbf16>, vector<16x32xf32> -> vector<16x32xf32>
    %65 = arith.truncf %64 : vector<16x32xf32> to vector<16x32xbf16>
    %c0_24 = arith.constant 0 : index
    %c0_25 = arith.constant 0 : index
    %c0_26 = arith.constant 0 : index
    %66 = vector.load %arg7[%c0_24, %c0_25, %c0_26] : memref<1x32x32xbf16, #tpu.memory_space<vmem>>, vector<1x32x32xbf16>
    %67 = vector.shape_cast %66 : vector<1x32x32xbf16> to vector<32x32xbf16>
    %cst_27 = arith.constant dense<0.000000e+00> : vector<16x32xf32>
    %68 = tpu.matmul %65, %67, %cst_27 {dimension_numbers = #tpu.dot_dimension_numbers<[1], [0], [0], [1], [0, 0, 1, 1], [], []>} : vector<16x32xbf16>, vector<32x32xbf16>, vector<16x32xf32> -> vector<16x32xf32>
    %c0_28 = arith.constant 0 : index
    %c0_29 = arith.constant 0 : index
    %c0_30 = arith.constant 0 : index
    %69 = vector.load %arg8[%c0_28, %c0_29, %c0_30] : memref<1x1x32xf32, #tpu.memory_space<vmem>>, vector<1x1x32xf32>
    %70 = vector.shape_cast %69 : vector<1x1x32xf32> to vector<1x32xf32>
    %71 = vector.broadcast %70 : vector<1x32xf32> to vector<16x32xf32>
    %72 = arith.addf %68, %71 : vector<16x32xf32>
    %73 = arith.addf %1, %72 : vector<16x32xf32>
    %cst_31 = arith.constant dense<0.000000e+00> : vector<16xf32>
    %74 = vector.multi_reduction <add>, %73, %cst_31 [1] : vector<16x32xf32> to vector<16xf32>
    %75 = vector.shape_cast %74 : vector<16xf32> to vector<16x1xf32>
    %76 = vector.broadcast %3 : vector<1x1xf32> to vector<16x1xf32>
    %77 = arith.mulf %75, %76 : vector<16x1xf32>
    %78 = arith.mulf %73, %73 : vector<16x32xf32>
    %cst_32 = arith.constant dense<0.000000e+00> : vector<16xf32>
    %79 = vector.multi_reduction <add>, %78, %cst_32 [1] : vector<16x32xf32> to vector<16xf32>
    %80 = vector.shape_cast %79 : vector<16xf32> to vector<16x1xf32>
    %81 = vector.broadcast %3 : vector<1x1xf32> to vector<16x1xf32>
    %82 = arith.mulf %80, %81 : vector<16x1xf32>
    %83 = arith.mulf %77, %77 : vector<16x1xf32>
    %84 = arith.subf %82, %83 : vector<16x1xf32>
    %cst_33 = arith.constant 0.000000e+00 : f32
    %85 = vector.broadcast %cst_33 : f32 to vector<16x1xf32>
    %86 = arith.maximumf %84, %85 : vector<16x1xf32>
    %87 = vector.broadcast %77 : vector<16x1xf32> to vector<16x32xf32>
    %88 = arith.subf %73, %87 : vector<16x32xf32>
    %cst_34 = arith.constant 9.99999974E-6 : f32
    %89 = vector.broadcast %cst_34 : f32 to vector<16x1xf32>
    %90 = arith.addf %86, %89 : vector<16x1xf32>
    %91 = math.rsqrt %90 : vector<16x1xf32>
    %92 = vector.broadcast %91 : vector<16x1xf32> to vector<16x32xf32>
    %93 = arith.mulf %88, %92 : vector<16x32xf32>
    %c0_35 = arith.constant 0 : index
    %c0_36 = arith.constant 0 : index
    %c0_37 = arith.constant 0 : index
    %94 = vector.load %arg9[%c0_35, %c0_36, %c0_37] : memref<1x1x32xf32, #tpu.memory_space<vmem>>, vector<1x1x32xf32>
    %95 = vector.shape_cast %94 : vector<1x1x32xf32> to vector<1x32xf32>
    %96 = vector.broadcast %95 : vector<1x32xf32> to vector<16x32xf32>
    %97 = arith.mulf %93, %96 : vector<16x32xf32>
    %c0_38 = arith.constant 0 : index
    %c0_39 = arith.constant 0 : index
    %c0_40 = arith.constant 0 : index
    %98 = vector.load %arg10[%c0_38, %c0_39, %c0_40] : memref<1x1x32xf32, #tpu.memory_space<vmem>>, vector<1x1x32xf32>
    %99 = vector.shape_cast %98 : vector<1x1x32xf32> to vector<1x32xf32>
    %100 = vector.broadcast %99 : vector<1x32xf32> to vector<16x32xf32>
    %101 = arith.addf %97, %100 : vector<16x32xf32>
    %102 = arith.truncf %101 : vector<16x32xf32> to vector<16x32xbf16>
    %c0_41 = arith.constant 0 : index
    %c0_42 = arith.constant 0 : index
    %c0_43 = arith.constant 0 : index
    %103 = vector.load %arg11[%c0_41, %c0_42, %c0_43] : memref<1x32x2048xbf16, #tpu.memory_space<vmem>>, vector<1x32x2048xbf16>
    %104 = vector.shape_cast %103 : vector<1x32x2048xbf16> to vector<32x2048xbf16>
    %cst_44 = arith.constant dense<0.000000e+00> : vector<16x2048xf32>
    %105 = tpu.matmul %102, %104, %cst_44 {dimension_numbers = #tpu.dot_dimension_numbers<[1], [0], [0], [1], [0, 0, 1, 1], [], []>} : vector<16x32xbf16>, vector<32x2048xbf16>, vector<16x2048xf32> -> vector<16x2048xf32>
    %c0_45 = arith.constant 0 : index
    %c0_46 = arith.constant 0 : index
    %c0_47 = arith.constant 0 : index
    %106 = vector.load %arg12[%c0_45, %c0_46, %c0_47] : memref<1x1x2048xf32, #tpu.memory_space<vmem>>, vector<1x1x2048xf32>
    %107 = vector.shape_cast %106 : vector<1x1x2048xf32> to vector<1x2048xf32>
    %108 = vector.broadcast %107 : vector<1x2048xf32> to vector<16x2048xf32>
    %109 = arith.addf %105, %108 : vector<16x2048xf32>
    %cst_48 = arith.constant 0.000000e+00 : f32
    %110 = vector.broadcast %cst_48 : f32 to vector<16x2048xf32>
    %111 = arith.maximumf %109, %110 : vector<16x2048xf32>
    %112 = arith.truncf %111 : vector<16x2048xf32> to vector<16x2048xbf16>
    %c0_49 = arith.constant 0 : index
    %c0_50 = arith.constant 0 : index
    %c0_51 = arith.constant 0 : index
    %113 = vector.load %arg13[%c0_49, %c0_50, %c0_51] : memref<1x2048x32xbf16, #tpu.memory_space<vmem>>, vector<1x2048x32xbf16>
    %114 = vector.shape_cast %113 : vector<1x2048x32xbf16> to vector<2048x32xbf16>
    %cst_52 = arith.constant dense<0.000000e+00> : vector<16x32xf32>
    %115 = tpu.matmul %112, %114, %cst_52 {dimension_numbers = #tpu.dot_dimension_numbers<[1], [0], [0], [1], [0, 0, 1, 1], [], []>} : vector<16x2048xbf16>, vector<2048x32xbf16>, vector<16x32xf32> -> vector<16x32xf32>
    %c0_53 = arith.constant 0 : index
    %c0_54 = arith.constant 0 : index
    %c0_55 = arith.constant 0 : index
    %116 = vector.load %arg14[%c0_53, %c0_54, %c0_55] : memref<1x1x32xf32, #tpu.memory_space<vmem>>, vector<1x1x32xf32>
    %117 = vector.shape_cast %116 : vector<1x1x32xf32> to vector<1x32xf32>
    %118 = vector.broadcast %117 : vector<1x32xf32> to vector<16x32xf32>
    %119 = arith.addf %115, %118 : vector<16x32xf32>
    %120 = arith.addf %101, %119 : vector<16x32xf32>
    %cst_56 = arith.constant dense<0.000000e+00> : vector<16xf32>
    %121 = vector.multi_reduction <add>, %120, %cst_56 [1] : vector<16x32xf32> to vector<16xf32>
    %122 = vector.shape_cast %121 : vector<16xf32> to vector<16x1xf32>
    %123 = vector.broadcast %3 : vector<1x1xf32> to vector<16x1xf32>
    %124 = arith.mulf %122, %123 : vector<16x1xf32>
    %125 = arith.mulf %120, %120 : vector<16x32xf32>
    %cst_57 = arith.constant dense<0.000000e+00> : vector<16xf32>
    %126 = vector.multi_reduction <add>, %125, %cst_57 [1] : vector<16x32xf32> to vector<16xf32>
    %127 = vector.shape_cast %126 : vector<16xf32> to vector<16x1xf32>
    %128 = vector.broadcast %3 : vector<1x1xf32> to vector<16x1xf32>
    %129 = arith.mulf %127, %128 : vector<16x1xf32>
    %130 = arith.mulf %124, %124 : vector<16x1xf32>
    %131 = arith.subf %129, %130 : vector<16x1xf32>
    %cst_58 = arith.constant 0.000000e+00 : f32
    %132 = vector.broadcast %cst_58 : f32 to vector<16x1xf32>
    %133 = arith.maximumf %131, %132 : vector<16x1xf32>
    %134 = vector.broadcast %124 : vector<16x1xf32> to vector<16x32xf32>
    %135 = arith.subf %120, %134 : vector<16x32xf32>
    %cst_59 = arith.constant 9.99999974E-6 : f32
    %136 = vector.broadcast %cst_59 : f32 to vector<16x1xf32>
    %137 = arith.addf %133, %136 : vector<16x1xf32>
    %138 = math.rsqrt %137 : vector<16x1xf32>
    %139 = vector.broadcast %138 : vector<16x1xf32> to vector<16x32xf32>
    %140 = arith.mulf %135, %139 : vector<16x32xf32>
    %c0_60 = arith.constant 0 : index
    %c0_61 = arith.constant 0 : index
    %c0_62 = arith.constant 0 : index
    %141 = vector.load %arg15[%c0_60, %c0_61, %c0_62] : memref<1x1x32xf32, #tpu.memory_space<vmem>>, vector<1x1x32xf32>
    %142 = vector.shape_cast %141 : vector<1x1x32xf32> to vector<1x32xf32>
    %143 = vector.broadcast %142 : vector<1x32xf32> to vector<16x32xf32>
    %144 = arith.mulf %140, %143 : vector<16x32xf32>
    %c0_63 = arith.constant 0 : index
    %c0_64 = arith.constant 0 : index
    %c0_65 = arith.constant 0 : index
    %145 = vector.load %arg16[%c0_63, %c0_64, %c0_65] : memref<1x1x32xf32, #tpu.memory_space<vmem>>, vector<1x1x32xf32>
    %146 = vector.shape_cast %145 : vector<1x1x32xf32> to vector<1x32xf32>
    %147 = vector.broadcast %146 : vector<1x32xf32> to vector<16x32xf32>
    %148 = arith.addf %144, %147 : vector<16x32xf32>
    %149 = arith.truncf %148 : vector<16x32xf32> to vector<16x32xbf16>
    %c0_66 = arith.constant 0 : index
    %c0_67 = arith.constant 0 : index
    %c0_68 = arith.constant 0 : index
    %150 = vector.load %arg17[%c0_66, %c0_67, %c0_68] : memref<1x32x32xbf16, #tpu.memory_space<vmem>>, vector<1x32x32xbf16>
    %151 = vector.shape_cast %150 : vector<1x32x32xbf16> to vector<32x32xbf16>
    %cst_69 = arith.constant dense<0.000000e+00> : vector<16x32xf32>
    %152 = tpu.matmul %149, %151, %cst_69 {dimension_numbers = #tpu.dot_dimension_numbers<[1], [0], [0], [1], [0, 0, 1, 1], [], []>} : vector<16x32xbf16>, vector<32x32xbf16>, vector<16x32xf32> -> vector<16x32xf32>
    %c0_70 = arith.constant 0 : index
    %c0_71 = arith.constant 0 : index
    %c0_72 = arith.constant 0 : index
    %153 = vector.load %arg18[%c0_70, %c0_71, %c0_72] : memref<1x1x32xf32, #tpu.memory_space<vmem>>, vector<1x1x32xf32>
    %154 = vector.shape_cast %153 : vector<1x1x32xf32> to vector<1x32xf32>
    %155 = vector.broadcast %154 : vector<1x32xf32> to vector<16x32xf32>
    %156 = arith.addf %152, %155 : vector<16x32xf32>
    %157 = arith.truncf %156 : vector<16x32xf32> to vector<16x32xbf16>
    %c0_73 = arith.constant 0 : index
    %c0_74 = arith.constant 0 : index
    %c0_75 = arith.constant 0 : index
    %158 = vector.load %arg19[%c0_73, %c0_74, %c0_75] : memref<1x32x32xbf16, #tpu.memory_space<vmem>>, vector<1x32x32xbf16>
    %159 = vector.shape_cast %158 : vector<1x32x32xbf16> to vector<32x32xbf16>
    %cst_76 = arith.constant dense<0.000000e+00> : vector<16x32xf32>
    %160 = tpu.matmul %157, %159, %cst_76 {dimension_numbers = #tpu.dot_dimension_numbers<[1], [0], [0], [1], [0, 0, 1, 1], [], []>} : vector<16x32xbf16>, vector<32x32xbf16>, vector<16x32xf32> -> vector<16x32xf32>
    %161 = arith.truncf %160 : vector<16x32xf32> to vector<16x32xbf16>
    %cst_77 = arith.constant dense<0.000000e+00> : vector<16x16xf32>
    %162 = tpu.matmul %157, %161, %cst_77 {dimension_numbers = #tpu.dot_dimension_numbers<[1], [1], [0], [0], [0, 0, 1, 0], [], []>} : vector<16x32xbf16>, vector<16x32xbf16>, vector<16x16xf32> -> vector<16x16xf32>
    %cst_78 = arith.constant -1.000000e+30 : f32
    %163 = vector.broadcast %cst_78 : f32 to vector<16x16xf32>
    %164 = arith.select %35, %162, %163 : vector<16x16xi1>, vector<16x16xf32>
    %cst_79 = arith.constant dense<0xFF800000> : vector<16xf32>
    %165 = vector.multi_reduction <maximumf>, %164, %cst_79 [0] : vector<16x16xf32> to vector<16xf32>
    %166 = vector.shape_cast %165 : vector<16xf32> to vector<1x16xf32>
    %167 = vector.broadcast %166 : vector<1x16xf32> to vector<16x16xf32>
    %168 = arith.subf %164, %167 : vector<16x16xf32>
    %169 = math.exp %168 : vector<16x16xf32>
    %170 = arith.extui %35 : vector<16x16xi1> to vector<16x16xi32>
    %171 = arith.sitofp %170 : vector<16x16xi32> to vector<16x16xf32>
    %172 = arith.mulf %169, %171 : vector<16x16xf32>
    %cst_80 = arith.constant dense<0.000000e+00> : vector<16xf32>
    %173 = vector.multi_reduction <add>, %172, %cst_80 [0] : vector<16x16xf32> to vector<16xf32>
    %174 = vector.shape_cast %173 : vector<16xf32> to vector<1x16xf32>
    %cst_81 = arith.constant 1.000000e-30 : f32
    %175 = vector.broadcast %cst_81 : f32 to vector<1x16xf32>
    %176 = arith.maximumf %174, %175 : vector<1x16xf32>
    %177 = tpu.reciprocal %176 {approx = true} : vector<1x16xf32> -> vector<1x16xf32>
    %178 = vector.broadcast %177 : vector<1x16xf32> to vector<16x16xf32>
    %179 = arith.mulf %172, %178 : vector<16x16xf32>
    %c0_82 = arith.constant 0 : index
    %c0_83 = arith.constant 0 : index
    %180 = vector.load %arg4[%c0_82, %c0_83] : memref<128x16xbf16, #tpu.memory_space<vmem>>, vector<128x16xbf16>
    %cst_84 = arith.constant dense<0.000000e+00> : vector<128x32xf32>
    %181 = tpu.matmul %180, %157, %cst_84 {dimension_numbers = #tpu.dot_dimension_numbers<[1], [0], [0], [1], [0, 0, 1, 1], [], []>} : vector<128x16xbf16>, vector<16x32xbf16>, vector<128x32xf32> -> vector<128x32xf32>
    %182 = vector.shape_cast %181 : vector<128x32xf32> to vector<8x16x32xf32>
    %183 = arith.truncf %182 : vector<8x16x32xf32> to vector<8x16x32xbf16>
    %c0_85 = arith.constant 0 : index
    %c0_86 = arith.constant 0 : index
    %c0_87 = arith.constant 0 : index
    %c0_88 = arith.constant 0 : index
    %184 = vector.load %arg20[%c0_85, %c0_86, %c0_87, %c0_88] : memref<1x8x32x32xbf16, #tpu.memory_space<vmem>>, vector<1x8x32x32xbf16>
    %185 = vector.shape_cast %184 : vector<1x8x32x32xbf16> to vector<8x32x32xbf16>
    %cst_89 = arith.constant dense<0.000000e+00> : vector<8x16x32xf32>
    %186 = tpu.matmul %183, %185, %cst_89 {dimension_numbers = #tpu.dot_dimension_numbers<[2], [1], [1], [2], [0, 0, 0, 1, 1, 2], [0], [0]>} : vector<8x16x32xbf16>, vector<8x32x32xbf16>, vector<8x16x32xf32> -> vector<8x16x32xf32>
    %c0_90 = arith.constant 0 : index
    %c0_91 = arith.constant 0 : index
    %c0_92 = arith.constant 0 : index
    %187 = vector.load %arg21[%c0_90, %c0_91, %c0_92] : memref<1x32x32xbf16, #tpu.memory_space<vmem>>, vector<1x32x32xbf16>
    %188 = vector.shape_cast %187 : vector<1x32x32xbf16> to vector<32x32xbf16>
    %cst_93 = arith.constant dense<0.000000e+00> : vector<16x32xf32>
    %189 = tpu.matmul %157, %188, %cst_93 {dimension_numbers = #tpu.dot_dimension_numbers<[1], [0], [0], [1], [0, 0, 1, 1], [], []>} : vector<16x32xbf16>, vector<32x32xbf16>, vector<16x32xf32> -> vector<16x32xf32>
    %c0_94 = arith.constant 0 : index
    %c0_95 = arith.constant 0 : index
    %c0_96 = arith.constant 0 : index
    %190 = vector.load %arg22[%c0_94, %c0_95, %c0_96] : memref<1x1x32xf32, #tpu.memory_space<vmem>>, vector<1x1x32xf32>
    %191 = vector.shape_cast %190 : vector<1x1x32xf32> to vector<1x32xf32>
    %192 = vector.broadcast %191 : vector<1x32xf32> to vector<16x32xf32>
    %193 = arith.addf %189, %192 : vector<16x32xf32>
    %cst_97 = arith.constant dense<0.000000e+00> : vector<16x32xf32>
    %194 = vector.multi_reduction <add>, %186, %cst_97 [0] : vector<8x16x32xf32> to vector<16x32xf32>
    %195 = arith.addf %193, %194 : vector<16x32xf32>
    %196 = arith.truncf %179 : vector<16x16xf32> to vector<16x16xbf16>
    %197 = arith.truncf %195 : vector<16x32xf32> to vector<16x32xbf16>
    %cst_98 = arith.constant dense<0.000000e+00> : vector<16x32xf32>
    %198 = tpu.matmul %196, %197, %cst_98 {dimension_numbers = #tpu.dot_dimension_numbers<[1], [0], [0], [1], [0, 0, 1, 1], [], []>} : vector<16x16xbf16>, vector<16x32xbf16>, vector<16x32xf32> -> vector<16x32xf32>
    %199 = tpu.concatenate %198, %195 in 1 : vector<16x32xf32>, vector<16x32xf32> -> vector<16x64xf32>
    %200 = arith.truncf %199 : vector<16x64xf32> to vector<16x64xbf16>
    %c0_99 = arith.constant 0 : index
    %c0_100 = arith.constant 0 : index
    %c0_101 = arith.constant 0 : index
    %201 = vector.load %arg23[%c0_99, %c0_100, %c0_101] : memref<1x64x32xbf16, #tpu.memory_space<vmem>>, vector<1x64x32xbf16>
    %202 = vector.shape_cast %201 : vector<1x64x32xbf16> to vector<64x32xbf16>
    %cst_102 = arith.constant dense<0.000000e+00> : vector<16x32xf32>
    %203 = tpu.matmul %200, %202, %cst_102 {dimension_numbers = #tpu.dot_dimension_numbers<[1], [0], [0], [1], [0, 0, 1, 1], [], []>} : vector<16x64xbf16>, vector<64x32xbf16>, vector<16x32xf32> -> vector<16x32xf32>
    %c0_103 = arith.constant 0 : index
    %c0_104 = arith.constant 0 : index
    %c0_105 = arith.constant 0 : index
    %204 = vector.load %arg24[%c0_103, %c0_104, %c0_105] : memref<1x1x32xf32, #tpu.memory_space<vmem>>, vector<1x1x32xf32>
    %205 = vector.shape_cast %204 : vector<1x1x32xf32> to vector<1x32xf32>
    %206 = vector.broadcast %205 : vector<1x32xf32> to vector<16x32xf32>
    %207 = arith.addf %203, %206 : vector<16x32xf32>
    %208 = tpu.concatenate %156, %207 in 1 : vector<16x32xf32>, vector<16x32xf32> -> vector<16x64xf32>
    %209 = arith.truncf %208 : vector<16x64xf32> to vector<16x64xbf16>
    %c0_106 = arith.constant 0 : index
    %c0_107 = arith.constant 0 : index
    %c0_108 = arith.constant 0 : index
    %210 = vector.load %arg25[%c0_106, %c0_107, %c0_108] : memref<1x64x32xbf16, #tpu.memory_space<vmem>>, vector<1x64x32xbf16>
    %211 = vector.shape_cast %210 : vector<1x64x32xbf16> to vector<64x32xbf16>
    %cst_109 = arith.constant dense<0.000000e+00> : vector<16x32xf32>
    %212 = tpu.matmul %209, %211, %cst_109 {dimension_numbers = #tpu.dot_dimension_numbers<[1], [0], [0], [1], [0, 0, 1, 1], [], []>} : vector<16x64xbf16>, vector<64x32xbf16>, vector<16x32xf32> -> vector<16x32xf32>
    %c0_110 = arith.constant 0 : index
    %c0_111 = arith.constant 0 : index
    %c0_112 = arith.constant 0 : index
    %213 = vector.load %arg26[%c0_110, %c0_111, %c0_112] : memref<1x1x32xf32, #tpu.memory_space<vmem>>, vector<1x1x32xf32>
    %214 = vector.shape_cast %213 : vector<1x1x32xf32> to vector<1x32xf32>
    %215 = vector.broadcast %214 : vector<1x32xf32> to vector<16x32xf32>
    %216 = arith.addf %212, %215 : vector<16x32xf32>
    %cst_113 = arith.constant 0.000000e+00 : f32
    %217 = vector.broadcast %cst_113 : f32 to vector<16x32xf32>
    %218 = arith.maximumf %216, %217 : vector<16x32xf32>
    %219 = arith.truncf %218 : vector<16x32xf32> to vector<16x32xbf16>
    %c0_114 = arith.constant 0 : index
    %c0_115 = arith.constant 0 : index
    %c0_116 = arith.constant 0 : index
    %220 = vector.load %arg27[%c0_114, %c0_115, %c0_116] : memref<1x32x128xbf16, #tpu.memory_space<vmem>>, vector<1x32x128xbf16>
    %221 = vector.shape_cast %220 : vector<1x32x128xbf16> to vector<32x128xbf16>
    %cst_117 = arith.constant dense<0.000000e+00> : vector<16x128xf32>
    %222 = tpu.matmul %219, %221, %cst_117 {dimension_numbers = #tpu.dot_dimension_numbers<[1], [0], [0], [1], [0, 0, 1, 1], [], []>} : vector<16x32xbf16>, vector<32x128xbf16>, vector<16x128xf32> -> vector<16x128xf32>
    %c0_118 = arith.constant 0 : index
    %c0_119 = arith.constant 0 : index
    %c0_120 = arith.constant 0 : index
    %223 = vector.load %arg28[%c0_118, %c0_119, %c0_120] : memref<1x1x128xf32, #tpu.memory_space<vmem>>, vector<1x1x128xf32>
    %224 = vector.shape_cast %223 : vector<1x1x128xf32> to vector<1x128xf32>
    %225 = vector.broadcast %224 : vector<1x128xf32> to vector<16x128xf32>
    %226 = arith.addf %222, %225 : vector<16x128xf32>
    %c0_121 = arith.constant 0 : index
    %c0_122 = arith.constant 0 : index
    %c0_123 = arith.constant 0 : index
    %227 = vector.load %arg29[%c0_121, %c0_122, %c0_123] : memref<1x16x128xf32, #tpu.memory_space<vmem>>, vector<1x16x128xf32>
    %228 = vector.shape_cast %227 : vector<1x16x128xf32> to vector<16x128xf32>
    %229 = vector.shape_cast %226 : vector<16x128xf32> to vector<1x16x128xf32>
    tpu.vector_store %arg29[%c0_121, %c0_122, %c0_123], %229 {strides = array<i32>} : memref<1x16x128xf32, #tpu.memory_space<vmem>>, vector<1x16x128xf32>,
    return
  }
  func.func @transform_0(%arg0: i32) -> (i32, i32, i32) {
    %c0_i32 = arith.constant 0 : i32
    %c0_i32_0 = arith.constant 0 : i32
    %c0_i32_1 = arith.constant 0 : i32
    return %arg0, %c0_i32, %c0_i32_0 : i32, i32, i32
  }
  func.func @transform_1(%arg0: i32) -> (i32, i32, i32) {
    %c0_i32 = arith.constant 0 : i32
    %c0_i32_0 = arith.constant 0 : i32
    %c0_i32_1 = arith.constant 0 : i32
    return %arg0, %c0_i32, %c0_i32_0 : i32, i32, i32
  }
  func.func @transform_2(%arg0: i32) -> (i32, i32) {
    %c0_i32 = arith.constant 0 : i32
    %c0_i32_0 = arith.constant 0 : i32
    %c0_i32_1 = arith.constant 0 : i32
    return %c0_i32, %c0_i32_0 : i32, i32
  }
  func.func @transform_3(%arg0: i32) -> (i32, i32) {
    %c0_i32 = arith.constant 0 : i32
    %c0_i32_0 = arith.constant 0 : i32
    %c0_i32_1 = arith.constant 0 : i32
    return %c0_i32, %c0_i32_0 : i32, i32
  }
  func.func @transform_4(%arg0: i32) -> (i32, i32, i32) {
    %c0_i32 = arith.constant 0 : i32
    %c0_i32_0 = arith.constant 0 : i32
    %c0_i32_1 = arith.constant 0 : i32
    return %arg0, %c0_i32, %c0_i32_0 : i32, i32, i32
  }
  func.func @transform_5(%arg0: i32) -> (i32, i32, i32) {
    %c0_i32 = arith.constant 0 : i32
    %c0_i32_0 = arith.constant 0 : i32
    %c0_i32_1 = arith.constant 0 : i32
    return %arg0, %c0_i32, %c0_i32_0 : i32, i32, i32
  }
  func.func @transform_6(%arg0: i32) -> (i32, i32, i32) {
    %c0_i32 = arith.constant 0 : i32
    %c0_i32_0 = arith.constant 0 : i32
    %c0_i32_1 = arith.constant 0 : i32
    return %arg0, %c0_i32, %c0_i32_0 : i32, i32, i32
  }
  func.func @transform_7(%arg0: i32) -> (i32, i32, i32) {
    %c0_i32 = arith.constant 0 : i32
    %c0_i32_0 = arith.constant 0 : i32
    %c0_i32_1 = arith.constant 0 : i32
    return %arg0, %c0_i32, %c0_i32_0 : i32, i32, i32
  }
  func.func @transform_8(%arg0: i32) -> (i32, i32, i32) {
    %c0_i32 = arith.constant 0 : i32
    %c0_i32_0 = arith.constant 0 : i32
    %c0_i32_1 = arith.constant 0 : i32
    return %arg0, %c0_i32, %c0_i32_0 : i32, i32, i32
  }
  func.func @transform_9(%arg0: i32) -> (i32, i32, i32) {
    %c0_i32 = arith.constant 0 : i32
    %c0_i32_0 = arith.constant 0 : i32
    %c0_i32_1 = arith.constant 0 : i32
    return %arg0, %c0_i32, %c0_i32_0 : i32, i32, i32
  }
  func.func @transform_10(%arg0: i32) -> (i32, i32, i32) {
    %c0_i32 = arith.constant 0 : i32
    %c0_i32_0 = arith.constant 0 : i32
    %c0_i32_1 = arith.constant 0 : i32
    return %arg0, %c0_i32, %c0_i32_0 : i32, i32, i32
  }
  func.func @transform_11(%arg0: i32) -> (i32, i32, i32) {
    %c0_i32 = arith.constant 0 : i32
    %c0_i32_0 = arith.constant 0 : i32
    %c0_i32_1 = arith.constant 0 : i32
    return %arg0, %c0_i32, %c0_i32_0 : i32, i32, i32
  }
  func.func @transform_12(%arg0: i32) -> (i32, i32, i32) {
    %c0_i32 = arith.constant 0 : i32
    %c0_i32_0 = arith.constant 0 : i32
    %c0_i32_1 = arith.constant 0 : i32
    return %arg0, %c0_i32, %c0_i32_0 : i32, i32, i32
  }
  func.func @transform_13(%arg0: i32) -> (i32, i32, i32) {
    %c0_i32 = arith.constant 0 : i32
    %c0_i32_0 = arith.constant 0 : i32
    %c0_i32_1 = arith.constant 0 : i32
    return %arg0, %c0_i32, %c0_i32_0 : i32, i32, i32
  }
  func.func @transform_14(%arg0: i32) -> (i32, i32, i32) {
    %c0_i32 = arith.constant 0 : i32
    %c0_i32_0 = arith.constant 0 : i32
    %c0_i32_1 = arith.constant 0 : i32
    return %arg0, %c0_i32, %c0_i32_0 : i32, i32, i32
  }
  func.func @transform_15(%arg0: i32) -> (i32, i32, i32) {
    %c0_i32 = arith.constant 0 : i32
    %c0_i32_0 = arith.constant 0 : i32
    %c0_i32_1 = arith.constant 0 : i32
    return %arg0, %c0_i32, %c0_i32_0 : i32, i32, i32
  }
  func.func @transform_16(%arg0: i32) -> (i32, i32, i32) {
    %c0_i32 = arith.constant 0 : i32
    %c0_i32_0 = arith.constant 0 : i32
    %c0_i32_1 = arith.constant 0 : i32
    return %arg0, %c0_i32, %c0_i32_0 : i32, i32, i32
  }
  func.func @transform_17(%arg0: i32) -> (i32, i32, i32) {
    %c0_i32 = arith.constant 0 : i32
    %c0_i32_0 = arith.constant 0 : i32
    %c0_i32_1 = arith.constant 0 : i32
    return %arg0, %c0_i32, %c0_i32_0 : i32, i32, i32
  }
  func.func @transform_18(%arg0: i32) -> (i32, i32, i32) {
    %c0_i32 = arith.constant 0 : i32
    %c0_i32_0 = arith.constant 0 : i32
    %c0_i32_1 = arith.constant 0 : i32
    return %arg0, %c0_i32, %c0_i32_0 : i32, i32, i32
  }
  func.func @transform_19(%arg0: i32) -> (i32, i32, i32, i32) {
    %c0_i32 = arith.constant 0 : i32
    %c0_i32_0 = arith.constant 0 : i32
    %c0_i32_1 = arith.constant 0 : i32
    %c0_i32_2 = arith.constant 0 : i32
    return %arg0, %c0_i32, %c0_i32_0, %c0_i32_1 : i32, i32, i32, i32
  }
  func.func @transform_20(%arg0: i32) -> (i32, i32, i32) {
    %c0_i32 = arith.constant 0 : i32
    %c0_i32_0 = arith.constant 0 : i32
    %c0_i32_1 = arith.constant 0 : i32
    return %arg0, %c0_i32, %c0_i32_0 : i32, i32, i32
  }
  func.func @transform_21(%arg0: i32) -> (i32, i32, i32) {
    %c0_i32 = arith.constant 0 : i32
    %c0_i32_0 = arith.constant 0 : i32
    %c0_i32_1 = arith.constant 0 : i32
    return %arg0, %c0_i32, %c0_i32_0 : i32, i32, i32
  }
  func.func @transform_22(%arg0: i32) -> (i32, i32, i32) {
    %c0_i32 = arith.constant 0 : i32
    %c0_i32_0 = arith.constant 0 : i32
    %c0_i32_1 = arith.constant 0 : i32
    return %arg0, %c0_i32, %c0_i32_0 : i32, i32, i32
  }
  func.func @transform_23(%arg0: i32) -> (i32, i32, i32) {
    %c0_i32 = arith.constant 0 : i32
    %c0_i32_0 = arith.constant 0 : i32
    %c0_i32_1 = arith.constant 0 : i32
    return %arg0, %c0_i32, %c0_i32_0 : i32, i32, i32
  }
  func.func @transform_24(%arg0: i32) -> (i32, i32, i32) {
    %c0_i32 = arith.constant 0 : i32
    %c0_i32_0 = arith.constant 0 : i32
    %c0_i32_1 = arith.constant 0 : i32
    return %arg0, %c0_i32, %c0_i32_0 : i32, i32, i32
  }
  func.func @transform_25(%arg0: i32) -> (i32, i32, i32) {
    %c0_i32 = arith.constant 0 : i32
    %c0_i32_0 = arith.constant 0 : i32
    %c0_i32_1 = arith.constant 0 : i32
    return %arg0, %c0_i32, %c0_i32_0 : i32, i32, i32
  }
  func.func @transform_26(%arg0: i32) -> (i32, i32, i32) {
    %c0_i32 = arith.constant 0 : i32
    %c0_i32_0 = arith.constant 0 : i32
    %c0_i32_1 = arith.constant 0 : i32
    return %arg0, %c0_i32, %c0_i32_0 : i32, i32, i32
  }
  func.func @transform_27(%arg0: i32) -> (i32, i32, i32) {
    %c0_i32 = arith.constant 0 : i32
    %c0_i32_0 = arith.constant 0 : i32
    %c0_i32_1 = arith.constant 0 : i32
    return %arg0, %c0_i32, %c0_i32_0 : i32, i32, i32
  }
  func.func @transform_28(%arg0: i32) -> (i32, i32, i32) {
    %c0_i32 = arith.constant 0 : i32
    %c0_i32_0 = arith.constant 0 : i32
    %c0_i32_1 = arith.constant 0 : i32
    return %arg0, %c0_i32, %c0_i32_0 : i32, i32, i32
  }
}

</mosaic_0001>

<llo_original>
// kernel: fwd.1
$region0: #{fwd.1}
  #allocation0 [shape = 'u32[]', space=smem, size = 0x4, offset = 0x4, fixed_abs, tag = 'smem constant byte address 0x4 - core index']
  #allocation1 [shape = 'u32[144,128]{1,0:T(1,128)}', space=vmem, size = 0x12000, scoped, tag = 'internal scratch']
  %s0 = inlined_call_operand.vmem [shape: f32[2,1,1], index: 0, kind: input, shape index: {}]
  %s1 = inlined_call_operand.vmem [shape: f32[2,16,32], index: 1, kind: input, shape index: {}]
  %s2 = inlined_call_operand.vmem [shape: f32[1,16], index: 2, kind: input, shape index: {}]
  %s3 = inlined_call_operand.vmem [shape: bf16[128,16], index: 3, kind: input, shape index: {}]
  %s4 = inlined_call_operand.vmem [shape: bf16[2,32,96], index: 4, kind: input, shape index: {}]
  %s5 = inlined_call_operand.vmem [shape: f32[2,1,96], index: 5, kind: input, shape index: {}]
  %s6 = inlined_call_operand.vmem [shape: bf16[2,32,32], index: 6, kind: input, shape index: {}]
  %s7 = inlined_call_operand.vmem [shape: f32[2,1,32], index: 7, kind: input, shape index: {}]
  %s8 = inlined_call_operand.vmem [shape: f32[2,1,32], index: 8, kind: input, shape index: {}]
  %s9 = inlined_call_operand.vmem [shape: f32[2,1,32], index: 9, kind: input, shape index: {}]
  %s10 = inlined_call_operand.vmem [shape: bf16[2,32,2048], index: 10, kind: input, shape index: {}]
  %s11 = inlined_call_operand.vmem [shape: f32[2,1,2048], index: 11, kind: input, shape index: {}]
  %s12 = inlined_call_operand.vmem [shape: bf16[2,2048,32], index: 12, kind: input, shape index: {}]
  %s13 = inlined_call_operand.vmem [shape: f32[2,1,32], index: 13, kind: input, shape index: {}]
  %s14 = inlined_call_operand.vmem [shape: f32[2,1,32], index: 14, kind: input, shape index: {}]
  %s15 = inlined_call_operand.vmem [shape: f32[2,1,32], index: 15, kind: input, shape index: {}]
  %s16 = inlined_call_operand.vmem [shape: bf16[2,32,32], index: 16, kind: input, shape index: {}]
  %s17 = inlined_call_operand.vmem [shape: f32[2,1,32], index: 17, kind: input, shape index: {}]
  %s18 = inlined_call_operand.vmem [shape: bf16[2,32,32], index: 18, kind: input, shape index: {}]
  %s19 = inlined_call_operand.vmem [shape: bf16[2,8,32,32], index: 19, kind: input, shape index: {}]
  %s20 = inlined_call_operand.vmem [shape: bf16[2,32,32], index: 20, kind: input, shape index: {}]
  %s21 = inlined_call_operand.vmem [shape: f32[2,1,32], index: 21, kind: input, shape index: {}]
  %s22 = inlined_call_operand.vmem [shape: bf16[2,64,32], index: 22, kind: input, shape index: {}]
  %s23 = inlined_call_operand.vmem [shape: f32[2,1,32], index: 23, kind: input, shape index: {}]
  %s24 = inlined_call_operand.vmem [shape: bf16[2,64,32], index: 24, kind: input, shape index: {}]
  %s25 = inlined_call_operand.vmem [shape: f32[2,1,32], index: 25, kind: input, shape index: {}]
  %s26 = inlined_call_operand.vmem [shape: bf16[2,32,128], index: 26, kind: input, shape index: {}]
  %s27 = inlined_call_operand.vmem [shape: f32[2,1,128], index: 27, kind: input, shape index: {}]
  %s28 = inlined_call_operand.vmem [shape: f32[2,16,128], index: 28, kind: output, shape index: {}]
  %s29 = sld [smem:[#allocation0]]
  $region145: #{fwd.1} parent=0
    _
  %s31 = ssub.s32 1, %s29
  %s32 = scalar_select 0, %s31, %s29
  loop: start=0, step=1, limit=4
  $region2: #{fwd.1} parent=0 // loop_pre_header
    _
  $region3: #{fwd.1} parent=0 // loop_header
    %s34 = sphi 0, %s38
    %p35 = scmp.ge.s32.totalorder %s34, 4
    %s44 = sphi 0, %s46
    %s47 = sphi 0, %s44
    %s48 = sphi 0, %s47
    %s64 = sphi 0, %s48
    %s70 = sphi 0, %s72
    %s73 = sphi 0, %s70
    %s74 = sphi 0, %s73
    %s90 = sphi 0, %s74
    %s94 = sphi 0, %s94
    %s96 = sphi 0, %s94
    %s97 = sphi 0, %s96
    %s111 = sphi 0, %s97
    %s115 = sphi 0, %s115
    %s117 = sphi 0, %s115
    %s118 = sphi 0, %s117
    %s132 = sphi 0, %s118
    %s138 = sphi 0, %s140
    %s141 = sphi 0, %s138
    %s142 = sphi 0, %s141
    %s158 = sphi 0, %s142
    %s164 = sphi 0, %s166
    %s167 = sphi 0, %s164
    %s168 = sphi 0, %s167
    %s184 = sphi 0, %s168
    %s190 = sphi 0, %s192
    %s193 = sphi 0, %s190
    %s194 = sphi 0, %s193
    %s210 = sphi 0, %s194
    %s216 = sphi 0, %s218
    %s219 = sphi 0, %s216
    %s220 = sphi 0, %s219
    %s236 = sphi 0, %s220
    %s242 = sphi 0, %s244
    %s245 = sphi 0, %s242
    %s246 = sphi 0, %s245
    %s262 = sphi 0, %s246
    %s268 = sphi 0, %s270
    %s271 = sphi 0, %s268
    %s272 = sphi 0, %s271
    %s288 = sphi 0, %s272
    %s294 = sphi 0, %s296
    %s297 = sphi 0, %s294
    %s298 = sphi 0, %s297
    %s314 = sphi 0, %s298
    %s320 = sphi 0, %s322
    %s323 = sphi 0, %s320
    %s324 = sphi 0, %s323
    %s340 = sphi 0, %s324
    %s346 = sphi 0, %s348
    %s349 = sphi 0, %s346
    %s350 = sphi 0, %s349
    %s366 = sphi 0, %s350
    %s372 = sphi 0, %s374
    %s375 = sphi 0, %s372
    %s376 = sphi 0, %s375
    %s392 = sphi 0, %s376
    %s398 = sphi 0, %s400
    %s401 = sphi 0, %s398
    %s402 = sphi 0, %s401
    %s418 = sphi 0, %s402
    %s424 = sphi 0, %s426
    %s427 = sphi 0, %s424
    %s428 = sphi 0, %s427
    %s444 = sphi 0, %s428
    %s450 = sphi 0, %s452
    %s453 = sphi 0, %s450
    %s454 = sphi 0, %s453
    %s470 = sphi 0, %s454
    %s476 = sphi 0, %s478
    %s479 = sphi 0, %s476
    %s480 = sphi 0, %s479
    %s496 = sphi 0, %s480
    %s502 = sphi 0, %s504
    %s505 = sphi 0, %s502
    %s506 = sphi 0, %s505
    %s522 = sphi 0, %s506
    %s528 = sphi 0, %s530
    %s531 = sphi 0, %s528
    %s532 = sphi 0, %s531
    %s548 = sphi 0, %s532
    %s554 = sphi 0, %s556
    %s557 = sphi 0, %s554
    %s558 = sphi 0, %s557
    %s574 = sphi 0, %s558
    %s580 = sphi 0, %s582
    %s583 = sphi 0, %s580
    %s584 = sphi 0, %s583
    %s600 = sphi 0, %s584
    %s606 = sphi 0, %s608
    %s609 = sphi 0, %s606
    %s610 = sphi 0, %s609
    %s626 = sphi 0, %s610
    %s632 = sphi 0, %s634
    %s635 = sphi 0, %s632
    %s636 = sphi 0, %s635
    %s652 = sphi 0, %s636
    %s658 = sphi 0, %s660
    %s661 = sphi 0, %s658
    %s662 = sphi 0, %s661
    %s678 = sphi 0, %s662
    %s684 = sphi 0, %s686
    %s687 = sphi 0, %s684
    %s688 = sphi 0, %s687
    %s704 = sphi 0, %s688
    %s710 = sphi 0, %s712
    %s713 = sphi 0, %s710
    %s714 = sphi 0, %s713
    %s730 = sphi 0, %s714
    %s736 = sphi 0, %s738
    %s739 = sphi 0, %s736
    %s740 = sphi 0, %s739
    %s756 = sphi 0, %s740
    %s762 = sphi 0, %s764
    %s765 = sphi 0, %s762
    %s766 = sphi 0, %s765
    %s782 = sphi 0, %s766
  $region4: #{fwd.1} parent=0 // loop_header_branch
    %37 = sbr.rel (%p35) target = $region8
  $region5: #{fwd.1} parent=0 // loop_body
    %s39 = ssub.s32 %s34, 1
    %s40 = ssub.s32 %s34, 2
    %s41 = sadd.s32 %s34, 1
    %s42 = ssub.s32 %s34, %s41
    %p43 = scmp.eq.s32.totalorder %s42, 0
    %s45 = sadd.s32 %s44, 1
    %s46 = scalar_select %p43, %s44, %s45
    %p49 = pneg %p43
    %p50 = scmp.eq.s32.totalorder %s34, 1
    %p51 = por %p49, %p50
    %p52 = scmp.ne.s32.totalorder %s44, %s47
    %p53 = scmp.eq.s32.totalorder %s34, 0
    %p54 = por %p52, %p53
    %p55 = scmp.ne.s32.totalorder %s44, %s47
    %p56 = scmp.eq.s32.totalorder %s39, 1
    %p57 = por %p55, %p56
    %p58 = scmp.ne.s32.totalorder %s47, %s48
    %p59 = scmp.eq.s32.totalorder %s39, 0
    %p60 = por %p58, %p59
    %p61 = scmp.ne.s32.totalorder %s47, %s48
    %p62 = scmp.eq.s32.totalorder %s40, 1
    %p63 = por %p61, %p62
    %p65 = scmp.ne.s32.totalorder %s48, %s64
    %p66 = scmp.eq.s32.totalorder %s40, 0
    %p67 = por %p65, %p66
    %s68 = ssub.s32 %s34, %s41
    %p69 = scmp.eq.s32.totalorder %s68, 0
    %s71 = sadd.s32 %s70, 1
    %s72 = scalar_select %p69, %s70, %s71
    %p75 = pneg %p69
    %p76 = scmp.eq.s32.totalorder %s34, 1
    %p77 = por %p75, %p76
    %p78 = scmp.ne.s32.totalorder %s70, %s73
    %p79 = scmp.eq.s32.totalorder %s34, 0
    %p80 = por %p78, %p79
    %p81 = scmp.ne.s32.totalorder %s70, %s73
    %p82 = scmp.eq.s32.totalorder %s39, 1
    %p83 = por %p81, %p82
    %p84 = scmp.ne.s32.totalorder %s73, %s74
    %p85 = scmp.eq.s32.totalorder %s39, 0
    %p86 = por %p84, %p85
    %p87 = scmp.ne.s32.totalorder %s73, %s74
    %p88 = scmp.eq.s32.totalorder %s40, 1
    %p89 = por %p87, %p88
    %p91 = scmp.ne.s32.totalorder %s74, %s90
    %p92 = scmp.eq.s32.totalorder %s40, 0
    %p93 = por %p91, %p92
    %s95 = sadd.s32 %s94, 1
    %p98 = scmp.eq.s32.totalorder %s34, 1
    %p99 = scmp.ne.s32.totalorder %s94, %s96
    %p100 = scmp.eq.s32.totalorder %s34, 0
    %p101 = por %p99, %p100
    %p102 = scmp.ne.s32.totalorder %s94, %s96
    %p103 = scmp.eq.s32.totalorder %s39, 1
    %p104 = por %p102, %p103
    %p105 = scmp.ne.s32.totalorder %s96, %s97
    %p106 = scmp.eq.s32.totalorder %s39, 0
    %p107 = por %p105, %p106
    %p108 = scmp.ne.s32.totalorder %s96, %s97
    %p109 = scmp.eq.s32.totalorder %s40, 1
    %p110 = por %p108, %p109
    %p112 = scmp.ne.s32.totalorder %s97, %s111
    %p113 = scmp.eq.s32.totalorder %s40, 0
    %p114 = por %p112, %p113
    %s116 = sadd.s32 %s115, 1
    %p119 = scmp.eq.s32.totalorder %s34, 1
    %p120 = scmp.ne.s32.totalorder %s115, %s117
    %p121 = scmp.eq.s32.totalorder %s34, 0
    %p122 = por %p120, %p121
    %p123 = scmp.ne.s32.totalorder %s115, %s117
    %p124 = scmp.eq.s32.totalorder %s39, 1
    %p125 = por %p123, %p124
    %p126 = scmp.ne.s32.totalorder %s117, %s118
    %p127 = scmp.eq.s32.totalorder %s39, 0
    %p128 = por %p126, %p127
    %p129 = scmp.ne.s32.totalorder %s117, %s118
    %p130 = scmp.eq.s32.totalorder %s40, 1
    %p131 = por %p129, %p130
    %p133 = scmp.ne.s32.totalorder %s118, %s132
    %p134 = scmp.eq.s32.totalorder %s40, 0
    %p135 = por %p133, %p134
    %s136 = ssub.s32 %s34, %s41
    %p137 = scmp.eq.s32.totalorder %s136, 0
    %s139 = sadd.s32 %s138, 1
    %s140 = scalar_select %p137, %s138, %s139
    %p143 = pneg %p137
    %p144 = scmp.eq.s32.totalorder %s34, 1
    %p145 = por %p143, %p144
    %p146 = scmp.ne.s32.totalorder %s138, %s141
    %p147 = scmp.eq.s32.totalorder %s34, 0
    %p148 = por %p146, %p147
    %p149 = scmp.ne.s32.totalorder %s138, %s141
    %p150 = scmp.eq.s32.totalorder %s39, 1
    %p151 = por %p149, %p150
    %p152 = scmp.ne.s32.totalorder %s141, %s142
    %p153 = scmp.eq.s32.totalorder %s39, 0
    %p154 = por %p152, %p153
    %p155 = scmp.ne.s32.totalorder %s141, %s142
    %p156 = scmp.eq.s32.totalorder %s40, 1
    %p157 = por %p155, %p156
    %p159 = scmp.ne.s32.totalorder %s142, %s158
    %p160 = scmp.eq.s32.totalorder %s40, 0
    %p161 = por %p159, %p160
    %s162 = ssub.s32 %s34, %s41
    %p163 = scmp.eq.s32.totalorder %s162, 0
    %s165 = sadd.s32 %s164, 1
    %s166 = scalar_select %p163, %s164, %s165
    %p169 = pneg %p163
    %p170 = scmp.eq.s32.totalorder %s34, 1
    %p171 = por %p169, %p170
    %p172 = scmp.ne.s32.totalorder %s164, %s167
    %p173 = scmp.eq.s32.totalorder %s34, 0
    %p174 = por %p172, %p173
    %p175 = scmp.ne.s32.totalorder %s164, %s167
    %p176 = scmp.eq.s32.totalorder %s39, 1
    %p177 = por %p175, %p176
    %p178 = scmp.ne.s32.totalorder %s167, %s168
    %p179 = scmp.eq.s32.totalorder %s39, 0
    %p180 = por %p178, %p179
    %p181 = scmp.ne.s32.totalorder %s167, %s168
    %p182 = scmp.eq.s32.totalorder %s40, 1
    %p183 = por %p181, %p182
    %p185 = scmp.ne.s32.totalorder %s168, %s184
    %p186 = scmp.eq.s32.totalorder %s40, 0
    %p187 = por %p185, %p186
    %s188 = ssub.s32 %s34, %s41
    %p189 = scmp.eq.s32.totalorder %s188, 0
    %s191 = sadd.s32 %s190, 1
    %s192 = scalar_select %p189, %s190, %s191
    %p195 = pneg %p189
    %p196 = scmp.eq.s32.totalorder %s34, 1
    %p197 = por %p195, %p196
    %p198 = scmp.ne.s32.totalorder %s190, %s193
    %p199 = scmp.eq.s32.totalorder %s34, 0
    %p200 = por %p198, %p199
    %p201 = scmp.ne.s32.totalorder %s190, %s193
    %p202 = scmp.eq.s32.totalorder %s39, 1
    %p203 = por %p201, %p202
    %p204 = scmp.ne.s32.totalorder %s193, %s194
    %p205 = scmp.eq.s32.totalorder %s39, 0
    %p206 = por %p204, %p205
    %p207 = scmp.ne.s32.totalorder %s193, %s194
    %p208 = scmp.eq.s32.totalorder %s40, 1
    %p209 = por %p207, %p208
    %p211 = scmp.ne.s32.totalorder %s194, %s210
    %p212 = scmp.eq.s32.totalorder %s40, 0
    %p213 = por %p211, %p212
    %s214 = ssub.s32 %s34, %s41
    %p215 = scmp.eq.s32.totalorder %s214, 0
    %s217 = sadd.s32 %s216, 1
    %s218 = scalar_select %p215, %s216, %s217
    %p221 = pneg %p215
    %p222 = scmp.eq.s32.totalorder %s34, 1
    %p223 = por %p221, %p222
    %p224 = scmp.ne.s32.totalorder %s216, %s219
    %p225 = scmp.eq.s32.totalorder %s34, 0
    %p226 = por %p224, %p225
    %p227 = scmp.ne.s32.totalorder %s216, %s219
    %p228 = scmp.eq.s32.totalorder %s39, 1
    %p229 = por %p227, %p228
    %p230 = scmp.ne.s32.totalorder %s219, %s220
    %p231 = scmp.eq.s32.totalorder %s39, 0
    %p232 = por %p230, %p231
    %p233 = scmp.ne.s32.totalorder %s219, %s220
    %p234 = scmp.eq.s32.totalorder %s40, 1
    %p235 = por %p233, %p234
    %p237 = scmp.ne.s32.totalorder %s220, %s236
    %p238 = scmp.eq.s32.totalorder %s40, 0
    %p239 = por %p237, %p238
    %s240 = ssub.s32 %s34, %s41
    %p241 = scmp.eq.s32.totalorder %s240, 0
    %s243 = sadd.s32 %s242, 1
    %s244 = scalar_select %p241, %s242, %s243
    %p247 = pneg %p241
    %p248 = scmp.eq.s32.totalorder %s34, 1
    %p249 = por %p247, %p248
    %p250 = scmp.ne.s32.totalorder %s242, %s245
    %p251 = scmp.eq.s32.totalorder %s34, 0
    %p252 = por %p250, %p251
    %p253 = scmp.ne.s32.totalorder %s242, %s245
    %p254 = scmp.eq.s32.totalorder %s39, 1
    %p255 = por %p253, %p254
    %p256 = scmp.ne.s32.totalorder %s245, %s246
    %p257 = scmp.eq.s32.totalorder %s39, 0
    %p258 = por %p256, %p257
    %p259 = scmp.ne.s32.totalorder %s245, %s246
    %p260 = scmp.eq.s32.totalorder %s40, 1
    %p261 = por %p259, %p260
    %p263 = scmp.ne.s32.totalorder %s246, %s262
    %p264 = scmp.eq.s32.totalorder %s40, 0
    %p265 = por %p263, %p264
    %s266 = ssub.s32 %s34, %s41
    %p267 = scmp.eq.s32.totalorder %s266, 0
    %s269 = sadd.s32 %s268, 1
    %s270 = scalar_select %p267, %s268, %s269
    %p273 = pneg %p267
    %p274 = scmp.eq.s32.totalorder %s34, 1
    %p275 = por %p273, %p274
    %p276 = scmp.ne.s32.totalorder %s268, %s271
    %p277 = scmp.eq.s32.totalorder %s34, 0
    %p278 = por %p276, %p277
    %p279 = scmp.ne.s32.totalorder %s268, %s271
    %p280 = scmp.eq.s32.totalorder %s39, 1
    %p281 = por %p279, %p280
    %p282 = scmp.ne.s32.totalorder %s271, %s272
    %p283 = scmp.eq.s32.totalorder %s39, 0
    %p284 = por %p282, %p283
    %p285 = scmp.ne.s32.totalorder %s271, %s272
    %p286 = scmp.eq.s32.totalorder %s40, 1
    %p287 = por %p285, %p286
    %p289 = scmp.ne.s32.totalorder %s272, %s288
    %p290 = scmp.eq.s32.totalorder %s40, 0
    %p291 = por %p289, %p290
    %s292 = ssub.s32 %s34, %s41
    %p293 = scmp.eq.s32.totalorder %s292, 0
    %s295 = sadd.s32 %s294, 1
    %s296 = scalar_select %p293, %s294, %s295
    %p299 = pneg %p293
    %p300 = scmp.eq.s32.totalorder %s34, 1
    %p301 = por %p299, %p300
    %p302 = scmp.ne.s32.totalorder %s294, %s297
    %p303 = scmp.eq.s32.totalorder %s34, 0
    %p304 = por %p302, %p303
    %p305 = scmp.ne.s32.totalorder %s294, %s297
    %p306 = scmp.eq.s32.totalorder %s39, 1
    %p307 = por %p305, %p306
    %p308 = scmp.ne.s32.totalorder %s297, %s298
    %p309 = scmp.eq.s32.totalorder %s39, 0
    %p310 = por %p308, %p309
    %p311 = scmp.ne.s32.totalorder %s297, %s298
    %p312 = scmp.eq.s32.totalorder %s40, 1
    %p313 = por %p311, %p312
    %p315 = scmp.ne.s32.totalorder %s298, %s314
    %p316 = scmp.eq.s32.totalorder %s40, 0
    %p317 = por %p315, %p316
    %s318 = ssub.s32 %s34, %s41
    %p319 = scmp.eq.s32.totalorder %s318, 0
    %s321 = sadd.s32 %s320, 1
    %s322 = scalar_select %p319, %s320, %s321
    %p325 = pneg %p319
    %p326 = scmp.eq.s32.totalorder %s34, 1
    %p327 = por %p325, %p326
    %p328 = scmp.ne.s32.totalorder %s320, %s323
    %p329 = scmp.eq.s32.totalorder %s34, 0
    %p330 = por %p328, %p329
    %p331 = scmp.ne.s32.totalorder %s320, %s323
    %p332 = scmp.eq.s32.totalorder %s39, 1
    %p333 = por %p331, %p332
    %p334 = scmp.ne.s32.totalorder %s323, %s324
    %p335 = scmp.eq.s32.totalorder %s39, 0
    %p336 = por %p334, %p335
    %p337 = scmp.ne.s32.totalorder %s323, %s324
    %p338 = scmp.eq.s32.totalorder %s40, 1
    %p339 = por %p337, %p338
    %p341 = scmp.ne.s32.totalorder %s324, %s340
    %p342 = scmp.eq.s32.totalorder %s40, 0
    %p343 = por %p341, %p342
    %s344 = ssub.s32 %s34, %s41
    %p345 = scmp.eq.s32.totalorder %s344, 0
    %s347 = sadd.s32 %s346, 1
    %s348 = scalar_select %p345, %s346, %s347
    %p351 = pneg %p345
    %p352 = scmp.eq.s32.totalorder %s34, 1
    %p353 = por %p351, %p352
    %p354 = scmp.ne.s32.totalorder %s346, %s349
    %p355 = scmp.eq.s32.totalorder %s34, 0
    %p356 = por %p354, %p355
    %p357 = scmp.ne.s32.totalorder %s346, %s349
    %p358 = scmp.eq.s32.totalorder %s39, 1
    %p359 = por %p357, %p358
    %p360 = scmp.ne.s32.totalorder %s349, %s350
    %p361 = scmp.eq.s32.totalorder %s39, 0
    %p362 = por %p360, %p361
    %p363 = scmp.ne.s32.totalorder %s349, %s350
    %p364 = scmp.eq.s32.totalorder %s40, 1
    %p365 = por %p363, %p364
    %p367 = scmp.ne.s32.totalorder %s350, %s366
    %p368 = scmp.eq.s32.totalorder %s40, 0
    %p369 = por %p367, %p368
    %s370 = ssub.s32 %s34, %s41
    %p371 = scmp.eq.s32.totalorder %s370, 0
    %s373 = sadd.s32 %s372, 1
    %s374 = scalar_select %p371, %s372, %s373
    %p377 = pneg %p371
    %p378 = scmp.eq.s32.totalorder %s34, 1
    %p379 = por %p377, %p378
    %p380 = scmp.ne.s32.totalorder %s372, %s375
    %p381 = scmp.eq.s32.totalorder %s34, 0
    %p382 = por %p380, %p381
    %p383 = scmp.ne.s32.totalorder %s372, %s375
    %p384 = scmp.eq.s32.totalorder %s39, 1
    %p385 = por %p383, %p384
    %p386 = scmp.ne.s32.totalorder %s375, %s376
    %p387 = scmp.eq.s32.totalorder %s39, 0
    %p388 = por %p386, %p387
    %p389 = scmp.ne.s32.totalorder %s375, %s376
    %p390 = scmp.eq.s32.totalorder %s40, 1
    %p391 = por %p389, %p390
    %p393 = scmp.ne.s32.totalorder %s376, %s392
    %p394 = scmp.eq.s32.totalorder %s40, 0
    %p395 = por %p393, %p394
    %s396 = ssub.s32 %s34, %s41
    %p397 = scmp.eq.s32.totalorder %s396, 0
    %s399 = sadd.s32 %s398, 1
    %s400 = scalar_select %p397, %s398, %s399
    %p403 = pneg %p397
    %p404 = scmp.eq.s32.totalorder %s34, 1
    %p405 = por %p403, %p404
    %p406 = scmp.ne.s32.totalorder %s398, %s401
    %p407 = scmp.eq.s32.totalorder %s34, 0
    %p408 = por %p406, %p407
    %p409 = scmp.ne.s32.totalorder %s398, %s401
    %p410 = scmp.eq.s32.totalorder %s39, 1
    %p411 = por %p409, %p410
    %p412 = scmp.ne.s32.totalorder %s401, %s402
    %p413 = scmp.eq.s32.totalorder %s39, 0
    %p414 = por %p412, %p413
    %p415 = scmp.ne.s32.totalorder %s401, %s402
    %p416 = scmp.eq.s32.totalorder %s40, 1
    %p417 = por %p415, %p416
    %p419 = scmp.ne.s32.totalorder %s402, %s418
    %p420 = scmp.eq.s32.totalorder %s40, 0
    %p421 = por %p419, %p420
    %s422 = ssub.s32 %s34, %s41
    %p423 = scmp.eq.s32.totalorder %s422, 0
    %s425 = sadd.s32 %s424, 1
    %s426 = scalar_select %p423, %s424, %s425
    %p429 = pneg %p423
    %p430 = scmp.eq.s32.totalorder %s34, 1
    %p431 = por %p429, %p430
    %p432 = scmp.ne.s32.totalorder %s424, %s427
    %p433 = scmp.eq.s32.totalorder %s34, 0
    %p434 = por %p432, %p433
    %p435 = scmp.ne.s32.totalorder %s424, %s427
    %p436 = scmp.eq.s32.totalorder %s39, 1
    %p437 = por %p435, %p436
    %p438 = scmp.ne.s32.totalorder %s427, %s428
    %p439 = scmp.eq.s32.totalorder %s39, 0
    %p440 = por %p438, %p439
    %p441 = scmp.ne.s32.totalorder %s427, %s428
    %p442 = scmp.eq.s32.totalorder %s40, 1
    %p443 = por %p441, %p442
    %p445 = scmp.ne.s32.totalorder %s428, %s444
    %p446 = scmp.eq.s32.totalorder %s40, 0
    %p447 = por %p445, %p446
    %s448 = ssub.s32 %s34, %s41
    %p449 = scmp.eq.s32.totalorder %s448, 0
    %s451 = sadd.s32 %s450, 1
    %s452 = scalar_select %p449, %s450, %s451
    %p455 = pneg %p449
    %p456 = scmp.eq.s32.totalorder %s34, 1
    %p457 = por %p455, %p456
    %p458 = scmp.ne.s32.totalorder %s450, %s453
    %p459 = scmp.eq.s32.totalorder %s34, 0
    %p460 = por %p458, %p459
    %p461 = scmp.ne.s32.totalorder %s450, %s453
    %p462 = scmp.eq.s32.totalorder %s39, 1
    %p463 = por %p461, %p462
    %p464 = scmp.ne.s32.totalorder %s453, %s454
    %p465 = scmp.eq.s32.totalorder %s39, 0
    %p466 = por %p464, %p465
    %p467 = scmp.ne.s32.totalorder %s453, %s454
    %p468 = scmp.eq.s32.totalorder %s40, 1
    %p469 = por %p467, %p468
    %p471 = scmp.ne.s32.totalorder %s454, %s470
    %p472 = scmp.eq.s32.totalorder %s40, 0
    %p473 = por %p471, %p472
    %s474 = ssub.s32 %s34, %s41
    %p475 = scmp.eq.s32.totalorder %s474, 0
    %s477 = sadd.s32 %s476, 1
    %s478 = scalar_select %p475, %s476, %s477
    %p481 = pneg %p475
    %p482 = scmp.eq.s32.totalorder %s34, 1
    %p483 = por %p481, %p482
    %p484 = scmp.ne.s32.totalorder %s476, %s479
    %p485 = scmp.eq.s32.totalorder %s34, 0
    %p486 = por %p484, %p485
    %p487 = scmp.ne.s32.totalorder %s476, %s479
    %p488 = scmp.eq.s32.totalorder %s39, 1
    %p489 = por %p487, %p488
    %p490 = scmp.ne.s32.totalorder %s479, %s480
    %p491 = scmp.eq.s32.totalorder %s39, 0
    %p492 = por %p490, %p491
    %p493 = scmp.ne.s32.totalorder %s479, %s480
    %p494 = scmp.eq.s32.totalorder %s40, 1
    %p495 = por %p493, %p494
    %p497 = scmp.ne.s32.totalorder %s480, %s496
    %p498 = scmp.eq.s32.totalorder %s40, 0
    %p499 = por %p497, %p498
    %s500 = ssub.s32 %s34, %s41
    %p501 = scmp.eq.s32.totalorder %s500, 0
    %s503 = sadd.s32 %s502, 1
    %s504 = scalar_select %p501, %s502, %s503
    %p507 = pneg %p501
    %p508 = scmp.eq.s32.totalorder %s34, 1
    %p509 = por %p507, %p508
    %p510 = scmp.ne.s32.totalorder %s502, %s505
    %p511 = scmp.eq.s32.totalorder %s34, 0
    %p512 = por %p510, %p511
    %p513 = scmp.ne.s32.totalorder %s502, %s505
    %p514 = scmp.eq.s32.totalorder %s39, 1
    %p515 = por %p513, %p514
    %p516 = scmp.ne.s32.totalorder %s505, %s506
    %p517 = scmp.eq.s32.totalorder %s39, 0
    %p518 = por %p516, %p517
    %p519 = scmp.ne.s32.totalorder %s505, %s506
    %p520 = scmp.eq.s32.totalorder %s40, 1
    %p521 = por %p519, %p520
    %p523 = scmp.ne.s32.totalorder %s506, %s522
    %p524 = scmp.eq.s32.totalorder %s40, 0
    %p525 = por %p523, %p524
    %s526 = ssub.s32 %s34, %s41
    %p527 = scmp.eq.s32.totalorder %s526, 0
    %s529 = sadd.s32 %s528, 1
    %s530 = scalar_select %p527, %s528, %s529
    %p533 = pneg %p527
    %p534 = scmp.eq.s32.totalorder %s34, 1
    %p535 = por %p533, %p534
    %p536 = scmp.ne.s32.totalorder %s528, %s531
    %p537 = scmp.eq.s32.totalorder %s34, 0
    %p538 = por %p536, %p537
    %p539 = scmp.ne.s32.totalorder %s528, %s531
    %p540 = scmp.eq.s32.totalorder %s39, 1
    %p541 = por %p539, %p540
    %p542 = scmp.ne.s32.totalorder %s531, %s532
    %p543 = scmp.eq.s32.totalorder %s39, 0
    %p544 = por %p542, %p543
    %p545 = scmp.ne.s32.totalorder %s531, %s532
    %p546 = scmp.eq.s32.totalorder %s40, 1
    %p547 = por %p545, %p546
    %p549 = scmp.ne.s32.totalorder %s532, %s548
    %p550 = scmp.eq.s32.totalorder %s40, 0
    %p551 = por %p549, %p550
    %s552 = ssub.s32 %s34, %s41
    %p553 = scmp.eq.s32.totalorder %s552, 0
    %s555 = sadd.s32 %s554, 1
    %s556 = scalar_select %p553, %s554, %s555
    %p559 = pneg %p553
    %p560 = scmp.eq.s32.totalorder %s34, 1
    %p561 = por %p559, %p560
    %p562 = scmp.ne.s32.totalorder %s554, %s557
    %p563 = scmp.eq.s32.totalorder %s34, 0
    %p564 = por %p562, %p563
    %p565 = scmp.ne.s32.totalorder %s554, %s557
    %p566 = scmp.eq.s32.totalorder %s39, 1
    %p567 = por %p565, %p566
    %p568 = scmp.ne.s32.totalorder %s557, %s558
    %p569 = scmp.eq.s32.totalorder %s39, 0
    %p570 = por %p568, %p569
    %p571 = scmp.ne.s32.totalorder %s557, %s558
    %p572 = scmp.eq.s32.totalorder %s40, 1
    %p573 = por %p571, %p572
    %p575 = scmp.ne.s32.totalorder %s558, %s574
    %p576 = scmp.eq.s32.totalorder %s40, 0
    %p577 = por %p575, %p576
    %s578 = ssub.s32 %s34, %s41
    %p579 = scmp.eq.s32.totalorder %s578, 0
    %s581 = sadd.s32 %s580, 1
    %s582 = scalar_select %p579, %s580, %s581
    %p585 = pneg %p579
    %p586 = scmp.eq.s32.totalorder %s34, 1
    %p587 = por %p585, %p586
    %p588 = scmp.ne.s32.totalorder %s580, %s583
    %p589 = scmp.eq.s32.totalorder %s34, 0
    %p590 = por %p588, %p589
    %p591 = scmp.ne.s32.totalorder %s580, %s583
    %p592 = scmp.eq.s32.totalorder %s39, 1
    %p593 = por %p591, %p592
    %p594 = scmp.ne.s32.totalorder %s583, %s584
    %p595 = scmp.eq.s32.totalorder %s39, 0
    %p596 = por %p594, %p595
    %p597 = scmp.ne.s32.totalorder %s583, %s584
    %p598 = scmp.eq.s32.totalorder %s40, 1
    %p599 = por %p597, %p598
    %p601 = scmp.ne.s32.totalorder %s584, %s600
    %p602 = scmp.eq.s32.totalorder %s40, 0
    %p603 = por %p601, %p602
    %s604 = ssub.s32 %s34, %s41
    %p605 = scmp.eq.s32.totalorder %s604, 0
    %s607 = sadd.s32 %s606, 1
    %s608 = scalar_select %p605, %s606, %s607
    %p611 = pneg %p605
    %p612 = scmp.eq.s32.totalorder %s34, 1
    %p613 = por %p611, %p612
    %p614 = scmp.ne.s32.totalorder %s606, %s609
    %p615 = scmp.eq.s32.totalorder %s34, 0
    %p616 = por %p614, %p615
    %p617 = scmp.ne.s32.totalorder %s606, %s609
    %p618 = scmp.eq.s32.totalorder %s39, 1
    %p619 = por %p617, %p618
    %p620 = scmp.ne.s32.totalorder %s609, %s610
    %p621 = scmp.eq.s32.totalorder %s39, 0
    %p622 = por %p620, %p621
    %p623 = scmp.ne.s32.totalorder %s609, %s610
    %p624 = scmp.eq.s32.totalorder %s40, 1
    %p625 = por %p623, %p624
    %p627 = scmp.ne.s32.totalorder %s610, %s626
    %p628 = scmp.eq.s32.totalorder %s40, 0
    %p629 = por %p627, %p628
    %s630 = ssub.s32 %s34, %s41
    %p631 = scmp.eq.s32.totalorder %s630, 0
    %s633 = sadd.s32 %s632, 1
    %s634 = scalar_select %p631, %s632, %s633
    %p637 = pneg %p631
    %p638 = scmp.eq.s32.totalorder %s34, 1
    %p639 = por %p637, %p638
    %p640 = scmp.ne.s32.totalorder %s632, %s635
    %p641 = scmp.eq.s32.totalorder %s34, 0
    %p642 = por %p640, %p641
    %p643 = scmp.ne.s32.totalorder %s632, %s635
    %p644 = scmp.eq.s32.totalorder %s39, 1
    %p645 = por %p643, %p644
    %p646 = scmp.ne.s32.totalorder %s635, %s636
    %p647 = scmp.eq.s32.totalorder %s39, 0
    %p648 = por %p646, %p647
    %p649 = scmp.ne.s32.totalorder %s635, %s636
    %p650 = scmp.eq.s32.totalorder %s40, 1
    %p651 = por %p649, %p650
    %p653 = scmp.ne.s32.totalorder %s636, %s652
    %p654 = scmp.eq.s32.totalorder %s40, 0
    %p655 = por %p653, %p654
    %s656 = ssub.s32 %s34, %s41
    %p657 = scmp.eq.s32.totalorder %s656, 0
    %s659 = sadd.s32 %s658, 1
    %s660 = scalar_select %p657, %s658, %s659
    %p663 = pneg %p657
    %p664 = scmp.eq.s32.totalorder %s34, 1
    %p665 = por %p663, %p664
    %p666 = scmp.ne.s32.totalorder %s658, %s661
    %p667 = scmp.eq.s32.totalorder %s34, 0
    %p668 = por %p666, %p667
    %p669 = scmp.ne.s32.totalorder %s658, %s661
    %p670 = scmp.eq.s32.totalorder %s39, 1
    %p671 = por %p669, %p670
    %p672 = scmp.ne.s32.totalorder %s661, %s662
    %p673 = scmp.eq.s32.totalorder %s39, 0
    %p674 = por %p672, %p673
    %p675 = scmp.ne.s32.totalorder %s661, %s662
    %p676 = scmp.eq.s32.totalorder %s40, 1
    %p677 = por %p675, %p676
    %p679 = scmp.ne.s32.totalorder %s662, %s678
    %p680 = scmp.eq.s32.totalorder %s40, 0
    %p681 = por %p679, %p680
    %s682 = ssub.s32 %s34, %s41
    %p683 = scmp.eq.s32.totalorder %s682, 0
    %s685 = sadd.s32 %s684, 1
    %s686 = scalar_select %p683, %s684, %s685
    %p689 = pneg %p683
    %p690 = scmp.eq.s32.totalorder %s34, 1
    %p691 = por %p689, %p690
    %p692 = scmp.ne.s32.totalorder %s684, %s687
    %p693 = scmp.eq.s32.totalorder %s34, 0
    %p694 = por %p692, %p693
    %p695 = scmp.ne.s32.totalorder %s684, %s687
    %p696 = scmp.eq.s32.totalorder %s39, 1
    %p697 = por %p695, %p696
    %p698 = scmp.ne.s32.totalorder %s687, %s688
    %p699 = scmp.eq.s32.totalorder %s39, 0
    %p700 = por %p698, %p699
    %p701 = scmp.ne.s32.totalorder %s687, %s688
    %p702 = scmp.eq.s32.totalorder %s40, 1
    %p703 = por %p701, %p702
    %p705 = scmp.ne.s32.totalorder %s688, %s704
    %p706 = scmp.eq.s32.totalorder %s40, 0
    %p707 = por %p705, %p706
    %s708 = ssub.s32 %s34, %s41
    %p709 = scmp.eq.s32.totalorder %s708, 0
    %s711 = sadd.s32 %s710, 1
    %s712 = scalar_select %p709, %s710, %s711
    %p715 = pneg %p709
    %p716 = scmp.eq.s32.totalorder %s34, 1
    %p717 = por %p715, %p716
    %p718 = scmp.ne.s32.totalorder %s710, %s713
    %p719 = scmp.eq.s32.totalorder %s34, 0
    %p720 = por %p718, %p719
    %p721 = scmp.ne.s32.totalorder %s710, %s713
    %p722 = scmp.eq.s32.totalorder %s39, 1
    %p723 = por %p721, %p722
    %p724 = scmp.ne.s32.totalorder %s713, %s714
    %p725 = scmp.eq.s32.totalorder %s39, 0
    %p726 = por %p724, %p725
    %p727 = scmp.ne.s32.totalorder %s713, %s714
    %p728 = scmp.eq.s32.totalorder %s40, 1
    %p729 = por %p727, %p728
    %p731 = scmp.ne.s32.totalorder %s714, %s730
    %p732 = scmp.eq.s32.totalorder %s40, 0
    %p733 = por %p731, %p732
    %s734 = ssub.s32 %s34, %s41
    %p735 = scmp.eq.s32.totalorder %s734, 0
    %s737 = sadd.s32 %s736, 1
    %s738 = scalar_select %p735, %s736, %s737
    %p741 = pneg %p735
    %p742 = scmp.eq.s32.totalorder %s34, 1
    %p743 = por %p741, %p742
    %p744 = scmp.ne.s32.totalorder %s736, %s739
    %p745 = scmp.eq.s32.totalorder %s34, 0
    %p746 = por %p744, %p745
    %p747 = scmp.ne.s32.totalorder %s736, %s739
    %p748 = scmp.eq.s32.totalorder %s39, 1
    %p749 = por %p747, %p748
    %p750 = scmp.ne.s32.totalorder %s739, %s740
    %p751 = scmp.eq.s32.totalorder %s39, 0
    %p752 = por %p750, %p751
    %p753 = scmp.ne.s32.totalorder %s739, %s740
    %p754 = scmp.eq.s32.totalorder %s40, 1
    %p755 = por %p753, %p754
    %p757 = scmp.ne.s32.totalorder %s740, %s756
    %p758 = scmp.eq.s32.totalorder %s40, 0
    %p759 = por %p757, %p758
    %s760 = ssub.s32 %s34, %s41
    %p761 = scmp.eq.s32.totalorder %s760, 0
    %s763 = sadd.s32 %s762, 1
    %s764 = scalar_select %p761, %s762, %s763
    %p767 = pneg %p761
    %p768 = scmp.eq.s32.totalorder %s34, 1
    %p769 = por %p767, %p768
    %p770 = scmp.ne.s32.totalorder %s762, %s765
    %p771 = scmp.eq.s32.totalorder %s34, 0
    %p772 = por %p770, %p771
    %p773 = scmp.ne.s32.totalorder %s762, %s765
    %p774 = scmp.eq.s32.totalorder %s39, 1
    %p775 = por %p773, %p774
    %p776 = scmp.ne.s32.totalorder %s765, %s766
    %p777 = scmp.eq.s32.totalorder %s39, 0
    %p778 = por %p776, %p777
    %p779 = scmp.ne.s32.totalorder %s765, %s766
    %p780 = scmp.eq.s32.totalorder %s40, 1
    %p781 = por %p779, %p780
    %p783 = scmp.ne.s32.totalorder %s766, %s782
    %p784 = scmp.eq.s32.totalorder %s40, 0
    %p785 = por %p783, %p784
    %p786 = scmp.le.s32.totalorder 1, %s34
    %p787 = scmp.lt.s32.totalorder %s34, 3
    %p788 = pnand %p786, %p787
    %p789 = pneg %p788
    // Predicated region
    $region9: #{fwd.1} parent=5 // pred_check
      _
    $region10: #{fwd.1} parent=5 // pred_check_branch
      %791 = sbr.rel (%p788) target = $region12
    $region11: #{fwd.1} parent=5 // pred_region
      %s792 = ssub.s32 %s34, 1
      // Predicated region
      $region13: #{fwd.1} parent=11 // pred_check
        %p793 = pneg %p107
      $region14: #{fwd.1} parent=11 // pred_check_branch
        %795 = sbr.rel (%p793) target = $region16
      $region15: #{fwd.1} parent=11 // pred_region
        _
      $region16: #{fwd.1} parent=11 // pred_fallthru
        _
      // Predicated region
      $region17: #{fwd.1} parent=11 // pred_check
        %p796 = pneg %p128
      $region18: #{fwd.1} parent=11 // pred_check_branch
        %798 = sbr.rel (%p796) target = $region20
      $region19: #{fwd.1} parent=11 // pred_region
        _
      $region20: #{fwd.1} parent=11 // pred_fallthru
        _
    $region12: #{fwd.1} parent=5 // pred_fallthru
      _
    %p799 = scmp.lt.s32.totalorder %s34, 2
    // Predicated region
    $region21: #{fwd.1} parent=5 // pred_check
      %p800 = pneg %p799
    $region22: #{fwd.1} parent=5 // pred_check_branch
      %802 = sbr.rel (%p800) target = $region24
    $region23: #{fwd.1} parent=5 // pred_region
      // Predicated region
      $region25: #{fwd.1} parent=23 // pred_check
        %p803 = pneg %p54
      $region26: #{fwd.1} parent=23 // pred_check_branch
        %805 = sbr.rel (%p803) target = $region28
      $region27: #{fwd.1} parent=23 // pred_region
        %p806 = scmp.lt.s32.totalorder %s34, 1
        %s807 = scalar_select %p806, %s34, 1
        %s808 = scalar_lea.vmem %s0, %s807
      $region28: #{fwd.1} parent=23 // pred_fallthru
        _
      // Predicated region
      $region29: #{fwd.1} parent=23 // pred_check
        %p809 = pneg %p80
      $region30: #{fwd.1} parent=23 // pred_check_branch
        %811 = sbr.rel (%p809) target = $region32
      $region31: #{fwd.1} parent=23 // pred_region
        %p812 = scmp.lt.s32.totalorder %s34, 1
        %s813 = scalar_select %p812, %s34, 1
        %s814 = smul.addr %s813, 2
        %s815 = smul.addr %s814, 8
        %s816 = scalar_lea.vmem %s1, %s815
      $region32: #{fwd.1} parent=23 // pred_fallthru
        _
      // Predicated region
      $region33: #{fwd.1} parent=23 // pred_check
        %p817 = pneg %p148
      $region34: #{fwd.1} parent=23 // pred_check_branch
        %819 = sbr.rel (%p817) target = $region36
      $region35: #{fwd.1} parent=23 // pred_region
        %p820 = scmp.lt.s32.totalorder %s34, 1
        %s821 = scalar_select %p820, %s34, 1
        %s822 = smul.addr %s821, 4
        %s823 = smul.addr %s822, 4
        %s824 = scalar_lea.vmem %s4, %s823
      $region36: #{fwd.1} parent=23 // pred_fallthru
        _
      // Predicated region
      $region37: #{fwd.1} parent=23 // pred_check
        %p825 = pneg %p174
      $region38: #{fwd.1} parent=23 // pred_check_branch
        %827 = sbr.rel (%p825) target = $region40
      $region39: #{fwd.1} parent=23 // pred_region
        %p828 = scmp.lt.s32.totalorder %s34, 1
        %s829 = scalar_select %p828, %s34, 1
        %s830 = scalar_lea.vmem %s5, %s829
      $region40: #{fwd.1} parent=23 // pred_fallthru
        _
      // Predicated region
      $region41: #{fwd.1} parent=23 // pred_check
        %p831 = pneg %p200
      $region42: #{fwd.1} parent=23 // pred_check_branch
        %833 = sbr.rel (%p831) target = $region44
      $region43: #{fwd.1} parent=23 // pred_region
        %p834 = scmp.lt.s32.totalorder %s34, 1
        %s835 = scalar_select %p834, %s34, 1
        %s836 = smul.addr %s835, 4
        %s837 = smul.addr %s836, 4
        %s838 = scalar_lea.vmem %s6, %s837
      $region44: #{fwd.1} parent=23 // pred_fallthru
        _
      // Predicated region
      $region45: #{fwd.1} parent=23 // pred_check
        %p839 = pneg %p226
      $region46: #{fwd.1} parent=23 // pred_check_branch
        %841 = sbr.rel (%p839) target = $region48
      $region47: #{fwd.1} parent=23 // pred_region
        %p842 = scmp.lt.s32.totalorder %s34, 1
        %s843 = scalar_select %p842, %s34, 1
        %s844 = scalar_lea.vmem %s7, %s843
      $region48: #{fwd.1} parent=23 // pred_fallthru
        _
      // Predicated region
      $region49: #{fwd.1} parent=23 // pred_check
        %p845 = pneg %p252
      $region50: #{fwd.1} parent=23 // pred_check_branch
        %847 = sbr.rel (%p845) target = $region52
      $region51: #{fwd.1} parent=23 // pred_region
        %p848 = scmp.lt.s32.totalorder %s34, 1
        %s849 = scalar_select %p848, %s34, 1
        %s850 = scalar_lea.vmem %s8, %s849
      $region52: #{fwd.1} parent=23 // pred_fallthru
        _
      // Predicated region
      $region53: #{fwd.1} parent=23 // pred_check
        %p851 = pneg %p278
      $region54: #{fwd.1} parent=23 // pred_check_branch
        %853 = sbr.rel (%p851) target = $region56
      $region55: #{fwd.1} parent=23 // pred_region
        %p854 = scmp.lt.s32.totalorder %s34, 1
        %s855 = scalar_select %p854, %s34, 1
        %s856 = scalar_lea.vmem %s9, %s855
      $region56: #{fwd.1} parent=23 // pred_fallthru
        _
      // Predicated region
      $region57: #{fwd.1} parent=23 // pred_check
        %p857 = pneg %p304
      $region58: #{fwd.1} parent=23 // pred_check_branch
        %859 = sbr.rel (%p857) target = $region60
      $region59: #{fwd.1} parent=23 // pred_region
        %p860 = scmp.lt.s32.totalorder %s34, 1
        %s861 = scalar_select %p860, %s34, 1
        %s862 = smul.addr %s861, 64
        %s863 = smul.addr %s862, 4
        %s864 = scalar_lea.vmem %s10, %s863
      $region60: #{fwd.1} parent=23 // pred_fallthru
        _
      // Predicated region
      $region61: #{fwd.1} parent=23 // pred_check
        %p865 = pneg %p330
      $region62: #{fwd.1} parent=23 // pred_check_branch
        %867 = sbr.rel (%p865) target = $region64
      $region63: #{fwd.1} parent=23 // pred_region
        %p868 = scmp.lt.s32.totalorder %s34, 1
        %s869 = scalar_select %p868, %s34, 1
        %s870 = smul.addr %s869, 16
        %s871 = scalar_lea.vmem %s11, %s870
      $region64: #{fwd.1} parent=23 // pred_fallthru
        _
      // Predicated region
      $region65: #{fwd.1} parent=23 // pred_check
        %p872 = pneg %p356
      $region66: #{fwd.1} parent=23 // pred_check_branch
        %874 = sbr.rel (%p872) target = $region68
      $region67: #{fwd.1} parent=23 // pred_region
        %p875 = scmp.lt.s32.totalorder %s34, 1
        %s876 = scalar_select %p875, %s34, 1
        %s877 = smul.addr %s876, 256
        %s878 = smul.addr %s877, 4
        %s879 = scalar_lea.vmem %s12, %s878
      $region68: #{fwd.1} parent=23 // pred_fallthru
        _
      // Predicated region
      $region69: #{fwd.1} parent=23 // pred_check
        %p880 = pneg %p382
      $region70: #{fwd.1} parent=23 // pred_check_branch
        %882 = sbr.rel (%p880) target = $region72
      $region71: #{fwd.1} parent=23 // pred_region
        %p883 = scmp.lt.s32.totalorder %s34, 1
        %s884 = scalar_select %p883, %s34, 1
        %s885 = scalar_lea.vmem %s13, %s884
      $region72: #{fwd.1} parent=23 // pred_fallthru
        _
      // Predicated region
      $region73: #{fwd.1} parent=23 // pred_check
        %p886 = pneg %p408
      $region74: #{fwd.1} parent=23 // pred_check_branch
        %888 = sbr.rel (%p886) target = $region76
      $region75: #{fwd.1} parent=23 // pred_region
        %p889 = scmp.lt.s32.totalorder %s34, 1
        %s890 = scalar_select %p889, %s34, 1
        %s891 = scalar_lea.vmem %s14, %s890
      $region76: #{fwd.1} parent=23 // pred_fallthru
        _
      // Predicated region
      $region77: #{fwd.1} parent=23 // pred_check
        %p892 = pneg %p434
      $region78: #{fwd.1} parent=23 // pred_check_branch
        %894 = sbr.rel (%p892) target = $region80
      $region79: #{fwd.1} parent=23 // pred_region
        %p895 = scmp.lt.s32.totalorder %s34, 1
        %s896 = scalar_select %p895, %s34, 1
        %s897 = scalar_lea.vmem %s15, %s896
      $region80: #{fwd.1} parent=23 // pred_fallthru
        _
      // Predicated region
      $region81: #{fwd.1} parent=23 // pred_check
        %p898 = pneg %p460
      $region82: #{fwd.1} parent=23 // pred_check_branch
        %900 = sbr.rel (%p898) target = $region84
      $region83: #{fwd.1} parent=23 // pred_region
        %p901 = scmp.lt.s32.totalorder %s34, 1
        %s902 = scalar_select %p901, %s34, 1
        %s903 = smul.addr %s902, 4
        %s904 = smul.addr %s903, 4
        %s905 = scalar_lea.vmem %s16, %s904
      $region84: #{fwd.1} parent=23 // pred_fallthru
        _
      // Predicated region
      $region85: #{fwd.1} parent=23 // pred_check
        %p906 = pneg %p486
      $region86: #{fwd.1} parent=23 // pred_check_branch
        %908 = sbr.rel (%p906) target = $region88
      $region87: #{fwd.1} parent=23 // pred_region
        %p909 = scmp.lt.s32.totalorder %s34, 1
        %s910 = scalar_select %p909, %s34, 1
        %s911 = scalar_lea.vmem %s17, %s910
      $region88: #{fwd.1} parent=23 // pred_fallthru
        _
      // Predicated region
      $region89: #{fwd.1} parent=23 // pred_check
        %p912 = pneg %p512
      $region90: #{fwd.1} parent=23 // pred_check_branch
        %914 = sbr.rel (%p912) target = $region92
      $region91: #{fwd.1} parent=23 // pred_region
        %p915 = scmp.lt.s32.totalorder %s34, 1
        %s916 = scalar_select %p915, %s34, 1
        %s917 = smul.addr %s916, 4
        %s918 = smul.addr %s917, 4
        %s919 = scalar_lea.vmem %s18, %s918
      $region92: #{fwd.1} parent=23 // pred_fallthru
        _
      // Predicated region
      $region93: #{fwd.1} parent=23 // pred_check
        %p920 = pneg %p538
      $region94: #{fwd.1} parent=23 // pred_check_branch
        %922 = sbr.rel (%p920) target = $region96
      $region95: #{fwd.1} parent=23 // pred_region
        %p923 = scmp.lt.s32.totalorder %s34, 1
        %s924 = scalar_select %p923, %s34, 1
        %s925 = smul.addr %s924, 32
        %s926 = smul.addr %s925, 4
        %s927 = scalar_lea.vmem %s19, %s926
      $region96: #{fwd.1} parent=23 // pred_fallthru
        _
      // Predicated region
      $region97: #{fwd.1} parent=23 // pred_check
        %p928 = pneg %p564
      $region98: #{fwd.1} parent=23 // pred_check_branch
        %930 = sbr.rel (%p928) target = $region100
      $region99: #{fwd.1} parent=23 // pred_region
        %p931 = scmp.lt.s32.totalorder %s34, 1
        %s932 = scalar_select %p931, %s34, 1
        %s933 = smul.addr %s932, 4
        %s934 = smul.addr %s933, 4
        %s935 = scalar_lea.vmem %s20, %s934
      $region100: #{fwd.1} parent=23 // pred_fallthru
        _
      // Predicated region
      $region101: #{fwd.1} parent=23 // pred_check
        %p936 = pneg %p590
      $region102: #{fwd.1} parent=23 // pred_check_branch
        %938 = sbr.rel (%p936) target = $region104
      $region103: #{fwd.1} parent=23 // pred_region
        %p939 = scmp.lt.s32.totalorder %s34, 1
        %s940 = scalar_select %p939, %s34, 1
        %s941 = scalar_lea.vmem %s21, %s940
      $region104: #{fwd.1} parent=23 // pred_fallthru
        _
      // Predicated region
      $region105: #{fwd.1} parent=23 // pred_check
        %p942 = pneg %p616
      $region106: #{fwd.1} parent=23 // pred_check_branch
        %944 = sbr.rel (%p942) target = $region108
      $region107: #{fwd.1} parent=23 // pred_region
        %p945 = scmp.lt.s32.totalorder %s34, 1
        %s946 = scalar_select %p945, %s34, 1
        %s947 = smul.addr %s946, 8
        %s948 = smul.addr %s947, 4
        %s949 = scalar_lea.vmem %s22, %s948
      $region108: #{fwd.1} parent=23 // pred_fallthru
        _
      // Predicated region
      $region109: #{fwd.1} parent=23 // pred_check
        %p950 = pneg %p642
      $region110: #{fwd.1} parent=23 // pred_check_branch
        %952 = sbr.rel (%p950) target = $region112
      $region111: #{fwd.1} parent=23 // pred_region
        %p953 = scmp.lt.s32.totalorder %s34, 1
        %s954 = scalar_select %p953, %s34, 1
        %s955 = scalar_lea.vmem %s23, %s954
      $region112: #{fwd.1} parent=23 // pred_fallthru
        _
      // Predicated region
      $region113: #{fwd.1} parent=23 // pred_check
        %p956 = pneg %p668
      $region114: #{fwd.1} parent=23 // pred_check_branch
        %958 = sbr.rel (%p956) target = $region116
      $region115: #{fwd.1} parent=23 // pred_region
        %p959 = scmp.lt.s32.totalorder %s34, 1
        %s960 = scalar_select %p959, %s34, 1
        %s961 = smul.addr %s960, 8
        %s962 = smul.addr %s961, 4
        %s963 = scalar_lea.vmem %s24, %s962
      $region116: #{fwd.1} parent=23 // pred_fallthru
        _
      // Predicated region
      $region117: #{fwd.1} parent=23 // pred_check
        %p964 = pneg %p694
      $region118: #{fwd.1} parent=23 // pred_check_branch
        %966 = sbr.rel (%p964) target = $region120
      $region119: #{fwd.1} parent=23 // pred_region
        %p967 = scmp.lt.s32.totalorder %s34, 1
        %s968 = scalar_select %p967, %s34, 1
        %s969 = scalar_lea.vmem %s25, %s968
      $region120: #{fwd.1} parent=23 // pred_fallthru
        _
      // Predicated region
      $region121: #{fwd.1} parent=23 // pred_check
        %p970 = pneg %p720
      $region122: #{fwd.1} parent=23 // pred_check_branch
        %972 = sbr.rel (%p970) target = $region124
      $region123: #{fwd.1} parent=23 // pred_region
        %p973 = scmp.lt.s32.totalorder %s34, 1
        %s974 = scalar_select %p973, %s34, 1
        %s975 = smul.addr %s974, 4
        %s976 = smul.addr %s975, 4
        %s977 = scalar_lea.vmem %s26, %s976
      $region124: #{fwd.1} parent=23 // pred_fallthru
        _
      // Predicated region
      $region125: #{fwd.1} parent=23 // pred_check
        %p978 = pneg %p746
      $region126: #{fwd.1} parent=23 // pred_check_branch
        %980 = sbr.rel (%p978) target = $region128
      $region127: #{fwd.1} parent=23 // pred_region
        %p981 = scmp.lt.s32.totalorder %s34, 1
        %s982 = scalar_select %p981, %s34, 1
        %s983 = scalar_lea.vmem %s27, %s982
      $region128: #{fwd.1} parent=23 // pred_fallthru
        _
    $region24: #{fwd.1} parent=5 // pred_fallthru
      _
    %p984 = scmp.le.s32.totalorder 1, %s34
    %p985 = scmp.lt.s32.totalorder %s34, 3
    %p986 = pnand %p984, %p985
    %p987 = pneg %p986
    // Predicated region
    $region129: #{fwd.1} parent=5 // pred_check
      _
    $region130: #{fwd.1} parent=5 // pred_check_branch
      %989 = sbr.rel (%p986) target = $region132
    $region131: #{fwd.1} parent=5 // pred_region
      %s990 = ssub.s32 %s34, 1
      %p991 = scmp.lt.s32.totalorder %s39, 1
      %s992 = scalar_select %p991, %s39, 1
      %s993 = scalar_lea.vmem %s0, %s992
      %p994 = pneg %p60
      %p995 = pneg %p57
      %p996 = scmp.lt.s32.totalorder %s39, 1
      %s997 = scalar_select %p996, %s39, 1
      %s998 = smul.addr %s997, 2
      %s999 = smul.addr %s998, 8
      %s1000 = scalar_lea.vmem %s1, %s999
      %p1001 = pneg %p86
      %p1002 = pneg %p83
      %p1003 = pneg %p107
      %p1004 = pneg %p104
      %p1005 = pneg %p128
      %p1006 = pneg %p125
      %p1007 = scmp.lt.s32.totalorder %s39, 1
      %s1008 = scalar_select %p1007, %s39, 1
      %s1009 = smul.addr %s1008, 4
      %s1010 = smul.addr %s1009, 4
      %s1011 = scalar_lea.vmem %s4, %s1010
      %p1012 = pneg %p154
      %p1013 = pneg %p151
      %p1014 = scmp.lt.s32.totalorder %s39, 1
      %s1015 = scalar_select %p1014, %s39, 1
      %s1016 = scalar_lea.vmem %s5, %s1015
      %p1017 = pneg %p180
      %p1018 = pneg %p177
      %p1019 = scmp.lt.s32.totalorder %s39, 1
      %s1020 = scalar_select %p1019, %s39, 1
      %s1021 = smul.addr %s1020, 4
      %s1022 = smul.addr %s1021, 4
      %s1023 = scalar_lea.vmem %s6, %s1022
      %p1024 = pneg %p206
      %p1025 = pneg %p203
      %p1026 = scmp.lt.s32.totalorder %s39, 1
      %s1027 = scalar_select %p1026, %s39, 1
      %s1028 = scalar_lea.vmem %s7, %s1027
      %p1029 = pneg %p232
      %p1030 = pneg %p229
      %p1031 = scmp.lt.s32.totalorder %s39, 1
      %s1032 = scalar_select %p1031, %s39, 1
      %s1033 = scalar_lea.vmem %s8, %s1032
      %p1034 = pneg %p258
      %p1035 = pneg %p255
      %p1036 = scmp.lt.s32.totalorder %s39, 1
      %s1037 = scalar_select %p1036, %s39, 1
      %s1038 = scalar_lea.vmem %s9, %s1037
      %p1039 = pneg %p284
      %p1040 = pneg %p281
      %p1041 = scmp.lt.s32.totalorder %s39, 1
      %s1042 = scalar_select %p1041, %s39, 1
      %s1043 = smul.addr %s1042, 64
      %s1044 = smul.addr %s1043, 4
      %s1045 = scalar_lea.vmem %s10, %s1044
      %p1046 = pneg %p310
      %p1047 = pneg %p307
      %p1048 = scmp.lt.s32.totalorder %s39, 1
      %s1049 = scalar_select %p1048, %s39, 1
      %s1050 = smul.addr %s1049, 16
      %s1051 = scalar_lea.vmem %s11, %s1050
      %p1052 = pneg %p336
      %p1053 = pneg %p333
      %p1054 = scmp.lt.s32.totalorder %s39, 1
      %s1055 = scalar_select %p1054, %s39, 1
      %s1056 = smul.addr %s1055, 256
      %s1057 = smul.addr %s1056, 4
      %s1058 = scalar_lea.vmem %s12, %s1057
      %p1059 = pneg %p362
      %p1060 = pneg %p359
      %p1061 = scmp.lt.s32.totalorder %s39, 1
      %s1062 = scalar_select %p1061, %s39, 1
      %s1063 = scalar_lea.vmem %s13, %s1062
      %p1064 = pneg %p388
      %p1065 = pneg %p385
      %p1066 = scmp.lt.s32.totalorder %s39, 1
      %s1067 = scalar_select %p1066, %s39, 1
      %s1068 = scalar_lea.vmem %s14, %s1067
      %p1069 = pneg %p414
      %p1070 = pneg %p411
      %p1071 = scmp.lt.s32.totalorder %s39, 1
      %s1072 = scalar_select %p1071, %s39, 1
      %s1073 = scalar_lea.vmem %s15, %s1072
      %p1074 = pneg %p440
      %p1075 = pneg %p437
      %p1076 = scmp.lt.s32.totalorder %s39, 1
      %s1077 = scalar_select %p1076, %s39, 1
      %s1078 = smul.addr %s1077, 4
      %s1079 = smul.addr %s1078, 4
      %s1080 = scalar_lea.vmem %s16, %s1079
      %p1081 = pneg %p466
      %p1082 = pneg %p463
      %p1083 = scmp.lt.s32.totalorder %s39, 1
      %s1084 = scalar_select %p1083, %s39, 1
      %s1085 = scalar_lea.vmem %s17, %s1084
      %p1086 = pneg %p492
      %p1087 = pneg %p489
      %p1088 = scmp.lt.s32.totalorder %s39, 1
      %s1089 = scalar_select %p1088, %s39, 1
      %s1090 = smul.addr %s1089, 4
      %s1091 = smul.addr %s1090, 4
      %s1092 = scalar_lea.vmem %s18, %s1091
      %p1093 = pneg %p518
      %p1094 = pneg %p515
      %p1095 = scmp.lt.s32.totalorder %s39, 1
      %s1096 = scalar_select %p1095, %s39, 1
      %s1097 = smul.addr %s1096, 32
      %s1098 = smul.addr %s1097, 4
      %s1099 = scalar_lea.vmem %s19, %s1098
      %p1100 = pneg %p544
      %p1101 = pneg %p541
      %p1102 = scmp.lt.s32.totalorder %s39, 1
      %s1103 = scalar_select %p1102, %s39, 1
      %s1104 = smul.addr %s1103, 4
      %s1105 = smul.addr %s1104, 4
      %s1106 = scalar_lea.vmem %s20, %s1105
      %p1107 = pneg %p570
      %p1108 = pneg %p567
      %p1109 = scmp.lt.s32.totalorder %s39, 1
      %s1110 = scalar_select %p1109, %s39, 1
      %s1111 = scalar_lea.vmem %s21, %s1110
      %p1112 = pneg %p596
      %p1113 = pneg %p593
      %p1114 = scmp.lt.s32.totalorder %s39, 1
      %s1115 = scalar_select %p1114, %s39, 1
      %s1116 = smul.addr %s1115, 8
      %s1117 = smul.addr %s1116, 4
      %s1118 = scalar_lea.vmem %s22, %s1117
      %p1119 = pneg %p622
      %p1120 = pneg %p619
      %p1121 = scmp.lt.s32.totalorder %s39, 1
      %s1122 = scalar_select %p1121, %s39, 1
      %s1123 = scalar_lea.vmem %s23, %s1122
      %p1124 = pneg %p648
      %p1125 = pneg %p645
      %p1126 = scmp.lt.s32.totalorder %s39, 1
      %s1127 = scalar_select %p1126, %s39, 1
      %s1128 = smul.addr %s1127, 8
      %s1129 = smul.addr %s1128, 4
      %s1130 = scalar_lea.vmem %s24, %s1129
      %p1131 = pneg %p674
      %p1132 = pneg %p671
      %p1133 = scmp.lt.s32.totalorder %s39, 1
      %s1134 = scalar_select %p1133, %s39, 1
      %s1135 = scalar_lea.vmem %s25, %s1134
      %p1136 = pneg %p700
      %p1137 = pneg %p697
      %p1138 = scmp.lt.s32.totalorder %s39, 1
      %s1139 = scalar_select %p1138, %s39, 1
      %s1140 = smul.addr %s1139, 4
      %s1141 = smul.addr %s1140, 4
      %s1142 = scalar_lea.vmem %s26, %s1141
      %p1143 = pneg %p726
      %p1144 = pneg %p723
      %p1145 = scmp.lt.s32.totalorder %s39, 1
      %s1146 = scalar_select %p1145, %s39, 1
      %s1147 = scalar_lea.vmem %s27, %s1146
      %p1148 = pneg %p752
      %p1149 = pneg %p749
      %p1150 = pneg %p778
      %p1151 = pneg %p775
      %p1152 = scmp.lt.s32.totalorder %s39, 1
      %s1153 = scalar_select %p1152, %s39, 1
      %s1154 = smul.addr %s1153, 2
      %s1155 = smul.addr %s1154, 8
      %s1156 = scalar_lea.vmem %s28, %s1155
      %p1157 = scmp.lt.s32.totalorder %s39, 1
      %s1158 = scalar_select %p1157, %s39, 1
      %s1159 = scalar_lea.vmem %s0, %s1158
      %p1160 = scmp.lt.s32.totalorder %s39, 1
      %s1161 = scalar_select %p1160, %s39, 1
      %s1162 = smul.addr %s1161, 2
      %s1163 = smul.addr %s1162, 8
      %s1164 = scalar_lea.vmem %s1, %s1163
      %p1165 = scmp.lt.s32.totalorder %s39, 1
      %s1166 = scalar_select %p1165, %s39, 1
      %s1167 = smul.addr %s1166, 4
      %s1168 = smul.addr %s1167, 4
      %s1169 = scalar_lea.vmem %s4, %s1168
      %p1170 = scmp.lt.s32.totalorder %s39, 1
      %s1171 = scalar_select %p1170, %s39, 1
      %s1172 = scalar_lea.vmem %s5, %s1171
      %p1173 = scmp.lt.s32.totalorder %s39, 1
      %s1174 = scalar_select %p1173, %s39, 1
      %s1175 = smul.addr %s1174, 4
      %s1176 = smul.addr %s1175, 4
      %s1177 = scalar_lea.vmem %s6, %s1176
      %p1178 = scmp.lt.s32.totalorder %s39, 1
      %s1179 = scalar_select %p1178, %s39, 1
      %s1180 = scalar_lea.vmem %s7, %s1179
      %p1181 = scmp.lt.s32.totalorder %s39, 1
      %s1182 = scalar_select %p1181, %s39, 1
      %s1183 = scalar_lea.vmem %s8, %s1182
      %p1184 = scmp.lt.s32.totalorder %s39, 1
      %s1185 = scalar_select %p1184, %s39, 1
      %s1186 = scalar_lea.vmem %s9, %s1185
      %p1187 = scmp.lt.s32.totalorder %s39, 1
      %s1188 = scalar_select %p1187, %s39, 1
      %s1189 = smul.addr %s1188, 64
      %s1190 = smul.addr %s1189, 4
      %s1191 = scalar_lea.vmem %s10, %s1190
      %p1192 = scmp.lt.s32.totalorder %s39, 1
      %s1193 = scalar_select %p1192, %s39, 1
      %s1194 = smul.addr %s1193, 16
      %s1195 = scalar_lea.vmem %s11, %s1194
      %p1196 = scmp.lt.s32.totalorder %s39, 1
      %s1197 = scalar_select %p1196, %s39, 1
      %s1198 = smul.addr %s1197, 256
      %s1199 = smul.addr %s1198, 4
      %s1200 = scalar_lea.vmem %s12, %s1199
      %p1201 = scmp.lt.s32.totalorder %s39, 1
      %s1202 = scalar_select %p1201, %s39, 1
      %s1203 = scalar_lea.vmem %s13, %s1202
      %p1204 = scmp.lt.s32.totalorder %s39, 1
      %s1205 = scalar_select %p1204, %s39, 1
      %s1206 = scalar_lea.vmem %s14, %s1205
      %p1207 = scmp.lt.s32.totalorder %s39, 1
      %s1208 = scalar_select %p1207, %s39, 1
      %s1209 = scalar_lea.vmem %s15, %s1208
      %p1210 = scmp.lt.s32.totalorder %s39, 1
      %s1211 = scalar_select %p1210, %s39, 1
      %s1212 = smul.addr %s1211, 4
      %s1213 = smul.addr %s1212, 4
      %s1214 = scalar_lea.vmem %s16, %s1213
      %p1215 = scmp.lt.s32.totalorder %s39, 1
      %s1216 = scalar_select %p1215, %s39, 1
      %s1217 = scalar_lea.vmem %s17, %s1216
      %p1218 = scmp.lt.s32.totalorder %s39, 1
      %s1219 = scalar_select %p1218, %s39, 1
      %s1220 = smul.addr %s1219, 4
      %s1221 = smul.addr %s1220, 4
      %s1222 = scalar_lea.vmem %s18, %s1221
      %p1223 = scmp.lt.s32.totalorder %s39, 1
      %s1224 = scalar_select %p1223, %s39, 1
      %s1225 = smul.addr %s1224, 32
      %s1226 = smul.addr %s1225, 4
      %s1227 = scalar_lea.vmem %s19, %s1226
      %p1228 = scmp.lt.s32.totalorder %s39, 1
      %s1229 = scalar_select %p1228, %s39, 1
      %s1230 = smul.addr %s1229, 4
      %s1231 = smul.addr %s1230, 4
      %s1232 = scalar_lea.vmem %s20, %s1231
      %p1233 = scmp.lt.s32.totalorder %s39, 1
      %s1234 = scalar_select %p1233, %s39, 1
      %s1235 = scalar_lea.vmem %s21, %s1234
      %p1236 = scmp.lt.s32.totalorder %s39, 1
      %s1237 = scalar_select %p1236, %s39, 1
      %s1238 = smul.addr %s1237, 8
      %s1239 = smul.addr %s1238, 4
      %s1240 = scalar_lea.vmem %s22, %s1239
      %p1241 = scmp.lt.s32.totalorder %s39, 1
      %s1242 = scalar_select %p1241, %s39, 1
      %s1243 = scalar_lea.vmem %s23, %s1242
      %p1244 = scmp.lt.s32.totalorder %s39, 1
      %s1245 = scalar_select %p1244, %s39, 1
      %s1246 = smul.addr %s1245, 8
      %s1247 = smul.addr %s1246, 4
      %s1248 = scalar_lea.vmem %s24, %s1247
      %p1249 = scmp.lt.s32.totalorder %s39, 1
      %s1250 = scalar_select %p1249, %s39, 1
      %s1251 = scalar_lea.vmem %s25, %s1250
      %p1252 = scmp.lt.s32.totalorder %s39, 1
      %s1253 = scalar_select %p1252, %s39, 1
      %s1254 = smul.addr %s1253, 4
      %s1255 = smul.addr %s1254, 4
      %s1256 = scalar_lea.vmem %s26, %s1255
      %p1257 = scmp.lt.s32.totalorder %s39, 1
      %s1258 = scalar_select %p1257, %s39, 1
      %s1259 = scalar_lea.vmem %s27, %s1258
      %p1260 = scmp.lt.s32.totalorder %s39, 1
      %s1261 = scalar_select %p1260, %s39, 1
      %s1262 = smul.addr %s1261, 2
      %s1263 = smul.addr %s1262, 8
      %s1264 = scalar_lea.vmem %s28, %s1263
      %v1266 = vld [vmem:[%s1164] sm:$0xff]
      %v1267 = vld [vmem:[%s1164 + $0x8] sm:$0xff]
      %v1268 = vld [vmem:[%s1159] sm:$0x1]
      %v1269 = vlaneseq
      %v1270 = vshrl.u32 %v1269, 7
      %v1271 = vadd.s32 %v1270, 8
      %v1272 = vcvt.s32.f32 %v1270
      %v1273 = vcvt.s32.f32 %v1271
      %v1274 = vlaneseq
      %v1275 = vand.u32 %v1274, 127
      %v1276 = vcvt.s32.f32 %v1275
      %v1277 = vmul.f32 %v1272, 0.125
      %v1278 = vmul.f32 %v1273, 0.125
      %v1279 = vfloor.f32 %v1277
      %v1280 = vfloor.f32 %v1278
      %v1281 = vmul.f32 %v1276, 0.125
      %v1282 = vfloor.f32 %v1281
      %v1283 = vmul.f32 %v1279, 8.0
      %v1284 = vmul.f32 %v1280, 8.0
      %v1285 = vsub.f32 %v1272, %v1283
      %v1286 = vsub.f32 %v1273, %v1284
      %v1287 = vmul.f32 %v1282, 8.0
      %v1288 = vsub.f32 %v1276, %v1287
      %vm1289 = vcmp.eq.f32.partialorder %v1279, %v1282
      %vm1290 = vcmp.eq.f32.partialorder %v1280, %v1282
      %v1291 = vld [vmem:[%s2] sm:$0x1]
      %v1293 = vlaneseq
      %v1294 = vshrl.u32 %v1293, 7
      %v1295 = vsub.s32 0, %v1294
      %v1296 = vrot.slane %v1291, %v1295
      %vm1298 = vcmp.lt.f32.partialorder %v1288, %v1296
      %vm1299 = vmand %vm1289, %vm1298
      %vm1300 = vmand %vm1290, %vm1298
      %vm1301 = vcmp.lt.f32.partialorder %v1285, %v1296
      %vm1302 = vcmp.lt.f32.partialorder %v1286, %v1296
      %vm1303 = vmand %vm1299, %vm1301
      %vm1304 = vmand %vm1300, %vm1302
      %v1305 = vsub.f32 %v1288, 2.0
      %vm1306 = vcmp.ge.f32.partialorder %v1285, %v1305
      %vm1307 = vcmp.ge.f32.partialorder %v1286, %v1305
      %vm1308 = vmand %vm1303, %vm1306
      %vm1309 = vmand %vm1304, %vm1307
      %v1310 = vadd.f32 %v1288, 2.0
      %vm1311 = vcmp.le.f32.partialorder %v1285, %v1310
      %vm1312 = vcmp.le.f32.partialorder %v1286, %v1310
      %vm1313 = vmand %vm1308, %vm1311
      %vm1314 = vmand %vm1309, %vm1312
      %v1315 = vpack.c.bf16 %v1267, %v1266
      %v1316 = vld [vmem:[%s1169] sm:$0xf]
      %v1317 = vld [vmem:[%s1169 + $0x4] sm:$0xf]
      %v1318 = vld [vmem:[%s1169 + $0x8] sm:$0xf]
      %v1319 = vld [vmem:[%s1169 + $0xc] sm:$0xf]
      %v1320 = vld [vmem:[%s1172] sm:$0x1]
      %v1322 = vlaneseq
      %v1323 = vshrl.u32 %v1322, 7
      %v1324 = vsub.s32 0, %v1323
      %v1325 = vrot.slane %v1320, %v1324
      %v1331 = vunpack.c.l.b16 %v1316
      %v1332 = vunpack.c.l.b16 %v1317
      %v1333 = vunpack.c.l.b16 %v1318
      %v1334 = vunpack.c.l.b16 %v1319
      %v1335 = vpack.c.b16 %v1332, %v1331
      %v1336 = vpack.c.b16 %v1334, %v1333
      %vm1339 = vcmask 261120
      %v1341 = vsel %vm1339, %v1315, 0
      %1343 = vmatprep.subr.bf16.mxu0 0
      %1344 = vmatpush1.bf16.msra.mxu0 %v1335
      %1345 = vmatprep.subr.bf16.mxu0 0
      %1346 = vmatpush1.bf16.msra.mxu0 %v1336
      %1347 = vmatprep.subr.bf16.mxu0 0
      %1348 = vmatpush1.bf16.msra.mxu0 0
      %1349 = vmatprep.subr.bf16.mxu0 0
      %1350 = vmatpush1.bf16.msra.mxu0 0
      %1351 = vmatprep.subr.bf16.mxu0 0
      %1352 = vmatpush1.bf16.msra.mxu0 0
      %1353 = vmatprep.subr.bf16.mxu0 0
      %1354 = vmatpush1.bf16.msra.mxu0 0
      %1355 = vmatprep.subr.bf16.mxu0 0
      %1356 = vmatpush1.bf16.msra.mxu0 0
      %1357 = vmatprep.subr.bf16.mxu0 0
      %1358 = vmatpush1.bf16.msra.mxu0 0
      %1359 = vmatprep.subr.bf16.mxu0 0
      %1360 = vmatpush1.bf16.msra.mxu0 0
      %1361 = vmatprep.subr.bf16.mxu0 0
      %1362 = vmatpush1.bf16.msra.mxu0 0
      %1363 = vmatprep.subr.bf16.mxu0 0
      %1364 = vmatpush1.bf16.msra.mxu0 0
      %1365 = vmatprep.subr.bf16.mxu0 0
      %1366 = vmatpush1.bf16.msra.mxu0 0
      %1367 = vmatprep.subr.bf16.mxu0 0
      %1368 = vmatpush1.bf16.msra.mxu0 0
      %1369 = vmatprep.subr.bf16.mxu0 0
      %1370 = vmatpush1.bf16.msra.mxu0 0
      %1371 = vmatprep.subr.bf16.mxu0 0
      %1372 = vmatpush1.bf16.msra.mxu0 0
      %1373 = vmatprep.subr.bf16.mxu0 0
      %1374 = vmatpush1.bf16.msra.mxu0 0
      %1375 = vmatprep.mubr.bf16.mxu0 0
      %1376 = vmatmul.mubr.bf16.gmra.mrb[0].mxu0 %v1341
      %v1377 = vpop.f32.mrb[0].mxu0
      %v1378 = vadd.f32 %v1325, %v1377
      %v1379 = vpop.f32.mrb[0].mxu0
      %v1380 = vpop.f32.mrb[0].mxu0
      %v1381 = vadd.f32 %v1325, %v1380
      %v1382 = vpop.f32.mrb[0].mxu0
      %1383 = vdwg.mxu0
      %v1384 = vpack.c.bf16 %v1381, %v1378
      %1386 = vrot.lane.b32.xlu0 %v1384, 96
      %v1387 = vpop.permute.xlu0 %1386
      %v1389 = vsel %vm1339, %v1384, 0
      %v1392 = vsel %vm1339, %v1387, 0
      %1394 = vmatprep.subr.bf16.mxu0 0
      %1395 = vmatpush1.bf16.xpose.msra.mxu0 %v1392
      %1396 = vmatprep.subr.bf16.mxu0 0
      %1397 = vmatpush1.bf16.xpose.msra.mxu0 0
      %1398 = vmatprep.subr.bf16.mxu0 0
      %1399 = vmatpush1.bf16.xpose.msra.mxu0 0
      %1400 = vmatprep.subr.bf16.mxu0 0
      %1401 = vmatpush1.bf16.xpose.msra.mxu0 0
      %1402 = vmatprep.subr.bf16.mxu0 0
      %1403 = vmatpush1.bf16.xpose.msra.mxu0 0
      %1404 = vmatprep.subr.bf16.mxu0 0
      %1405 = vmatpush1.bf16.xpose.msra.mxu0 0
      %1406 = vmatprep.subr.bf16.mxu0 0
      %1407 = vmatpush1.bf16.xpose.msra.mxu0 0
      %1408 = vmatprep.subr.bf16.mxu0 0
      %1409 = vmatpush1.bf16.xpose.msra.mxu0 0
      %1410 = vmatprep.subr.bf16.mxu0 0
      %1411 = vmatpush1.bf16.xpose.msra.mxu0 0
      %1412 = vmatprep.subr.bf16.mxu0 0
      %1413 = vmatpush1.bf16.xpose.msra.mxu0 0
      %1414 = vmatprep.subr.bf16.mxu0 0
      %1415 = vmatpush1.bf16.xpose.msra.mxu0 0
      %1416 = vmatprep.subr.bf16.mxu0 0
      %1417 = vmatpush1.bf16.xpose.msra.mxu0 0
      %1418 = vmatprep.subr.bf16.mxu0 0
      %1419 = vmatpush1.bf16.xpose.msra.mxu0 0
      %1420 = vmatprep.subr.bf16.mxu0 0
      %1421 = vmatpush1.bf16.xpose.msra.mxu0 0
      %1422 = vmatprep.subr.bf16.mxu0 0
      %1423 = vmatpush1.bf16.xpose.msra.mxu0 0
      %1424 = vmatprep.subr.bf16.mxu0 0
      %1425 = vmatpush1.bf16.xpose.msra.mxu0 0
      %1426 = vmatprep.mubr.bf16.mxu0 0
      %1427 = vmatmul.mubr.bf16.gmra.mrb[0].mxu0 %v1389
      %v1428 = vpop.f32.mrb[0].mxu0
      %v1429 = vadd.f32 0.0, %v1428
      %v1430 = vpop.f32.mrb[0].mxu0
      %v1431 = vpop.f32.mrb[0].mxu0
      %v1432 = vadd.f32 0.0, %v1431
      %v1433 = vpop.f32.mrb[0].mxu0
      %1434 = vdwg.mxu0
      %v1435 = vsel %vm1289, %v1429, -1e+30
      %v1436 = vsel %vm1290, %v1432, -1e+30
      %vm1437 = vcmask 130048
      %v1438 = vsel %vm1437, %v1435, -inf
      %1439 = vmax.xlane.f32.xlu0 %v1438
      %v1440 = vpop.xlane.xlu0 %1439
      %v1441 = vsel %vm1437, %v1436, -inf
      %1442 = vmax.xlane.f32.xlu0 %v1441
      %v1443 = vpop.xlane.xlu0 %1442
      %v1444 = vsub.f32 %v1435, %v1440
      %v1445 = vsub.f32 %v1436, %v1443
      %v1446 = vmul.f32 %v1444, 1.442695
      %v1447 = vpow.pop %v1446
      %v1448 = vmul.f32 %v1445, 1.442695
      %v1449 = vpow.pop %v1448
      %v1450 = vsel %vm1437, %v1447, 0.0
      %1451 = vadd.xlane.f32.xlu0 %v1450
      %v1452 = vpop.xlane.xlu0 %1451
      %v1453 = vsel %vm1437, %v1449, 0.0
      %1454 = vadd.xlane.f32.xlu0 %v1453
      %v1455 = vpop.xlane.xlu0 %1454
      %v1456 = vrcp.pop %v1452
      %v1457 = vrcp.pop %v1455
      %v1458 = vmul.f32 %v1447, %v1456
      %v1459 = vmul.f32 %v1449, %v1457
      %v1460 = vpack.c.bf16 %v1459, %v1458
      %1461 = vrot.lane.b32.xlu0 %v1384, 64
      %v1462 = vpop.permute.xlu0 %1461
      %v1465 = vsel %vm1437, %v1460, 0
      %1467 = vmatprep.subr.bf16.mxu0 0
      %1468 = vmatpush1.bf16.msra.mxu0 %v1462
      %1469 = vmatprep.subr.bf16.mxu0 0
      %1470 = vmatpush1.bf16.msra.mxu0 0
      %1471 = vmatprep.subr.bf16.mxu0 0
      %1472 = vmatpush1.bf16.msra.mxu0 0
      %1473 = vmatprep.subr.bf16.mxu0 0
      %1474 = vmatpush1.bf16.msra.mxu0 0
      %1475 = vmatprep.subr.bf16.mxu0 0
      %1476 = vmatpush1.bf16.msra.mxu0 0
      %1477 = vmatprep.subr.bf16.mxu0 0
      %1478 = vmatpush1.bf16.msra.mxu0 0
      %1479 = vmatprep.subr.bf16.mxu0 0
      %1480 = vmatpush1.bf16.msra.mxu0 0
      %1481 = vmatprep.subr.bf16.mxu0 0
      %1482 = vmatpush1.bf16.msra.mxu0 0
      %1483 = vmatprep.subr.bf16.mxu0 0
      %1484 = vmatpush1.bf16.msra.mxu0 0
      %1485 = vmatprep.subr.bf16.mxu0 0
      %1486 = vmatpush1.bf16.msra.mxu0 0
      %1487 = vmatprep.subr.bf16.mxu0 0
      %1488 = vmatpush1.bf16.msra.mxu0 0
      %1489 = vmatprep.subr.bf16.mxu0 0
      %1490 = vmatpush1.bf16.msra.mxu0 0
      %1491 = vmatprep.subr.bf16.mxu0 0
      %1492 = vmatpush1.bf16.msra.mxu0 0
      %1493 = vmatprep.subr.bf16.mxu0 0
      %1494 = vmatpush1.bf16.msra.mxu0 0
      %1495 = vmatprep.subr.bf16.mxu0 0
      %1496 = vmatpush1.bf16.msra.mxu0 0
      %1497 = vmatprep.subr.bf16.mxu0 0
      %1498 = vmatpush1.bf16.msra.mxu0 0
      %1499 = vmatprep.mubr.bf16.mxu0 0
      %1500 = vmatmul.mubr.bf16.gmra.mrb[0].mxu0 %v1465
      %v1501 = vpop.f32.mrb[0].mxu0
      %v1502 = vadd.f32 0.0, %v1501
      %v1503 = vpop.f32.mrb[0].mxu0
      %v1504 = vpop.f32.mrb[0].mxu0
      %v1505 = vadd.f32 0.0, %v1504
      %v1506 = vpop.f32.mrb[0].mxu0
      %1507 = vdwg.mxu0
      %v1508 = vpack.c.bf16 %v1505, %v1502
      %v1509 = vld [vmem:[%s1177] sm:$0xf]
      %v1510 = vld [vmem:[%s1177 + $0x4] sm:$0xf]
      %v1511 = vld [vmem:[%s1177 + $0x8] sm:$0xf]
      %v1512 = vld [vmem:[%s1177 + $0xc] sm:$0xf]
      %v1513 = vld [vmem:[%s1180] sm:$0x1]
      %v1515 = vlaneseq
      %v1516 = vshrl.u32 %v1515, 7
      %v1517 = vsub.s32 0, %v1516
      %v1518 = vrot.slane %v1513, %v1517
      %v1524 = vunpack.c.l.b16 %v1509
      %v1525 = vunpack.c.l.b16 %v1510
      %v1526 = vunpack.c.l.b16 %v1511
      %v1527 = vunpack.c.l.b16 %v1512
      %v1528 = vpack.c.b16 %v1525, %v1524
      %v1529 = vpack.c.b16 %v1527, %v1526
      %v1533 = vsel %vm1339, %v1508, 0
      %1535 = vmatprep.subr.bf16.mxu0 0
      %1536 = vmatpush1.bf16.msra.mxu0 %v1528
      %1537 = vmatprep.subr.bf16.mxu0 0
      %1538 = vmatpush1.bf16.msra.mxu0 %v1529
      %1539 = vmatprep.subr.bf16.mxu0 0
      %1540 = vmatpush1.bf16.msra.mxu0 0
      %1541 = vmatprep.subr.bf16.mxu0 0
      %1542 = vmatpush1.bf16.msra.mxu0 0
      %1543 = vmatprep.subr.bf16.mxu0 0
      %1544 = vmatpush1.bf16.msra.mxu0 0
      %1545 = vmatprep.subr.bf16.mxu0 0
      %1546 = vmatpush1.bf16.msra.mxu0 0
      %1547 = vmatprep.subr.bf16.mxu0 0
      %1548 = vmatpush1.bf16.msra.mxu0 0
      %1549 = vmatprep.subr.bf16.mxu0 0
      %1550 = vmatpush1.bf16.msra.mxu0 0
      %1551 = vmatprep.subr.bf16.mxu0 0
      %1552 = vmatpush1.bf16.msra.mxu0 0
      %1553 = vmatprep.subr.bf16.mxu0 0
      %1554 = vmatpush1.bf16.msra.mxu0 0
      %1555 = vmatprep.subr.bf16.mxu0 0
      %1556 = vmatpush1.bf16.msra.mxu0 0
      %1557 = vmatprep.subr.bf16.mxu0 0
      %1558 = vmatpush1.bf16.msra.mxu0 0
      %1559 = vmatprep.subr.bf16.mxu0 0
      %1560 = vmatpush1.bf16.msra.mxu0 0
      %1561 = vmatprep.subr.bf16.mxu0 0
      %1562 = vmatpush1.bf16.msra.mxu0 0
      %1563 = vmatprep.subr.bf16.mxu0 0
      %1564 = vmatpush1.bf16.msra.mxu0 0
      %1565 = vmatprep.subr.bf16.mxu0 0
      %1566 = vmatpush1.bf16.msra.mxu0 0
      %1567 = vmatprep.mubr.bf16.mxu0 0
      %1568 = vmatmul.mubr.bf16.gmra.mrb[0].mxu0 %v1533
      %v1569 = vpop.f32.mrb[0].mxu0
      %v1570 = vadd.f32 %v1518, %v1569
      %v1571 = vpop.f32.mrb[0].mxu0
      %v1572 = vpop.f32.mrb[0].mxu0
      %v1573 = vadd.f32 %v1518, %v1572
      %v1574 = vpop.f32.mrb[0].mxu0
      %1575 = vdwg.mxu0
      %v1576 = vadd.f32 %v1266, %v1570
      %v1577 = vadd.f32 %v1267, %v1573
      %v1578 = vsel %vm1339, %v1576, 0.0
      %1579 = vadd.xlane.f32.xlu0 %v1578
      %v1580 = vpop.xlane.xlu0 %1579
      %v1581 = vsel %vm1339, %v1577, 0.0
      %1582 = vadd.xlane.f32.xlu0 %v1581
      %v1583 = vpop.xlane.xlu0 %1582
      %v1585 = vlaneseq
      %v1586 = vshrl.u32 %v1585, 7
      %v1587 = vsub.s32 0, %v1586
      %v1588 = vrot.slane %v1268, %v1587
      %v1590 = vmul.f32 %v1580, %v1588
      %v1591 = vmul.f32 %v1583, %v1588
      %v1592 = vmul.f32 %v1576, %v1576
      %v1593 = vmul.f32 %v1577, %v1577
      %v1594 = vsel %vm1339, %v1592, 0.0
      %1595 = vadd.xlane.f32.xlu0 %v1594
      %v1596 = vpop.xlane.xlu0 %1595
      %v1597 = vsel %vm1339, %v1593, 0.0
      %1598 = vadd.xlane.f32.xlu0 %v1597
      %v1599 = vpop.xlane.xlu0 %1598
      %v1600 = vmul.f32 %v1596, %v1588
      %v1601 = vmul.f32 %v1599, %v1588
      %v1602 = vmul.f32 %v1590, %v1590
      %v1603 = vmul.f32 %v1591, %v1591
      %v1604 = vsub.f32 %v1600, %v1602
      %v1605 = vsub.f32 %v1601, %v1603
      %v1606 = vmax.f32 %v1604, 0.0
      %v1607 = vmax.f32 %v1605, 0.0
      %1609 = vset.pattern.permute.xlu0 0
      %1610 = vperm.xlu0 %1609, %v1590
      %v1611 = vpop.permute.xlu0 %1610
      %1614 = vset.pattern.permute.xlu0 0
      %1615 = vperm.xlu0 %1614, %v1591
      %v1616 = vpop.permute.xlu0 %1615
      %v1618 = vsub.f32 %v1576, %v1611
      %v1619 = vsub.f32 %v1577, %v1616
      %v1620 = vadd.f32 %v1606, 1e-05
      %v1621 = vadd.f32 %v1607, 1e-05
      %v1622 = vrsqrt.pop %v1620
      %v1623 = vrsqrt.pop %v1621
      %1625 = vset.pattern.permute.xlu0 0
      %1626 = vperm.xlu0 %1625, %v1622
      %v1627 = vpop.permute.xlu0 %1626
      %1630 = vset.pattern.permute.xlu0 0
      %1631 = vperm.xlu0 %1630, %v1623
      %v1632 = vpop.permute.xlu0 %1631
      %v1634 = vmul.f32 %v1618, %v1627
      %v1635 = vmul.f32 %v1619, %v1632
      %v1636 = vld [vmem:[%s1183] sm:$0x1]
      %v1638 = vlaneseq
      %v1639 = vshrl.u32 %v1638, 7
      %v1640 = vsub.s32 0, %v1639
      %v1641 = vrot.slane %v1636, %v1640
      %v1643 = vmul.f32 %v1634, %v1641
      %v1644 = vmul.f32 %v1635, %v1641
      %v1645 = vld [vmem:[%s1186] sm:$0x1]
      %v1647 = vlaneseq
      %v1648 = vshrl.u32 %v1647, 7
      %v1649 = vsub.s32 0, %v1648
      %v1650 = vrot.slane %v1645, %v1649
      %v1652 = vadd.f32 %v1643, %v1650
      %v1653 = vadd.f32 %v1644, %v1650
      %v1654 = vpack.c.bf16 %v1653, %v1652
      %v1655 = vld [vmem:[%s1191] sm:$0xff]
      %v1656 = vld [vmem:[%s1191 + $0x8] sm:$0xff]
      %v1657 = vld [vmem:[%s1191 + $0x10] sm:$0xff]
      %v1658 = vld [vmem:[%s1191 + $0x18] sm:$0xff]
      %v1659 = vld [vmem:[%s1191 + $0x20] sm:$0xff]
      %v1660 = vld [vmem:[%s1191 + $0x28] sm:$0xff]
      %v1661 = vld [vmem:[%s1191 + $0x30] sm:$0xff]
      %v1662 = vld [vmem:[%s1191 + $0x38] sm:$0xff]
      %v1663 = vld [vmem:[%s1191 + $0x40] sm:$0xff]
      %v1664 = vld [vmem:[%s1191 + $0x48] sm:$0xff]
      %v1665 = vld [vmem:[%s1191 + $0x50] sm:$0xff]
      %v1666 = vld [vmem:[%s1191 + $0x58] sm:$0xff]
      %v1667 = vld [vmem:[%s1191 + $0x60] sm:$0xff]
      %v1668 = vld [vmem:[%s1191 + $0x68] sm:$0xff]
      %v1669 = vld [vmem:[%s1191 + $0x70] sm:$0xff]
      %v1670 = vld [vmem:[%s1191 + $0x78] sm:$0xff]
      %v1671 = vld [vmem:[%s1191 + $0x80] sm:$0xff]
      %v1672 = vld [vmem:[%s1191 + $0x88] sm:$0xff]
      %v1673 = vld [vmem:[%s1191 + $0x90] sm:$0xff]
      %v1674 = vld [vmem:[%s1191 + $0x98] sm:$0xff]
      %v1675 = vld [vmem:[%s1191 + $0xa0] sm:$0xff]
      %v1676 = vld [vmem:[%s1191 + $0xa8] sm:$0xff]
      %v1677 = vld [vmem:[%s1191 + $0xb0] sm:$0xff]
      %v1678 = vld [vmem:[%s1191 + $0xb8] sm:$0xff]
      %v1679 = vld [vmem:[%s1191 + $0xc0] sm:$0xff]
      %v1680 = vld [vmem:[%s1191 + $0xc8] sm:$0xff]
      %v1681 = vld [vmem:[%s1191 + $0xd0] sm:$0xff]
      %v1682 = vld [vmem:[%s1191 + $0xd8] sm:$0xff]
      %v1683 = vld [vmem:[%s1191 + $0xe0] sm:$0xff]
      %v1684 = vld [vmem:[%s1191 + $0xe8] sm:$0xff]
      %v1685 = vld [vmem:[%s1191 + $0xf0] sm:$0xff]
      %v1686 = vld [vmem:[%s1191 + $0xf8] sm:$0xff]
      %v1687 = vld [vmem:[%s1195] sm:$0xff]
      %v1688 = vld [vmem:[%s1195 + $0x8] sm:$0xff]
      %v1691 = vlaneseq
      %v1692 = vshrl.u32 %v1691, 7
      %v1693 = vsub.s32 0, %v1692
      %v1694 = vrot.slane %v1687, %v1693
      %v1695 = vlaneseq
      %v1696 = vshrl.u32 %v1695, 7
      %v1697 = vsub.s32 1, %v1696
      %v1698 = vrot.slane %v1687, %v1697
      %v1699 = vlaneseq
      %v1700 = vshrl.u32 %v1699, 7
      %v1701 = vsub.s32 2, %v1700
      %v1702 = vrot.slane %v1687, %v1701
      %v1703 = vlaneseq
      %v1704 = vshrl.u32 %v1703, 7
      %v1705 = vsub.s32 3, %v1704
      %v1706 = vrot.slane %v1687, %v1705
      %v1707 = vlaneseq
      %v1708 = vshrl.u32 %v1707, 7
      %v1709 = vsub.s32 4, %v1708
      %v1710 = vrot.slane %v1687, %v1709
      %v1711 = vlaneseq
      %v1712 = vshrl.u32 %v1711, 7
      %v1713 = vsub.s32 5, %v1712
      %v1714 = vrot.slane %v1687, %v1713
      %v1715 = vlaneseq
      %v1716 = vshrl.u32 %v1715, 7
      %v1717 = vsub.s32 6, %v1716
      %v1718 = vrot.slane %v1687, %v1717
      %v1719 = vlaneseq
      %v1720 = vshrl.u32 %v1719, 7
      %v1721 = vsub.s32 7, %v1720
      %v1722 = vrot.slane %v1687, %v1721
      %v1723 = vlaneseq
      %v1724 = vshrl.u32 %v1723, 7
      %v1725 = vsub.s32 0, %v1724
      %v1726 = vrot.slane %v1688, %v1725
      %v1727 = vlaneseq
      %v1728 = vshrl.u32 %v1727, 7
      %v1729 = vsub.s32 1, %v1728
      %v1730 = vrot.slane %v1688, %v1729
      %v1731 = vlaneseq
      %v1732 = vshrl.u32 %v1731, 7
      %v1733 = vsub.s32 2, %v1732
      %v1734 = vrot.slane %v1688, %v1733
      %v1735 = vlaneseq
      %v1736 = vshrl.u32 %v1735, 7
      %v1737 = vsub.s32 3, %v1736
      %v1738 = vrot.slane %v1688, %v1737
      %v1739 = vlaneseq
      %v1740 = vshrl.u32 %v1739, 7
      %v1741 = vsub.s32 4, %v1740
      %v1742 = vrot.slane %v1688, %v1741
      %v1743 = vlaneseq
      %v1744 = vshrl.u32 %v1743, 7
      %v1745 = vsub.s32 5, %v1744
      %v1746 = vrot.slane %v1688, %v1745
      %v1747 = vlaneseq
      %v1748 = vshrl.u32 %v1747, 7
      %v1749 = vsub.s32 6, %v1748
      %v1750 = vrot.slane %v1688, %v1749
      %v1751 = vlaneseq
      %v1752 = vshrl.u32 %v1751, 7
      %v1753 = vsub.s32 7, %v1752
      %v1754 = vrot.slane %v1688, %v1753
      %v1803 = vunpack.c.l.b16 %v1655
      %v1804 = vunpack.c.h.b16 %v1655
      %v1805 = vunpack.c.l.b16 %v1656
      %v1806 = vunpack.c.h.b16 %v1656
      %v1807 = vunpack.c.l.b16 %v1657
      %v1808 = vunpack.c.h.b16 %v1657
      %v1809 = vunpack.c.l.b16 %v1658
      %v1810 = vunpack.c.h.b16 %v1658
      %v1811 = vunpack.c.l.b16 %v1659
      %v1812 = vunpack.c.h.b16 %v1659
      %v1813 = vunpack.c.l.b16 %v1660
      %v1814 = vunpack.c.h.b16 %v1660
      %v1815 = vunpack.c.l.b16 %v1661
      %v1816 = vunpack.c.h.b16 %v1661
      %v1817 = vunpack.c.l.b16 %v1662
      %v1818 = vunpack.c.h.b16 %v1662
      %v1819 = vunpack.c.l.b16 %v1663
      %v1820 = vunpack.c.h.b16 %v1663
      %v1821 = vunpack.c.l.b16 %v1664
      %v1822 = vunpack.c.h.b16 %v1664
      %v1823 = vunpack.c.l.b16 %v1665
      %v1824 = vunpack.c.h.b16 %v1665
      %v1825 = vunpack.c.l.b16 %v1666
      %v1826 = vunpack.c.h.b16 %v1666
      %v1827 = vunpack.c.l.b16 %v1667
      %v1828 = vunpack.c.h.b16 %v1667
      %v1829 = vunpack.c.l.b16 %v1668
      %v1830 = vunpack.c.h.b16 %v1668
      %v1831 = vunpack.c.l.b16 %v1669
      %v1832 = vunpack.c.h.b16 %v1669
      %v1833 = vunpack.c.l.b16 %v1670
      %v1834 = vunpack.c.h.b16 %v1670
      %v1835 = vunpack.c.l.b16 %v1671
      %v1836 = vunpack.c.h.b16 %v1671
      %v1837 = vunpack.c.l.b16 %v1672
      %v1838 = vunpack.c.h.b16 %v1672
      %v1839 = vunpack.c.l.b16 %v1673
      %v1840 = vunpack.c.h.b16 %v1673
      %v1841 = vunpack.c.l.b16 %v1674
      %v1842 = vunpack.c.h.b16 %v1674
      %v1843 = vunpack.c.l.b16 %v1675
      %v1844 = vunpack.c.h.b16 %v1675
      %v1845 = vunpack.c.l.b16 %v1676
      %v1846 = vunpack.c.h.b16 %v1676
      %v1847 = vunpack.c.l.b16 %v1677
      %v1848 = vunpack.c.h.b16 %v1677
      %v1849 = vunpack.c.l.b16 %v1678
      %v1850 = vunpack.c.h.b16 %v1678
      %v1851 = vunpack.c.l.b16 %v1679
      %v1852 = vunpack.c.h.b16 %v1679
      %v1853 = vunpack.c.l.b16 %v1680
      %v1854 = vunpack.c.h.b16 %v1680
      %v1855 = vunpack.c.l.b16 %v1681
      %v1856 = vunpack.c.h.b16 %v1681
      %v1857 = vunpack.c.l.b16 %v1682
      %v1858 = vunpack.c.h.b16 %v1682
      %v1859 = vunpack.c.l.b16 %v1683
      %v1860 = vunpack.c.h.b16 %v1683
      %v1861 = vunpack.c.l.b16 %v1684
      %v1862 = vunpack.c.h.b16 %v1684
      %v1863 = vunpack.c.l.b16 %v1685
      %v1864 = vunpack.c.h.b16 %v1685
      %v1865 = vunpack.c.l.b16 %v1686
      %v1866 = vunpack.c.h.b16 %v1686
      %v1867 = vpack.c.b16 %v1819, %v1803
      %v1868 = vpack.c.b16 %v1820, %v1804
      %v1869 = vpack.c.b16 %v1821, %v1805
      %v1870 = vpack.c.b16 %v1822, %v1806
      %v1871 = vpack.c.b16 %v1823, %v1807
      %v1872 = vpack.c.b16 %v1824, %v1808
      %v1873 = vpack.c.b16 %v1825, %v1809
      %v1874 = vpack.c.b16 %v1826, %v1810
      %v1875 = vpack.c.b16 %v1827, %v1811
      %v1876 = vpack.c.b16 %v1828, %v1812
      %v1877 = vpack.c.b16 %v1829, %v1813
      %v1878 = vpack.c.b16 %v1830, %v1814
      %v1879 = vpack.c.b16 %v1831, %v1815
      %v1880 = vpack.c.b16 %v1832, %v1816
      %v1881 = vpack.c.b16 %v1833, %v1817
      %v1882 = vpack.c.b16 %v1834, %v1818
      %v1883 = vpack.c.b16 %v1851, %v1835
      %v1884 = vpack.c.b16 %v1852, %v1836
      %v1885 = vpack.c.b16 %v1853, %v1837
      %v1886 = vpack.c.b16 %v1854, %v1838
      %v1887 = vpack.c.b16 %v1855, %v1839
      %v1888 = vpack.c.b16 %v1856, %v1840
      %v1889 = vpack.c.b16 %v1857, %v1841
      %v1890 = vpack.c.b16 %v1858, %v1842
      %v1891 = vpack.c.b16 %v1859, %v1843
      %v1892 = vpack.c.b16 %v1860, %v1844
      %v1893 = vpack.c.b16 %v1861, %v1845
      %v1894 = vpack.c.b16 %v1862, %v1846
      %v1895 = vpack.c.b16 %v1863, %v1847
      %v1896 = vpack.c.b16 %v1864, %v1848
      %v1897 = vpack.c.b16 %v1865, %v1849
      %v1898 = vpack.c.b16 %v1866, %v1850
      %v1932 = vsel %vm1339, %v1654, 0
      %1934 = vmatprep.subr.bf16.mxu0 %v1868
      %1935 = vmatpush1.bf16.msra.mxu0 %v1867
      %1936 = vmatprep.subr.bf16.mxu0 %v1884
      %1937 = vmatpush1.bf16.msra.mxu0 %v1883
      %1938 = vmatprep.subr.bf16.mxu0 0
      %1939 = vmatpush1.bf16.msra.mxu0 0
      %1940 = vmatprep.subr.bf16.mxu0 0
      %1941 = vmatpush1.bf16.msra.mxu0 0
      %1942 = vmatprep.subr.bf16.mxu0 0
      %1943 = vmatpush1.bf16.msra.mxu0 0
      %1944 = vmatprep.subr.bf16.mxu0 0
      %1945 = vmatpush1.bf16.msra.mxu0 0
      %1946 = vmatprep.subr.bf16.mxu0 0
      %1947 = vmatpush1.bf16.msra.mxu0 0
      %1948 = vmatprep.subr.bf16.mxu0 0
      %1949 = vmatpush1.bf16.msra.mxu0 0
      %1950 = vmatprep.subr.bf16.mxu0 0
      %1951 = vmatpush1.bf16.msra.mxu0 0
      %1952 = vmatprep.subr.bf16.mxu0 0
      %1953 = vmatpush1.bf16.msra.mxu0 0
      %1954 = vmatprep.subr.bf16.mxu0 0
      %1955 = vmatpush1.bf16.msra.mxu0 0
      %1956 = vmatprep.subr.bf16.mxu0 0
      %1957 = vmatpush1.bf16.msra.mxu0 0
      %1958 = vmatprep.subr.bf16.mxu0 0
      %1959 = vmatpush1.bf16.msra.mxu0 0
      %1960 = vmatprep.subr.bf16.mxu0 0
      %1961 = vmatpush1.bf16.msra.mxu0 0
      %1962 = vmatprep.subr.bf16.mxu0 0
      %1963 = vmatpush1.bf16.msra.mxu0 0
      %1964 = vmatprep.subr.bf16.mxu0 0
      %1965 = vmatpush1.bf16.msra.mxu0 0
      %1966 = vmatprep.mubr.bf16.mxu0 0
      %1967 = vmatmul.mubr.bf16.gmra.mrb[0].mxu0 %v1932
      %v1968 = vpop.f32.mrb[0].mxu0
      %v1969 = vadd.f32 %v1694, %v1968
      %v1970 = vpop.f32.mrb[0].mxu0
      %v1971 = vadd.f32 %v1698, %v1970
      %v1972 = vpop.f32.mrb[0].mxu0
      %v1973 = vadd.f32 %v1694, %v1972
      %v1974 = vpop.f32.mrb[0].mxu0
      %v1975 = vadd.f32 %v1698, %v1974
      %1976 = vdwg.mxu0
      %1977 = vmatprep.subr.bf16.mxu0 %v1870
      %1978 = vmatpush1.bf16.msra.mxu0 %v1869
      %1979 = vmatprep.subr.bf16.mxu0 %v1886
      %1980 = vmatpush1.bf16.msra.mxu0 %v1885
      %1981 = vmatprep.subr.bf16.mxu0 0
      %1982 = vmatpush1.bf16.msra.mxu0 0
      %1983 = vmatprep.subr.bf16.mxu0 0
      %1984 = vmatpush1.bf16.msra.mxu0 0
      %1985 = vmatprep.subr.bf16.mxu0 0
      %1986 = vmatpush1.bf16.msra.mxu0 0
      %1987 = vmatprep.subr.bf16.mxu0 0
      %1988 = vmatpush1.bf16.msra.mxu0 0
      %1989 = vmatprep.subr.bf16.mxu0 0
      %1990 = vmatpush1.bf16.msra.mxu0 0
      %1991 = vmatprep.subr.bf16.mxu0 0
      %1992 = vmatpush1.bf16.msra.mxu0 0
      %1993 = vmatprep.subr.bf16.mxu0 0
      %1994 = vmatpush1.bf16.msra.mxu0 0
      %1995 = vmatprep.subr.bf16.mxu0 0
      %1996 = vmatpush1.bf16.msra.mxu0 0
      %1997 = vmatprep.subr.bf16.mxu0 0
      %1998 = vmatpush1.bf16.msra.mxu0 0
      %1999 = vmatprep.subr.bf16.mxu0 0
      %2000 = vmatpush1.bf16.msra.mxu0 0
      %2001 = vmatprep.subr.bf16.mxu0 0
      %2002 = vmatpush1.bf16.msra.mxu0 0
      %2003 = vmatprep.subr.bf16.mxu0 0
      %2004 = vmatpush1.bf16.msra.mxu0 0
      %2005 = vmatprep.subr.bf16.mxu0 0
      %2006 = vmatpush1.bf16.msra.mxu0 0
      %2007 = vmatprep.subr.bf16.mxu0 0
      %2008 = vmatpush1.bf16.msra.mxu0 0
      %2009 = vmatprep.mubr.bf16.mxu0 0
      %2010 = vmatmul.mubr.bf16.gmra.mrb[0].mxu0 %v1932
      %v2011 = vpop.f32.mrb[0].mxu0
      %v2012 = vadd.f32 %v1702, %v2011
      %v2013 = vpop.f32.mrb[0].mxu0
      %v2014 = vadd.f32 %v1706, %v2013
      %v2015 = vpop.f32.mrb[0].mxu0
      %v2016 = vadd.f32 %v1702, %v2015
      %v2017 = vpop.f32.mrb[0].mxu0
      %v2018 = vadd.f32 %v1706, %v2017
      %2019 = vdwg.mxu0
      %2020 = vmatprep.subr.bf16.mxu0 %v1872
      %2021 = vmatpush1.bf16.msra.mxu0 %v1871
      %2022 = vmatprep.subr.bf16.mxu0 %v1888
      %2023 = vmatpush1.bf16.msra.mxu0 %v1887
      %2024 = vmatprep.subr.bf16.mxu0 0
      %2025 = vmatpush1.bf16.msra.mxu0 0
      %2026 = vmatprep.subr.bf16.mxu0 0
      %2027 = vmatpush1.bf16.msra.mxu0 0
      %2028 = vmatprep.subr.bf16.mxu0 0
      %2029 = vmatpush1.bf16.msra.mxu0 0
      %2030 = vmatprep.subr.bf16.mxu0 0
      %2031 = vmatpush1.bf16.msra.mxu0 0
      %2032 = vmatprep.subr.bf16.mxu0 0
      %2033 = vmatpush1.bf16.msra.mxu0 0
      %2034 = vmatprep.subr.bf16.mxu0 0
      %2035 = vmatpush1.bf16.msra.mxu0 0
      %2036 = vmatprep.subr.bf16.mxu0 0
      %2037 = vmatpush1.bf16.msra.mxu0 0
      %2038 = vmatprep.subr.bf16.mxu0 0
      %2039 = vmatpush1.bf16.msra.mxu0 0
      %2040 = vmatprep.subr.bf16.mxu0 0
      %2041 = vmatpush1.bf16.msra.mxu0 0
      %2042 = vmatprep.subr.bf16.mxu0 0
      %2043 = vmatpush1.bf16.msra.mxu0 0
      %2044 = vmatprep.subr.bf16.mxu0 0
      %2045 = vmatpush1.bf16.msra.mxu0 0
      %2046 = vmatprep.subr.bf16.mxu0 0
      %2047 = vmatpush1.bf16.msra.mxu0 0
      %2048 = vmatprep.subr.bf16.mxu0 0
      %2049 = vmatpush1.bf16.msra.mxu0 0
      %2050 = vmatprep.subr.bf16.mxu0 0
      %2051 = vmatpush1.bf16.msra.mxu0 0
      %2052 = vmatprep.mubr.bf16.mxu0 0
      %2053 = vmatmul.mubr.bf16.gmra.mrb[0].mxu0 %v1932
      %v2054 = vpop.f32.mrb[0].mxu0
      %v2055 = vadd.f32 %v1710, %v2054
      %v2056 = vpop.f32.mrb[0].mxu0
      %v2057 = vadd.f32 %v1714, %v2056
      %v2058 = vpop.f32.mrb[0].mxu0
      %v2059 = vadd.f32 %v1710, %v2058
      %v2060 = vpop.f32.mrb[0].mxu0
      %v2061 = vadd.f32 %v1714, %v2060
      %2062 = vdwg.mxu0
      %2063 = vmatprep.subr.bf16.mxu0 %v1874
      %2064 = vmatpush1.bf16.msra.mxu0 %v1873
      %2065 = vmatprep.subr.bf16.mxu0 %v1890
      %2066 = vmatpush1.bf16.msra.mxu0 %v1889
      %2067 = vmatprep.subr.bf16.mxu0 0
      %2068 = vmatpush1.bf16.msra.mxu0 0
      %2069 = vmatprep.subr.bf16.mxu0 0
      %2070 = vmatpush1.bf16.msra.mxu0 0
      %2071 = vmatprep.subr.bf16.mxu0 0
      %2072 = vmatpush1.bf16.msra.mxu0 0
      %2073 = vmatprep.subr.bf16.mxu0 0
      %2074 = vmatpush1.bf16.msra.mxu0 0
      %2075 = vmatprep.subr.bf16.mxu0 0
      %2076 = vmatpush1.bf16.msra.mxu0 0
      %2077 = vmatprep.subr.bf16.mxu0 0
      %2078 = vmatpush1.bf16.msra.mxu0 0
      %2079 = vmatprep.subr.bf16.mxu0 0
      %2080 = vmatpush1.bf16.msra.mxu0 0
      %2081 = vmatprep.subr.bf16.mxu0 0
      %2082 = vmatpush1.bf16.msra.mxu0 0
      %2083 = vmatprep.subr.bf16.mxu0 0
      %2084 = vmatpush1.bf16.msra.mxu0 0
      %2085 = vmatprep.subr.bf16.mxu0 0
      %2086 = vmatpush1.bf16.msra.mxu0 0
      %2087 = vmatprep.subr.bf16.mxu0 0
      %2088 = vmatpush1.bf16.msra.mxu0 0
      %2089 = vmatprep.subr.bf16.mxu0 0
      %2090 = vmatpush1.bf16.msra.mxu0 0
      %2091 = vmatprep.subr.bf16.mxu0 0
      %2092 = vmatpush1.bf16.msra.mxu0 0
      %2093 = vmatprep.subr.bf16.mxu0 0
      %2094 = vmatpush1.bf16.msra.mxu0 0
      %2095 = vmatprep.mubr.bf16.mxu0 0
      %2096 = vmatmul.mubr.bf16.gmra.mrb[0].mxu0 %v1932
      %v2097 = vpop.f32.mrb[0].mxu0
      %v2098 = vadd.f32 %v1718, %v2097
      %v2099 = vpop.f32.mrb[0].mxu0
      %v2100 = vadd.f32 %v1722, %v2099
      %v2101 = vpop.f32.mrb[0].mxu0
      %v2102 = vadd.f32 %v1718, %v2101
      %v2103 = vpop.f32.mrb[0].mxu0
      %v2104 = vadd.f32 %v1722, %v2103
      %2105 = vdwg.mxu0
      %2106 = vmatprep.subr.bf16.mxu0 %v1876
      %2107 = vmatpush1.bf16.msra.mxu0 %v1875
      %2108 = vmatprep.subr.bf16.mxu0 %v1892
      %2109 = vmatpush1.bf16.msra.mxu0 %v1891
      %2110 = vmatprep.subr.bf16.mxu0 0
      %2111 = vmatpush1.bf16.msra.mxu0 0
      %2112 = vmatprep.subr.bf16.mxu0 0
      %2113 = vmatpush1.bf16.msra.mxu0 0
      %2114 = vmatprep.subr.bf16.mxu0 0
      %2115 = vmatpush1.bf16.msra.mxu0 0
      %2116 = vmatprep.subr.bf16.mxu0 0
      %2117 = vmatpush1.bf16.msra.mxu0 0
      %2118 = vmatprep.subr.bf16.mxu0 0
      %2119 = vmatpush1.bf16.msra.mxu0 0
      %2120 = vmatprep.subr.bf16.mxu0 0
      %2121 = vmatpush1.bf16.msra.mxu0 0
      %2122 = vmatprep.subr.bf16.mxu0 0
      %2123 = vmatpush1.bf16.msra.mxu0 0
      %2124 = vmatprep.subr.bf16.mxu0 0
      %2125 = vmatpush1.bf16.msra.mxu0 0
      %2126 = vmatprep.subr.bf16.mxu0 0
      %2127 = vmatpush1.bf16.msra.mxu0 0
      %2128 = vmatprep.subr.bf16.mxu0 0
      %2129 = vmatpush1.bf16.msra.mxu0 0
      %2130 = vmatprep.subr.bf16.mxu0 0
      %2131 = vmatpush1.bf16.msra.mxu0 0
      %2132 = vmatprep.subr.bf16.mxu0 0
      %2133 = vmatpush1.bf16.msra.mxu0 0
      %2134 = vmatprep.subr.bf16.mxu0 0
      %2135 = vmatpush1.bf16.msra.mxu0 0
      %2136 = vmatprep.subr.bf16.mxu0 0
      %2137 = vmatpush1.bf16.msra.mxu0 0
      %2138 = vmatprep.mubr.bf16.mxu0 0
      %2139 = vmatmul.mubr.bf16.gmra.mrb[0].mxu0 %v1932
      %v2140 = vpop.f32.mrb[0].mxu0
      %v2141 = vadd.f32 %v1726, %v2140
      %v2142 = vpop.f32.mrb[0].mxu0
      %v2143 = vadd.f32 %v1730, %v2142
      %v2144 = vpop.f32.mrb[0].mxu0
      %v2145 = vadd.f32 %v1726, %v2144
      %v2146 = vpop.f32.mrb[0].mxu0
      %v2147 = vadd.f32 %v1730, %v2146
      %2148 = vdwg.mxu0
      %2149 = vmatprep.subr.bf16.mxu0 %v1878
      %2150 = vmatpush1.bf16.msra.mxu0 %v1877
      %2151 = vmatprep.subr.bf16.mxu0 %v1894
      %2152 = vmatpush1.bf16.msra.mxu0 %v1893
      %2153 = vmatprep.subr.bf16.mxu0 0
      %2154 = vmatpush1.bf16.msra.mxu0 0
      %2155 = vmatprep.subr.bf16.mxu0 0
      %2156 = vmatpush1.bf16.msra.mxu0 0
      %2157 = vmatprep.subr.bf16.mxu0 0
      %2158 = vmatpush1.bf16.msra.mxu0 0
      %2159 = vmatprep.subr.bf16.mxu0 0
      %2160 = vmatpush1.bf16.msra.mxu0 0
      %2161 = vmatprep.subr.bf16.mxu0 0
      %2162 = vmatpush1.bf16.msra.mxu0 0
      %2163 = vmatprep.subr.bf16.mxu0 0
      %2164 = vmatpush1.bf16.msra.mxu0 0
      %2165 = vmatprep.subr.bf16.mxu0 0
      %2166 = vmatpush1.bf16.msra.mxu0 0
      %2167 = vmatprep.subr.bf16.mxu0 0
      %2168 = vmatpush1.bf16.msra.mxu0 0
      %2169 = vmatprep.subr.bf16.mxu0 0
      %2170 = vmatpush1.bf16.msra.mxu0 0
      %2171 = vmatprep.subr.bf16.mxu0 0
      %2172 = vmatpush1.bf16.msra.mxu0 0
      %2173 = vmatprep.subr.bf16.mxu0 0
      %2174 = vmatpush1.bf16.msra.mxu0 0
      %2175 = vmatprep.subr.bf16.mxu0 0
      %2176 = vmatpush1.bf16.msra.mxu0 0
      %2177 = vmatprep.subr.bf16.mxu0 0
      %2178 = vmatpush1.bf16.msra.mxu0 0
      %2179 = vmatprep.subr.bf16.mxu0 0
      %2180 = vmatpush1.bf16.msra.mxu0 0
      %2181 = vmatprep.mubr.bf16.mxu0 0
      %2182 = vmatmul.mubr.bf16.gmra.mrb[0].mxu0 %v1932
      %v2183 = vpop.f32.mrb[0].mxu0
      %v2184 = vadd.f32 %v1734, %v2183
      %v2185 = vpop.f32.mrb[0].mxu0
      %v2186 = vadd.f32 %v1738, %v2185
      %v2187 = vpop.f32.mrb[0].mxu0
      %v2188 = vadd.f32 %v1734, %v2187
      %v2189 = vpop.f32.mrb[0].mxu0
      %v2190 = vadd.f32 %v1738, %v2189
      %2191 = vdwg.mxu0
      %2192 = vmatprep.subr.bf16.mxu0 %v1880
      %2193 = vmatpush1.bf16.msra.mxu0 %v1879
      %2194 = vmatprep.subr.bf16.mxu0 %v1896
      %2195 = vmatpush1.bf16.msra.mxu0 %v1895
      %2196 = vmatprep.subr.bf16.mxu0 0
      %2197 = vmatpush1.bf16.msra.mxu0 0
      %2198 = vmatprep.subr.bf16.mxu0 0
      %2199 = vmatpush1.bf16.msra.mxu0 0
      %2200 = vmatprep.subr.bf16.mxu0 0
      %2201 = vmatpush1.bf16.msra.mxu0 0
      %2202 = vmatprep.subr.bf16.mxu0 0
      %2203 = vmatpush1.bf16.msra.mxu0 0
      %2204 = vmatprep.subr.bf16.mxu0 0
      %2205 = vmatpush1.bf16.msra.mxu0 0
      %2206 = vmatprep.subr.bf16.mxu0 0
      %2207 = vmatpush1.bf16.msra.mxu0 0
      %2208 = vmatprep.subr.bf16.mxu0 0
      %2209 = vmatpush1.bf16.msra.mxu0 0
      %2210 = vmatprep.subr.bf16.mxu0 0
      %2211 = vmatpush1.bf16.msra.mxu0 0
      %2212 = vmatprep.subr.bf16.mxu0 0
      %2213 = vmatpush1.bf16.msra.mxu0 0
      %2214 = vmatprep.subr.bf16.mxu0 0
      %2215 = vmatpush1.bf16.msra.mxu0 0
      %2216 = vmatprep.subr.bf16.mxu0 0
      %2217 = vmatpush1.bf16.msra.mxu0 0
      %2218 = vmatprep.subr.bf16.mxu0 0
      %2219 = vmatpush1.bf16.msra.mxu0 0
      %2220 = vmatprep.subr.bf16.mxu0 0
      %2221 = vmatpush1.bf16.msra.mxu0 0
      %2222 = vmatprep.subr.bf16.mxu0 0
      %2223 = vmatpush1.bf16.msra.mxu0 0
      %2224 = vmatprep.mubr.bf16.mxu0 0
      %2225 = vmatmul.mubr.bf16.gmra.mrb[0].mxu0 %v1932
      %v2226 = vpop.f32.mrb[0].mxu0
      %v2227 = vadd.f32 %v1742, %v2226
      %v2228 = vpop.f32.mrb[0].mxu0
      %v2229 = vadd.f32 %v1746, %v2228
      %v2230 = vpop.f32.mrb[0].mxu0
      %v2231 = vadd.f32 %v1742, %v2230
      %v2232 = vpop.f32.mrb[0].mxu0
      %v2233 = vadd.f32 %v1746, %v2232
      %2234 = vdwg.mxu0
      %2235 = vmatprep.subr.bf16.mxu0 %v1882
      %2236 = vmatpush1.bf16.msra.mxu0 %v1881
      %2237 = vmatprep.subr.bf16.mxu0 %v1898
      %2238 = vmatpush1.bf16.msra.mxu0 %v1897
      %2239 = vmatprep.subr.bf16.mxu0 0
      %2240 = vmatpush1.bf16.msra.mxu0 0
      %2241 = vmatprep.subr.bf16.mxu0 0
      %2242 = vmatpush1.bf16.msra.mxu0 0
      %2243 = vmatprep.subr.bf16.mxu0 0
      %2244 = vmatpush1.bf16.msra.mxu0 0
      %2245 = vmatprep.subr.bf16.mxu0 0
      %2246 = vmatpush1.bf16.msra.mxu0 0
      %2247 = vmatprep.subr.bf16.mxu0 0
      %2248 = vmatpush1.bf16.msra.mxu0 0
      %2249 = vmatprep.subr.bf16.mxu0 0
      %2250 = vmatpush1.bf16.msra.mxu0 0
      %2251 = vmatprep.subr.bf16.mxu0 0
      %2252 = vmatpush1.bf16.msra.mxu0 0
      %2253 = vmatprep.subr.bf16.mxu0 0
      %2254 = vmatpush1.bf16.msra.mxu0 0
      %2255 = vmatprep.subr.bf16.mxu0 0
      %2256 = vmatpush1.bf16.msra.mxu0 0
      %2257 = vmatprep.subr.bf16.mxu0 0
      %2258 = vmatpush1.bf16.msra.mxu0 0
      %2259 = vmatprep.subr.bf16.mxu0 0
      %2260 = vmatpush1.bf16.msra.mxu0 0
      %2261 = vmatprep.subr.bf16.mxu0 0
      %2262 = vmatpush1.bf16.msra.mxu0 0
      %2263 = vmatprep.subr.bf16.mxu0 0
      %2264 = vmatpush1.bf16.msra.mxu0 0
      %2265 = vmatprep.subr.bf16.mxu0 0
      %2266 = vmatpush1.bf16.msra.mxu0 0
      %2267 = vmatprep.mubr.bf16.mxu0 0
      %2268 = vmatmul.mubr.bf16.gmra.mrb[0].mxu0 %v1932
      %v2269 = vpop.f32.mrb[0].mxu0
      %v2270 = vadd.f32 %v1750, %v2269
      %v2271 = vpop.f32.mrb[0].mxu0
      %v2272 = vadd.f32 %v1754, %v2271
      %v2273 = vpop.f32.mrb[0].mxu0
      %v2274 = vadd.f32 %v1750, %v2273
      %v2275 = vpop.f32.mrb[0].mxu0
      %v2276 = vadd.f32 %v1754, %v2275
      %2277 = vdwg.mxu0
      %v2278 = vmax.f32 %v1969, 0.0
      %v2279 = vmax.f32 %v1971, 0.0
      %v2280 = vmax.f32 %v2012, 0.0
      %v2281 = vmax.f32 %v2014, 0.0
      %v2282 = vmax.f32 %v2055, 0.0
      %v2283 = vmax.f32 %v2057, 0.0
      %v2284 = vmax.f32 %v2098, 0.0
      %v2285 = vmax.f32 %v2100, 0.0
      %v2286 = vmax.f32 %v2141, 0.0
      %v2287 = vmax.f32 %v2143, 0.0
      %v2288 = vmax.f32 %v2184, 0.0
      %v2289 = vmax.f32 %v2186, 0.0
      %v2290 = vmax.f32 %v2227, 0.0
      %v2291 = vmax.f32 %v2229, 0.0
      %v2292 = vmax.f32 %v2270, 0.0
      %v2293 = vmax.f32 %v2272, 0.0
      %v2294 = vmax.f32 %v1973, 0.0
      %v2295 = vmax.f32 %v1975, 0.0
      %v2296 = vmax.f32 %v2016, 0.0
      %v2297 = vmax.f32 %v2018, 0.0
      %v2298 = vmax.f32 %v2059, 0.0
      %v2299 = vmax.f32 %v2061, 0.0
      %v2300 = vmax.f32 %v2102, 0.0
      %v2301 = vmax.f32 %v2104, 0.0
      %v2302 = vmax.f32 %v2145, 0.0
      %v2303 = vmax.f32 %v2147, 0.0
      %v2304 = vmax.f32 %v2188, 0.0
      %v2305 = vmax.f32 %v2190, 0.0
      %v2306 = vmax.f32 %v2231, 0.0
      %v2307 = vmax.f32 %v2233, 0.0
      %v2308 = vmax.f32 %v2274, 0.0
      %v2309 = vmax.f32 %v2276, 0.0
      %v2310 = vpack.c.bf16 %v2294, %v2278
      %v2311 = vpack.c.bf16 %v2295, %v2279
      %v2312 = vpack.c.bf16 %v2296, %v2280
      %v2313 = vpack.c.bf16 %v2297, %v2281
      %v2314 = vpack.c.bf16 %v2298, %v2282
      %v2315 = vpack.c.bf16 %v2299, %v2283
      %v2316 = vpack.c.bf16 %v2300, %v2284
      %v2317 = vpack.c.bf16 %v2301, %v2285
      %v2318 = vpack.c.bf16 %v2302, %v2286
      %v2319 = vpack.c.bf16 %v2303, %v2287
      %v2320 = vpack.c.bf16 %v2304, %v2288
      %v2321 = vpack.c.bf16 %v2305, %v2289
      %v2322 = vpack.c.bf16 %v2306, %v2290
      %v2323 = vpack.c.bf16 %v2307, %v2291
      %v2324 = vpack.c.bf16 %v2308, %v2292
      %v2325 = vpack.c.bf16 %v2309, %v2293
      %v2326 = vld [vmem:[%s1200] sm:$0xf]
      %v2327 = vld [vmem:[%s1200 + $0x4] sm:$0xf]
      %v2328 = vld [vmem:[%s1200 + $0x8] sm:$0xf]
      %v2329 = vld [vmem:[%s1200 + $0xc] sm:$0xf]
      %v2330 = vld [vmem:[%s1200 + $0x10] sm:$0xf]
      %v2331 = vld [vmem:[%s1200 + $0x14] sm:$0xf]
      %v2332 = vld [vmem:[%s1200 + $0x18] sm:$0xf]
      %v2333 = vld [vmem:[%s1200 + $0x1c] sm:$0xf]
      %v2334 = vld [vmem:[%s1200 + $0x20] sm:$0xf]
      %v2335 = vld [vmem:[%s1200 + $0x24] sm:$0xf]
      %v2336 = vld [vmem:[%s1200 + $0x28] sm:$0xf]
      %v2337 = vld [vmem:[%s1200 + $0x2c] sm:$0xf]
      %v2338 = vld [vmem:[%s1200 + $0x30] sm:$0xf]
      %v2339 = vld [vmem:[%s1200 + $0x34] sm:$0xf]
      %v2340 = vld [vmem:[%s1200 + $0x38] sm:$0xf]
      %v2341 = vld [vmem:[%s1200 + $0x3c] sm:$0xf]
      %v2342 = vld [vmem:[%s1200 + $0x40] sm:$0xf]
      %v2343 = vld [vmem:[%s1200 + $0x44] sm:$0xf]
      %v2344 = vld [vmem:[%s1200 + $0x48] sm:$0xf]
      %v2345 = vld [vmem:[%s1200 + $0x4c] sm:$0xf]
      %v2346 = vld [vmem:[%s1200 + $0x50] sm:$0xf]
      %v2347 = vld [vmem:[%s1200 + $0x54] sm:$0xf]
      %v2348 = vld [vmem:[%s1200 + $0x58] sm:$0xf]
      %v2349 = vld [vmem:[%s1200 + $0x5c] sm:$0xf]
      %v2350 = vld [vmem:[%s1200 + $0x60] sm:$0xf]
      %v2351 = vld [vmem:[%s1200 + $0x64] sm:$0xf]
      %v2352 = vld [vmem:[%s1200 + $0x68] sm:$0xf]
      %v2353 = vld [vmem:[%s1200 + $0x6c] sm:$0xf]
      %v2354 = vld [vmem:[%s1200 + $0x70] sm:$0xf]
      %v2355 = vld [vmem:[%s1200 + $0x74] sm:$0xf]
      %v2356 = vld [vmem:[%s1200 + $0x78] sm:$0xf]
      %v2357 = vld [vmem:[%s1200 + $0x7c] sm:$0xf]
      %v2358 = vld [vmem:[%s1200 + $0x80] sm:$0xf]
      %v2359 = vld [vmem:[%s1200 + $0x84] sm:$0xf]
      %v2360 = vld [vmem:[%s1200 + $0x88] sm:$0xf]
      %v2361 = vld [vmem:[%s1200 + $0x8c] sm:$0xf]
      %v2362 = vld [vmem:[%s1200 + $0x90] sm:$0xf]
      %v2363 = vld [vmem:[%s1200 + $0x94] sm:$0xf]
      %v2364 = vld [vmem:[%s1200 + $0x98] sm:$0xf]
      %v2365 = vld [vmem:[%s1200 + $0x9c] sm:$0xf]
      %v2366 = vld [vmem:[%s1200 + $0xa0] sm:$0xf]
      %v2367 = vld [vmem:[%s1200 + $0xa4] sm:$0xf]
      %v2368 = vld [vmem:[%s1200 + $0xa8] sm:$0xf]
      %v2369 = vld [vmem:[%s1200 + $0xac] sm:$0xf]
      %v2370 = vld [vmem:[%s1200 + $0xb0] sm:$0xf]
      %v2371 = vld [vmem:[%s1200 + $0xb4] sm:$0xf]
      %v2372 = vld [vmem:[%s1200 + $0xb8] sm:$0xf]
      %v2373 = vld [vmem:[%s1200 + $0xbc] sm:$0xf]
      %v2374 = vld [vmem:[%s1200 + $0xc0] sm:$0xf]
      %v2375 = vld [vmem:[%s1200 + $0xc4] sm:$0xf]
      %v2376 = vld [vmem:[%s1200 + $0xc8] sm:$0xf]
      %v2377 = vld [vmem:[%s1200 + $0xcc] sm:$0xf]
      %v2378 = vld [vmem:[%s1200 + $0xd0] sm:$0xf]
      %v2379 = vld [vmem:[%s1200 + $0xd4] sm:$0xf]
      %v2380 = vld [vmem:[%s1200 + $0xd8] sm:$0xf]
      %v2381 = vld [vmem:[%s1200 + $0xdc] sm:$0xf]
      %v2382 = vld [vmem:[%s1200 + $0xe0] sm:$0xf]
      %v2383 = vld [vmem:[%s1200 + $0xe4] sm:$0xf]
      %v2384 = vld [vmem:[%s1200 + $0xe8] sm:$0xf]
      %v2385 = vld [vmem:[%s1200 + $0xec] sm:$0xf]
      %v2386 = vld [vmem:[%s1200 + $0xf0] sm:$0xf]
      %v2387 = vld [vmem:[%s1200 + $0xf4] sm:$0xf]
      %v2388 = vld [vmem:[%s1200 + $0xf8] sm:$0xf]
      %v2389 = vld [vmem:[%s1200 + $0xfc] sm:$0xf]
      %v2390 = vld [vmem:[%s1200 + $0x100] sm:$0xf]
      %v2391 = vld [vmem:[%s1200 + $0x104] sm:$0xf]
      %v2392 = vld [vmem:[%s1200 + $0x108] sm:$0xf]
      %v2393 = vld [vmem:[%s1200 + $0x10c] sm:$0xf]
      %v2394 = vld [vmem:[%s1200 + $0x110] sm:$0xf]
      %v2395 = vld [vmem:[%s1200 + $0x114] sm:$0xf]
      %v2396 = vld [vmem:[%s1200 + $0x118] sm:$0xf]
      %v2397 = vld [vmem:[%s1200 + $0x11c] sm:$0xf]
      %v2398 = vld [vmem:[%s1200 + $0x120] sm:$0xf]
      %v2399 = vld [vmem:[%s1200 + $0x124] sm:$0xf]
      %v2400 = vld [vmem:[%s1200 + $0x128] sm:$0xf]
      %v2401 = vld [vmem:[%s1200 + $0x12c] sm:$0xf]
      %v2402 = vld [vmem:[%s1200 + $0x130] sm:$0xf]
      %v2403 = vld [vmem:[%s1200 + $0x134] sm:$0xf]
      %v2404 = vld [vmem:[%s1200 + $0x138] sm:$0xf]
      %v2405 = vld [vmem:[%s1200 + $0x13c] sm:$0xf]
      %v2406 = vld [vmem:[%s1200 + $0x140] sm:$0xf]
      %v2407 = vld [vmem:[%s1200 + $0x144] sm:$0xf]
      %v2408 = vld [vmem:[%s1200 + $0x148] sm:$0xf]
      %v2409 = vld [vmem:[%s1200 + $0x14c] sm:$0xf]
      %v2410 = vld [vmem:[%s1200 + $0x150] sm:$0xf]
      %v2411 = vld [vmem:[%s1200 + $0x154] sm:$0xf]
      %v2412 = vld [vmem:[%s1200 + $0x158] sm:$0xf]
      %v2413 = vld [vmem:[%s1200 + $0x15c] sm:$0xf]
      %v2414 = vld [vmem:[%s1200 + $0x160] sm:$0xf]
      %v2415 = vld [vmem:[%s1200 + $0x164] sm:$0xf]
      %v2416 = vld [vmem:[%s1200 + $0x168] sm:$0xf]
      %v2417 = vld [vmem:[%s1200 + $0x16c] sm:$0xf]
      %v2418 = vld [vmem:[%s1200 + $0x170] sm:$0xf]
      %v2419 = vld [vmem:[%s1200 + $0x174] sm:$0xf]
      %v2420 = vld [vmem:[%s1200 + $0x178] sm:$0xf]
      %v2421 = vld [vmem:[%s1200 + $0x17c] sm:$0xf]
      %v2422 = vld [vmem:[%s1200 + $0x180] sm:$0xf]
      %v2423 = vld [vmem:[%s1200 + $0x184] sm:$0xf]
      %v2424 = vld [vmem:[%s1200 + $0x188] sm:$0xf]
      %v2425 = vld [vmem:[%s1200 + $0x18c] sm:$0xf]
      %v2426 = vld [vmem:[%s1200 + $0x190] sm:$0xf]
      %v2427 = vld [vmem:[%s1200 + $0x194] sm:$0xf]
      %v2428 = vld [vmem:[%s1200 + $0x198] sm:$0xf]
      %v2429 = vld [vmem:[%s1200 + $0x19c] sm:$0xf]
      %v2430 = vld [vmem:[%s1200 + $0x1a0] sm:$0xf]
      %v2431 = vld [vmem:[%s1200 + $0x1a4] sm:$0xf]
      %v2432 = vld [vmem:[%s1200 + $0x1a8] sm:$0xf]
      %v2433 = vld [vmem:[%s1200 + $0x1ac] sm:$0xf]
      %v2434 = vld [vmem:[%s1200 + $0x1b0] sm:$0xf]
      %v2435 = vld [vmem:[%s1200 + $0x1b4] sm:$0xf]
      %v2436 = vld [vmem:[%s1200 + $0x1b8] sm:$0xf]
      %v2437 = vld [vmem:[%s1200 + $0x1bc] sm:$0xf]
      %v2438 = vld [vmem:[%s1200 + $0x1c0] sm:$0xf]
      %v2439 = vld [vmem:[%s1200 + $0x1c4] sm:$0xf]
      %v2440 = vld [vmem:[%s1200 + $0x1c8] sm:$0xf]
      %v2441 = vld [vmem:[%s1200 + $0x1cc] sm:$0xf]
      %v2442 = vld [vmem:[%s1200 + $0x1d0] sm:$0xf]
      %v2443 = vld [vmem:[%s1200 + $0x1d4] sm:$0xf]
      %v2444 = vld [vmem:[%s1200 + $0x1d8] sm:$0xf]
      %v2445 = vld [vmem:[%s1200 + $0x1dc] sm:$0xf]
      %v2446 = vld [vmem:[%s1200 + $0x1e0] sm:$0xf]
      %v2447 = vld [vmem:[%s1200 + $0x1e4] sm:$0xf]
      %v2448 = vld [vmem:[%s1200 + $0x1e8] sm:$0xf]
      %v2449 = vld [vmem:[%s1200 + $0x1ec] sm:$0xf]
      %v2450 = vld [vmem:[%s1200 + $0x1f0] sm:$0xf]
      %v2451 = vld [vmem:[%s1200 + $0x1f4] sm:$0xf]
      %v2452 = vld [vmem:[%s1200 + $0x1f8] sm:$0xf]
      %v2453 = vld [vmem:[%s1200 + $0x1fc] sm:$0xf]
      %v2454 = vld [vmem:[%s1200 + $0x200] sm:$0xf]
      %v2455 = vld [vmem:[%s1200 + $0x204] sm:$0xf]
      %v2456 = vld [vmem:[%s1200 + $0x208] sm:$0xf]
      %v2457 = vld [vmem:[%s1200 + $0x20c] sm:$0xf]
      %v2458 = vld [vmem:[%s1200 + $0x210] sm:$0xf]
      %v2459 = vld [vmem:[%s1200 + $0x214] sm:$0xf]
      %v2460 = vld [vmem:[%s1200 + $0x218] sm:$0xf]
      %v2461 = vld [vmem:[%s1200 + $0x21c] sm:$0xf]
      %v2462 = vld [vmem:[%s1200 + $0x220] sm:$0xf]
      %v2463 = vld [vmem:[%s1200 + $0x224] sm:$0xf]
      %v2464 = vld [vmem:[%s1200 + $0x228] sm:$0xf]
      %v2465 = vld [vmem:[%s1200 + $0x22c] sm:$0xf]
      %v2466 = vld [vmem:[%s1200 + $0x230] sm:$0xf]
      %v2467 = vld [vmem:[%s1200 + $0x234] sm:$0xf]
      %v2468 = vld [vmem:[%s1200 + $0x238] sm:$0xf]
      %v2469 = vld [vmem:[%s1200 + $0x23c] sm:$0xf]
      %v2470 = vld [vmem:[%s1200 + $0x240] sm:$0xf]
      %v2471 = vld [vmem:[%s1200 + $0x244] sm:$0xf]
      %v2472 = vld [vmem:[%s1200 + $0x248] sm:$0xf]
      %v2473 = vld [vmem:[%s1200 + $0x24c] sm:$0xf]
      %v2474 = vld [vmem:[%s1200 + $0x250] sm:$0xf]
      %v2475 = vld [vmem:[%s1200 + $0x254] sm:$0xf]
      %v2476 = vld [vmem:[%s1200 + $0x258] sm:$0xf]
      %v2477 = vld [vmem:[%s1200 + $0x25c] sm:$0xf]
      %v2478 = vld [vmem:[%s1200 + $0x260] sm:$0xf]
      %v2479 = vld [vmem:[%s1200 + $0x264] sm:$0xf]
      %v2480 = vld [vmem:[%s1200 + $0x268] sm:$0xf]
      %v2481 = vld [vmem:[%s1200 + $0x26c] sm:$0xf]
      %v2482 = vld [vmem:[%s1200 + $0x270] sm:$0xf]
      %v2483 = vld [vmem:[%s1200 + $0x274] sm:$0xf]
      %v2484 = vld [vmem:[%s1200 + $0x278] sm:$0xf]
      %v2485 = vld [vmem:[%s1200 + $0x27c] sm:$0xf]
      %v2486 = vld [vmem:[%s1200 + $0x280] sm:$0xf]
      %v2487 = vld [vmem:[%s1200 + $0x284] sm:$0xf]
      %v2488 = vld [vmem:[%s1200 + $0x288] sm:$0xf]
      %v2489 = vld [vmem:[%s1200 + $0x28c] sm:$0xf]
      %v2490 = vld [vmem:[%s1200 + $0x290] sm:$0xf]
      %v2491 = vld [vmem:[%s1200 + $0x294] sm:$0xf]
      %v2492 = vld [vmem:[%s1200 + $0x298] sm:$0xf]
      %v2493 = vld [vmem:[%s1200 + $0x29c] sm:$0xf]
      %v2494 = vld [vmem:[%s1200 + $0x2a0] sm:$0xf]
      %v2495 = vld [vmem:[%s1200 + $0x2a4] sm:$0xf]
      %v2496 = vld [vmem:[%s1200 + $0x2a8] sm:$0xf]
      %v2497 = vld [vmem:[%s1200 + $0x2ac] sm:$0xf]
      %v2498 = vld [vmem:[%s1200 + $0x2b0] sm:$0xf]
      %v2499 = vld [vmem:[%s1200 + $0x2b4] sm:$0xf]
      %v2500 = vld [vmem:[%s1200 + $0x2b8] sm:$0xf]
      %v2501 = vld [vmem:[%s1200 + $0x2bc] sm:$0xf]
      %v2502 = vld [vmem:[%s1200 + $0x2c0] sm:$0xf]
      %v2503 = vld [vmem:[%s1200 + $0x2c4] sm:$0xf]
      %v2504 = vld [vmem:[%s1200 + $0x2c8] sm:$0xf]
      %v2505 = vld [vmem:[%s1200 + $0x2cc] sm:$0xf]
      %v2506 = vld [vmem:[%s1200 + $0x2d0] sm:$0xf]
      %v2507 = vld [vmem:[%s1200 + $0x2d4] sm:$0xf]
      %v2508 = vld [vmem:[%s1200 + $0x2d8] sm:$0xf]
      %v2509 = vld [vmem:[%s1200 + $0x2dc] sm:$0xf]
      %v2510 = vld [vmem:[%s1200 + $0x2e0] sm:$0xf]
      %v2511 = vld [vmem:[%s1200 + $0x2e4] sm:$0xf]
      %v2512 = vld [vmem:[%s1200 + $0x2e8] sm:$0xf]
      %v2513 = vld [vmem:[%s1200 + $0x2ec] sm:$0xf]
      %v2514 = vld [vmem:[%s1200 + $0x2f0] sm:$0xf]
      %v2515 = vld [vmem:[%s1200 + $0x2f4] sm:$0xf]
      %v2516 = vld [vmem:[%s1200 + $0x2f8] sm:$0xf]
      %v2517 = vld [vmem:[%s1200 + $0x2fc] sm:$0xf]
      %v2518 = vld [vmem:[%s1200 + $0x300] sm:$0xf]
      %v2519 = vld [vmem:[%s1200 + $0x304] sm:$0xf]
      %v2520 = vld [vmem:[%s1200 + $0x308] sm:$0xf]
      %v2521 = vld [vmem:[%s1200 + $0x30c] sm:$0xf]
      %v2522 = vld [vmem:[%s1200 + $0x310] sm:$0xf]
      %v2523 = vld [vmem:[%s1200 + $0x314] sm:$0xf]
      %v2524 = vld [vmem:[%s1200 + $0x318] sm:$0xf]
      %v2525 = vld [vmem:[%s1200 + $0x31c] sm:$0xf]
      %v2526 = vld [vmem:[%s1200 + $0x320] sm:$0xf]
      %v2527 = vld [vmem:[%s1200 + $0x324] sm:$0xf]
      %v2528 = vld [vmem:[%s1200 + $0x328] sm:$0xf]
      %v2529 = vld [vmem:[%s1200 + $0x32c] sm:$0xf]
      %v2530 = vld [vmem:[%s1200 + $0x330] sm:$0xf]
      %v2531 = vld [vmem:[%s1200 + $0x334] sm:$0xf]
      %v2532 = vld [vmem:[%s1200 + $0x338] sm:$0xf]
      %v2533 = vld [vmem:[%s1200 + $0x33c] sm:$0xf]
      %v2534 = vld [vmem:[%s1200 + $0x340] sm:$0xf]
      %v2535 = vld [vmem:[%s1200 + $0x344] sm:$0xf]
      %v2536 = vld [vmem:[%s1200 + $0x348] sm:$0xf]
      %v2537 = vld [vmem:[%s1200 + $0x34c] sm:$0xf]
      %v2538 = vld [vmem:[%s1200 + $0x350] sm:$0xf]
      %v2539 = vld [vmem:[%s1200 + $0x354] sm:$0xf]
      %v2540 = vld [vmem:[%s1200 + $0x358] sm:$0xf]
      %v2541 = vld [vmem:[%s1200 + $0x35c] sm:$0xf]
      %v2542 = vld [vmem:[%s1200 + $0x360] sm:$0xf]
      %v2543 = vld [vmem:[%s1200 + $0x364] sm:$0xf]
      %v2544 = vld [vmem:[%s1200 + $0x368] sm:$0xf]
      %v2545 = vld [vmem:[%s1200 + $0x36c] sm:$0xf]
      %v2546 = vld [vmem:[%s1200 + $0x370] sm:$0xf]
      %v2547 = vld [vmem:[%s1200 + $0x374] sm:$0xf]
      %v2548 = vld [vmem:[%s1200 + $0x378] sm:$0xf]
      %v2549 = vld [vmem:[%s1200 + $0x37c] sm:$0xf]
      %v2550 = vld [vmem:[%s1200 + $0x380] sm:$0xf]
      %v2551 = vld [vmem:[%s1200 + $0x384] sm:$0xf]
      %v2552 = vld [vmem:[%s1200 + $0x388] sm:$0xf]
      %v2553 = vld [vmem:[%s1200 + $0x38c] sm:$0xf]
      %v2554 = vld [vmem:[%s1200 + $0x390] sm:$0xf]
      %v2555 = vld [vmem:[%s1200 + $0x394] sm:$0xf]
      %v2556 = vld [vmem:[%s1200 + $0x398] sm:$0xf]
      %v2557 = vld [vmem:[%s1200 + $0x39c] sm:$0xf]
      %v2558 = vld [vmem:[%s1200 + $0x3a0] sm:$0xf]
      %v2559 = vld [vmem:[%s1200 + $0x3a4] sm:$0xf]
      %v2560 = vld [vmem:[%s1200 + $0x3a8] sm:$0xf]
      %v2561 = vld [vmem:[%s1200 + $0x3ac] sm:$0xf]
      %v2562 = vld [vmem:[%s1200 + $0x3b0] sm:$0xf]
      %v2563 = vld [vmem:[%s1200 + $0x3b4] sm:$0xf]
      %v2564 = vld [vmem:[%s1200 + $0x3b8] sm:$0xf]
      %v2565 = vld [vmem:[%s1200 + $0x3bc] sm:$0xf]
      %v2566 = vld [vmem:[%s1200 + $0x3c0] sm:$0xf]
      %v2567 = vld [vmem:[%s1200 + $0x3c4] sm:$0xf]
      %v2568 = vld [vmem:[%s1200 + $0x3c8] sm:$0xf]
      %v2569 = vld [vmem:[%s1200 + $0x3cc] sm:$0xf]
      %v2570 = vld [vmem:[%s1200 + $0x3d0] sm:$0xf]
      %v2571 = vld [vmem:[%s1200 + $0x3d4] sm:$0xf]
      %v2572 = vld [vmem:[%s1200 + $0x3d8] sm:$0xf]
      %v2573 = vld [vmem:[%s1200 + $0x3dc] sm:$0xf]
      %v2574 = vld [vmem:[%s1200 + $0x3e0] sm:$0xf]
      %v2575 = vld [vmem:[%s1200 + $0x3e4] sm:$0xf]
      %v2576 = vld [vmem:[%s1200 + $0x3e8] sm:$0xf]
      %v2577 = vld [vmem:[%s1200 + $0x3ec] sm:$0xf]
      %v2578 = vld [vmem:[%s1200 + $0x3f0] sm:$0xf]
      %v2579 = vld [vmem:[%s1200 + $0x3f4] sm:$0xf]
      %v2580 = vld [vmem:[%s1200 + $0x3f8] sm:$0xf]
      %v2581 = vld [vmem:[%s1200 + $0x3fc] sm:$0xf]
      %v2582 = vld [vmem:[%s1203] sm:$0x1]
      %v2584 = vlaneseq
      %v2585 = vshrl.u32 %v2584, 7
      %v2586 = vsub.s32 0, %v2585
      %v2587 = vrot.slane %v2582, %v2586
      %v2845 = vunpack.c.l.b16 %v2326
      %v2846 = vunpack.c.l.b16 %v2327
      %v2847 = vunpack.c.l.b16 %v2328
      %v2848 = vunpack.c.l.b16 %v2329
      %v2849 = vunpack.c.l.b16 %v2330
      %v2850 = vunpack.c.l.b16 %v2331
      %v2851 = vunpack.c.l.b16 %v2332
      %v2852 = vunpack.c.l.b16 %v2333
      %v2853 = vunpack.c.l.b16 %v2334
      %v2854 = vunpack.c.l.b16 %v2335
      %v2855 = vunpack.c.l.b16 %v2336
      %v2856 = vunpack.c.l.b16 %v2337
      %v2857 = vunpack.c.l.b16 %v2338
      %v2858 = vunpack.c.l.b16 %v2339
      %v2859 = vunpack.c.l.b16 %v2340
      %v2860 = vunpack.c.l.b16 %v2341
      %v2861 = vunpack.c.l.b16 %v2342
      %v2862 = vunpack.c.l.b16 %v2343
      %v2863 = vunpack.c.l.b16 %v2344
      %v2864 = vunpack.c.l.b16 %v2345
      %v2865 = vunpack.c.l.b16 %v2346
      %v2866 = vunpack.c.l.b16 %v2347
      %v2867 = vunpack.c.l.b16 %v2348
      %v2868 = vunpack.c.l.b16 %v2349
      %v2869 = vunpack.c.l.b16 %v2350
      %v2870 = vunpack.c.l.b16 %v2351
      %v2871 = vunpack.c.l.b16 %v2352
      %v2872 = vunpack.c.l.b16 %v2353
      %v2873 = vunpack.c.l.b16 %v2354
      %v2874 = vunpack.c.l.b16 %v2355
      %v2875 = vunpack.c.l.b16 %v2356
      %v2876 = vunpack.c.l.b16 %v2357
      %v2877 = vunpack.c.l.b16 %v2358
      %v2878 = vunpack.c.l.b16 %v2359
      %v2879 = vunpack.c.l.b16 %v2360
      %v2880 = vunpack.c.l.b16 %v2361
      %v2881 = vunpack.c.l.b16 %v2362
      %v2882 = vunpack.c.l.b16 %v2363
      %v2883 = vunpack.c.l.b16 %v2364
      %v2884 = vunpack.c.l.b16 %v2365
      %v2885 = vunpack.c.l.b16 %v2366
      %v2886 = vunpack.c.l.b16 %v2367
      %v2887 = vunpack.c.l.b16 %v2368
      %v2888 = vunpack.c.l.b16 %v2369
      %v2889 = vunpack.c.l.b16 %v2370
      %v2890 = vunpack.c.l.b16 %v2371
      %v2891 = vunpack.c.l.b16 %v2372
      %v2892 = vunpack.c.l.b16 %v2373
      %v2893 = vunpack.c.l.b16 %v2374
      %v2894 = vunpack.c.l.b16 %v2375
      %v2895 = vunpack.c.l.b16 %v2376
      %v2896 = vunpack.c.l.b16 %v2377
      %v2897 = vunpack.c.l.b16 %v2378
      %v2898 = vunpack.c.l.b16 %v2379
      %v2899 = vunpack.c.l.b16 %v2380
      %v2900 = vunpack.c.l.b16 %v2381
      %v2901 = vunpack.c.l.b16 %v2382
      %v2902 = vunpack.c.l.b16 %v2383
      %v2903 = vunpack.c.l.b16 %v2384
      %v2904 = vunpack.c.l.b16 %v2385
      %v2905 = vunpack.c.l.b16 %v2386
      %v2906 = vunpack.c.l.b16 %v2387
      %v2907 = vunpack.c.l.b16 %v2388
      %v2908 = vunpack.c.l.b16 %v2389
      %v2909 = vunpack.c.l.b16 %v2390
      %v2910 = vunpack.c.l.b16 %v2391
      %v2911 = vunpack.c.l.b16 %v2392
      %v2912 = vunpack.c.l.b16 %v2393
      %v2913 = vunpack.c.l.b16 %v2394
      %v2914 = vunpack.c.l.b16 %v2395
      %v2915 = vunpack.c.l.b16 %v2396
      %v2916 = vunpack.c.l.b16 %v2397
      %v2917 = vunpack.c.l.b16 %v2398
      %v2918 = vunpack.c.l.b16 %v2399
      %v2919 = vunpack.c.l.b16 %v2400
      %v2920 = vunpack.c.l.b16 %v2401
      %v2921 = vunpack.c.l.b16 %v2402
      %v2922 = vunpack.c.l.b16 %v2403
      %v2923 = vunpack.c.l.b16 %v2404
      %v2924 = vunpack.c.l.b16 %v2405
      %v2925 = vunpack.c.l.b16 %v2406
      %v2926 = vunpack.c.l.b16 %v2407
      %v2927 = vunpack.c.l.b16 %v2408
      %v2928 = vunpack.c.l.b16 %v2409
      %v2929 = vunpack.c.l.b16 %v2410
      %v2930 = vunpack.c.l.b16 %v2411
      %v2931 = vunpack.c.l.b16 %v2412
      %v2932 = vunpack.c.l.b16 %v2413
      %v2933 = vunpack.c.l.b16 %v2414
      %v2934 = vunpack.c.l.b16 %v2415
      %v2935 = vunpack.c.l.b16 %v2416
      %v2936 = vunpack.c.l.b16 %v2417
      %v2937 = vunpack.c.l.b16 %v2418
      %v2938 = vunpack.c.l.b16 %v2419
      %v2939 = vunpack.c.l.b16 %v2420
      %v2940 = vunpack.c.l.b16 %v2421
      %v2941 = vunpack.c.l.b16 %v2422
      %v2942 = vunpack.c.l.b16 %v2423
      %v2943 = vunpack.c.l.b16 %v2424
      %v2944 = vunpack.c.l.b16 %v2425
      %v2945 = vunpack.c.l.b16 %v2426
      %v2946 = vunpack.c.l.b16 %v2427
      %v2947 = vunpack.c.l.b16 %v2428
      %v2948 = vunpack.c.l.b16 %v2429
      %v2949 = vunpack.c.l.b16 %v2430
      %v2950 = vunpack.c.l.b16 %v2431
      %v2951 = vunpack.c.l.b16 %v2432
      %v2952 = vunpack.c.l.b16 %v2433
      %v2953 = vunpack.c.l.b16 %v2434
      %v2954 = vunpack.c.l.b16 %v2435
      %v2955 = vunpack.c.l.b16 %v2436
      %v2956 = vunpack.c.l.b16 %v2437
      %v2957 = vunpack.c.l.b16 %v2438
      %v2958 = vunpack.c.l.b16 %v2439
      %v2959 = vunpack.c.l.b16 %v2440
      %v2960 = vunpack.c.l.b16 %v2441
      %v2961 = vunpack.c.l.b16 %v2442
      %v2962 = vunpack.c.l.b16 %v2443
      %v2963 = vunpack.c.l.b16 %v2444
      %v2964 = vunpack.c.l.b16 %v2445
      %v2965 = vunpack.c.l.b16 %v2446
      %v2966 = vunpack.c.l.b16 %v2447
      %v2967 = vunpack.c.l.b16 %v2448
      %v2968 = vunpack.c.l.b16 %v2449
      %v2969 = vunpack.c.l.b16 %v2450
      %v2970 = vunpack.c.l.b16 %v2451
      %v2971 = vunpack.c.l.b16 %v2452
      %v2972 = vunpack.c.l.b16 %v2453
      %v2973 = vunpack.c.l.b16 %v2454
      %v2974 = vunpack.c.l.b16 %v2455
      %v2975 = vunpack.c.l.b16 %v2456
      %v2976 = vunpack.c.l.b16 %v2457
      %v2977 = vunpack.c.l.b16 %v2458
      %v2978 = vunpack.c.l.b16 %v2459
      %v2979 = vunpack.c.l.b16 %v2460
      %v2980 = vunpack.c.l.b16 %v2461
      %v2981 = vunpack.c.l.b16 %v2462
      %v2982 = vunpack.c.l.b16 %v2463
      %v2983 = vunpack.c.l.b16 %v2464
      %v2984 = vunpack.c.l.b16 %v2465
      %v2985 = vunpack.c.l.b16 %v2466
      %v2986 = vunpack.c.l.b16 %v2467
      %v2987 = vunpack.c.l.b16 %v2468
      %v2988 = vunpack.c.l.b16 %v2469
      %v2989 = vunpack.c.l.b16 %v2470
      %v2990 = vunpack.c.l.b16 %v2471
      %v2991 = vunpack.c.l.b16 %v2472
      %v2992 = vunpack.c.l.b16 %v2473
      %v2993 = vunpack.c.l.b16 %v2474
      %v2994 = vunpack.c.l.b16 %v2475
      %v2995 = vunpack.c.l.b16 %v2476
      %v2996 = vunpack.c.l.b16 %v2477
      %v2997 = vunpack.c.l.b16 %v2478
      %v2998 = vunpack.c.l.b16 %v2479
      %v2999 = vunpack.c.l.b16 %v2480
      %v3000 = vunpack.c.l.b16 %v2481
      %v3001 = vunpack.c.l.b16 %v2482
      %v3002 = vunpack.c.l.b16 %v2483
      %v3003 = vunpack.c.l.b16 %v2484
      %v3004 = vunpack.c.l.b16 %v2485
      %v3005 = vunpack.c.l.b16 %v2486
      %v3006 = vunpack.c.l.b16 %v2487
      %v3007 = vunpack.c.l.b16 %v2488
      %v3008 = vunpack.c.l.b16 %v2489
      %v3009 = vunpack.c.l.b16 %v2490
      %v3010 = vunpack.c.l.b16 %v2491
      %v3011 = vunpack.c.l.b16 %v2492
      %v3012 = vunpack.c.l.b16 %v2493
      %v3013 = vunpack.c.l.b16 %v2494
      %v3014 = vunpack.c.l.b16 %v2495
      %v3015 = vunpack.c.l.b16 %v2496
      %v3016 = vunpack.c.l.b16 %v2497
      %v3017 = vunpack.c.l.b16 %v2498
      %v3018 = vunpack.c.l.b16 %v2499
      %v3019 = vunpack.c.l.b16 %v2500
      %v3020 = vunpack.c.l.b16 %v2501
      %v3021 = vunpack.c.l.b16 %v2502
      %v3022 = vunpack.c.l.b16 %v2503
      %v3023 = vunpack.c.l.b16 %v2504
      %v3024 = vunpack.c.l.b16 %v2505
      %v3025 = vunpack.c.l.b16 %v2506
      %v3026 = vunpack.c.l.b16 %v2507
      %v3027 = vunpack.c.l.b16 %v2508
      %v3028 = vunpack.c.l.b16 %v2509
      %v3029 = vunpack.c.l.b16 %v2510
      %v3030 = vunpack.c.l.b16 %v2511
      %v3031 = vunpack.c.l.b16 %v2512
      %v3032 = vunpack.c.l.b16 %v2513
      %v3033 = vunpack.c.l.b16 %v2514
      %v3034 = vunpack.c.l.b16 %v2515
      %v3035 = vunpack.c.l.b16 %v2516
      %v3036 = vunpack.c.l.b16 %v2517
      %v3037 = vunpack.c.l.b16 %v2518
      %v3038 = vunpack.c.l.b16 %v2519
      %v3039 = vunpack.c.l.b16 %v2520
      %v3040 = vunpack.c.l.b16 %v2521
      %v3041 = vunpack.c.l.b16 %v2522
      %v3042 = vunpack.c.l.b16 %v2523
      %v3043 = vunpack.c.l.b16 %v2524
      %v3044 = vunpack.c.l.b16 %v2525
      %v3045 = vunpack.c.l.b16 %v2526
      %v3046 = vunpack.c.l.b16 %v2527
      %v3047 = vunpack.c.l.b16 %v2528
      %v3048 = vunpack.c.l.b16 %v2529
      %v3049 = vunpack.c.l.b16 %v2530
      %v3050 = vunpack.c.l.b16 %v2531
      %v3051 = vunpack.c.l.b16 %v2532
      %v3052 = vunpack.c.l.b16 %v2533
      %v3053 = vunpack.c.l.b16 %v2534
      %v3054 = vunpack.c.l.b16 %v2535
      %v3055 = vunpack.c.l.b16 %v2536
      %v3056 = vunpack.c.l.b16 %v2537
      %v3057 = vunpack.c.l.b16 %v2538
      %v3058 = vunpack.c.l.b16 %v2539
      %v3059 = vunpack.c.l.b16 %v2540
      %v3060 = vunpack.c.l.b16 %v2541
      %v3061 = vunpack.c.l.b16 %v2542
      %v3062 = vunpack.c.l.b16 %v2543
      %v3063 = vunpack.c.l.b16 %v2544
      %v3064 = vunpack.c.l.b16 %v2545
      %v3065 = vunpack.c.l.b16 %v2546
      %v3066 = vunpack.c.l.b16 %v2547
      %v3067 = vunpack.c.l.b16 %v2548
      %v3068 = vunpack.c.l.b16 %v2549
      %v3069 = vunpack.c.l.b16 %v2550
      %v3070 = vunpack.c.l.b16 %v2551
      %v3071 = vunpack.c.l.b16 %v2552
      %v3072 = vunpack.c.l.b16 %v2553
      %v3073 = vunpack.c.l.b16 %v2554
      %v3074 = vunpack.c.l.b16 %v2555
      %v3075 = vunpack.c.l.b16 %v2556
      %v3076 = vunpack.c.l.b16 %v2557
      %v3077 = vunpack.c.l.b16 %v2558
      %v3078 = vunpack.c.l.b16 %v2559
      %v3079 = vunpack.c.l.b16 %v2560
      %v3080 = vunpack.c.l.b16 %v2561
      %v3081 = vunpack.c.l.b16 %v2562
      %v3082 = vunpack.c.l.b16 %v2563
      %v3083 = vunpack.c.l.b16 %v2564
      %v3084 = vunpack.c.l.b16 %v2565
      %v3085 = vunpack.c.l.b16 %v2566
      %v3086 = vunpack.c.l.b16 %v2567
      %v3087 = vunpack.c.l.b16 %v2568
      %v3088 = vunpack.c.l.b16 %v2569
      %v3089 = vunpack.c.l.b16 %v2570
      %v3090 = vunpack.c.l.b16 %v2571
      %v3091 = vunpack.c.l.b16 %v2572
      %v3092 = vunpack.c.l.b16 %v2573
      %v3093 = vunpack.c.l.b16 %v2574
      %v3094 = vunpack.c.l.b16 %v2575
      %v3095 = vunpack.c.l.b16 %v2576
      %v3096 = vunpack.c.l.b16 %v2577
      %v3097 = vunpack.c.l.b16 %v2578
      %v3098 = vunpack.c.l.b16 %v2579
      %v3099 = vunpack.c.l.b16 %v2580
      %v3100 = vunpack.c.l.b16 %v2581
      %v3101 = vpack.c.b16 %v2846, %v2845
      %v3102 = vpack.c.b16 %v2848, %v2847
      %v3103 = vpack.c.b16 %v2850, %v2849
      %v3104 = vpack.c.b16 %v2852, %v2851
      %v3105 = vpack.c.b16 %v2854, %v2853
      %v3106 = vpack.c.b16 %v2856, %v2855
      %v3107 = vpack.c.b16 %v2858, %v2857
      %v3108 = vpack.c.b16 %v2860, %v2859
      %v3109 = vpack.c.b16 %v2862, %v2861
      %v3110 = vpack.c.b16 %v2864, %v2863
      %v3111 = vpack.c.b16 %v2866, %v2865
      %v3112 = vpack.c.b16 %v2868, %v2867
      %v3113 = vpack.c.b16 %v2870, %v2869
      %v3114 = vpack.c.b16 %v2872, %v2871
      %v3115 = vpack.c.b16 %v2874, %v2873
      %v3116 = vpack.c.b16 %v2876, %v2875
      %v3117 = vpack.c.b16 %v2878, %v2877
      %v3118 = vpack.c.b16 %v2880, %v2879
      %v3119 = vpack.c.b16 %v2882, %v2881
      %v3120 = vpack.c.b16 %v2884, %v2883
      %v3121 = vpack.c.b16 %v2886, %v2885
      %v3122 = vpack.c.b16 %v2888, %v2887
      %v3123 = vpack.c.b16 %v2890, %v2889
      %v3124 = vpack.c.b16 %v2892, %v2891
      %v3125 = vpack.c.b16 %v2894, %v2893
      %v3126 = vpack.c.b16 %v2896, %v2895
      %v3127 = vpack.c.b16 %v2898, %v2897
      %v3128 = vpack.c.b16 %v2900, %v2899
      %v3129 = vpack.c.b16 %v2902, %v2901
      %v3130 = vpack.c.b16 %v2904, %v2903
      %v3131 = vpack.c.b16 %v2906, %v2905
      %v3132 = vpack.c.b16 %v2908, %v2907
      %v3133 = vpack.c.b16 %v2910, %v2909
      %v3134 = vpack.c.b16 %v2912, %v2911
      %v3135 = vpack.c.b16 %v2914, %v2913
      %v3136 = vpack.c.b16 %v2916, %v2915
      %v3137 = vpack.c.b16 %v2918, %v2917
      %v3138 = vpack.c.b16 %v2920, %v2919
      %v3139 = vpack.c.b16 %v2922, %v2921
      %v3140 = vpack.c.b16 %v2924, %v2923
      %v3141 = vpack.c.b16 %v2926, %v2925
      %v3142 = vpack.c.b16 %v2928, %v2927
      %v3143 = vpack.c.b16 %v2930, %v2929
      %v3144 = vpack.c.b16 %v2932, %v2931
      %v3145 = vpack.c.b16 %v2934, %v2933
      %v3146 = vpack.c.b16 %v2936, %v2935
      %v3147 = vpack.c.b16 %v2938, %v2937
      %v3148 = vpack.c.b16 %v2940, %v2939
      %v3149 = vpack.c.b16 %v2942, %v2941
      %v3150 = vpack.c.b16 %v2944, %v2943
      %v3151 = vpack.c.b16 %v2946, %v2945
      %v3152 = vpack.c.b16 %v2948, %v2947
      %v3153 = vpack.c.b16 %v2950, %v2949
      %v3154 = vpack.c.b16 %v2952, %v2951
      %v3155 = vpack.c.b16 %v2954, %v2953
      %v3156 = vpack.c.b16 %v2956, %v2955
      %v3157 = vpack.c.b16 %v2958, %v2957
      %v3158 = vpack.c.b16 %v2960, %v2959
      %v3159 = vpack.c.b16 %v2962, %v2961
      %v3160 = vpack.c.b16 %v2964, %v2963
      %v3161 = vpack.c.b16 %v2966, %v2965
      %v3162 = vpack.c.b16 %v2968, %v2967
      %v3163 = vpack.c.b16 %v2970, %v2969
      %v3164 = vpack.c.b16 %v2972, %v2971
      %v3165 = vpack.c.b16 %v2974, %v2973
      %v3166 = vpack.c.b16 %v2976, %v2975
      %v3167 = vpack.c.b16 %v2978, %v2977
      %v3168 = vpack.c.b16 %v2980, %v2979
      %v3169 = vpack.c.b16 %v2982, %v2981
      %v3170 = vpack.c.b16 %v2984, %v2983
      %v3171 = vpack.c.b16 %v2986, %v2985
      %v3172 = vpack.c.b16 %v2988, %v2987
      %v3173 = vpack.c.b16 %v2990, %v2989
      %v3174 = vpack.c.b16 %v2992, %v2991
      %v3175 = vpack.c.b16 %v2994, %v2993
      %v3176 = vpack.c.b16 %v2996, %v2995
      %v3177 = vpack.c.b16 %v2998, %v2997
      %v3178 = vpack.c.b16 %v3000, %v2999
      %v3179 = vpack.c.b16 %v3002, %v3001
      %v3180 = vpack.c.b16 %v3004, %v3003
      %v3181 = vpack.c.b16 %v3006, %v3005
      %v3182 = vpack.c.b16 %v3008, %v3007
      %v3183 = vpack.c.b16 %v3010, %v3009
      %v3184 = vpack.c.b16 %v3012, %v3011
      %v3185 = vpack.c.b16 %v3014, %v3013
      %v3186 = vpack.c.b16 %v3016, %v3015
      %v3187 = vpack.c.b16 %v3018, %v3017
      %v3188 = vpack.c.b16 %v3020, %v3019
      %v3189 = vpack.c.b16 %v3022, %v3021
      %v3190 = vpack.c.b16 %v3024, %v3023
      %v3191 = vpack.c.b16 %v3026, %v3025
      %v3192 = vpack.c.b16 %v3028, %v3027
      %v3193 = vpack.c.b16 %v3030, %v3029
      %v3194 = vpack.c.b16 %v3032, %v3031
      %v3195 = vpack.c.b16 %v3034, %v3033
      %v3196 = vpack.c.b16 %v3036, %v3035
      %v3197 = vpack.c.b16 %v3038, %v3037
      %v3198 = vpack.c.b16 %v3040, %v3039
      %v3199 = vpack.c.b16 %v3042, %v3041
      %v3200 = vpack.c.b16 %v3044, %v3043
      %v3201 = vpack.c.b16 %v3046, %v3045
      %v3202 = vpack.c.b16 %v3048, %v3047
      %v3203 = vpack.c.b16 %v3050, %v3049
      %v3204 = vpack.c.b16 %v3052, %v3051
      %v3205 = vpack.c.b16 %v3054, %v3053
      %v3206 = vpack.c.b16 %v3056, %v3055
      %v3207 = vpack.c.b16 %v3058, %v3057
      %v3208 = vpack.c.b16 %v3060, %v3059
      %v3209 = vpack.c.b16 %v3062, %v3061
      %v3210 = vpack.c.b16 %v3064, %v3063
      %v3211 = vpack.c.b16 %v3066, %v3065
      %v3212 = vpack.c.b16 %v3068, %v3067
      %v3213 = vpack.c.b16 %v3070, %v3069
      %v3214 = vpack.c.b16 %v3072, %v3071
      %v3215 = vpack.c.b16 %v3074, %v3073
      %v3216 = vpack.c.b16 %v3076, %v3075
      %v3217 = vpack.c.b16 %v3078, %v3077
      %v3218 = vpack.c.b16 %v3080, %v3079
      %v3219 = vpack.c.b16 %v3082, %v3081
      %v3220 = vpack.c.b16 %v3084, %v3083
      %v3221 = vpack.c.b16 %v3086, %v3085
      %v3222 = vpack.c.b16 %v3088, %v3087
      %v3223 = vpack.c.b16 %v3090, %v3089
      %v3224 = vpack.c.b16 %v3092, %v3091
      %v3225 = vpack.c.b16 %v3094, %v3093
      %v3226 = vpack.c.b16 %v3096, %v3095
      %v3227 = vpack.c.b16 %v3098, %v3097
      %v3228 = vpack.c.b16 %v3100, %v3099
      %3357 = vmatprep.subr.bf16.mxu0 0
      %3358 = vmatpush1.bf16.msra.mxu0 %v3101
      %3359 = vmatprep.subr.bf16.mxu0 0
      %3360 = vmatpush1.bf16.msra.mxu0 %v3102
      %3361 = vmatprep.subr.bf16.mxu0 0
      %3362 = vmatpush1.bf16.msra.mxu0 %v3103
      %3363 = vmatprep.subr.bf16.mxu0 0
      %3364 = vmatpush1.bf16.msra.mxu0 %v3104
      %3365 = vmatprep.subr.bf16.mxu0 0
      %3366 = vmatpush1.bf16.msra.mxu0 %v3105
      %3367 = vmatprep.subr.bf16.mxu0 0
      %3368 = vmatpush1.bf16.msra.mxu0 %v3106
      %3369 = vmatprep.subr.bf16.mxu0 0
      %3370 = vmatpush1.bf16.msra.mxu0 %v3107
      %3371 = vmatprep.subr.bf16.mxu0 0
      %3372 = vmatpush1.bf16.msra.mxu0 %v3108
      %3373 = vmatprep.subr.bf16.mxu0 0
      %3374 = vmatpush1.bf16.msra.mxu0 %v3109
      %3375 = vmatprep.subr.bf16.mxu0 0
      %3376 = vmatpush1.bf16.msra.mxu0 %v3110
      %3377 = vmatprep.subr.bf16.mxu0 0
      %3378 = vmatpush1.bf16.msra.mxu0 %v3111
      %3379 = vmatprep.subr.bf16.mxu0 0
      %3380 = vmatpush1.bf16.msra.mxu0 %v3112
      %3381 = vmatprep.subr.bf16.mxu0 0
      %3382 = vmatpush1.bf16.msra.mxu0 %v3113
      %3383 = vmatprep.subr.bf16.mxu0 0
      %3384 = vmatpush1.bf16.msra.mxu0 %v3114
      %3385 = vmatprep.subr.bf16.mxu0 0
      %3386 = vmatpush1.bf16.msra.mxu0 %v3115
      %3387 = vmatprep.subr.bf16.mxu0 0
      %3388 = vmatpush1.bf16.msra.mxu0 %v3116
      %3389 = vmatprep.mubr.bf16.mxu0 %v2311
      %3390 = vmatmul.mubr.bf16.gmra.mrb[0].mxu0 %v2310
      %v3391 = vpop.f32.mrb[0].mxu0
      %v3392 = vadd.f32 %v2587, %v3391
      %v3393 = vpop.f32.mrb[0].mxu0
      %v3394 = vpop.f32.mrb[0].mxu0
      %v3395 = vadd.f32 %v2587, %v3394
      %v3396 = vpop.f32.mrb[0].mxu0
      %3397 = vdwg.mxu0
      %3398 = vmatprep.subr.bf16.mxu0 0
      %3399 = vmatpush1.bf16.msra.mxu0 %v3117
      %3400 = vmatprep.subr.bf16.mxu0 0
      %3401 = vmatpush1.bf16.msra.mxu0 %v3118
      %3402 = vmatprep.subr.bf16.mxu0 0
      %3403 = vmatpush1.bf16.msra.mxu0 %v3119
      %3404 = vmatprep.subr.bf16.mxu0 0
      %3405 = vmatpush1.bf16.msra.mxu0 %v3120
      %3406 = vmatprep.subr.bf16.mxu0 0
      %3407 = vmatpush1.bf16.msra.mxu0 %v3121
      %3408 = vmatprep.subr.bf16.mxu0 0
      %3409 = vmatpush1.bf16.msra.mxu0 %v3122
      %3410 = vmatprep.subr.bf16.mxu0 0
      %3411 = vmatpush1.bf16.msra.mxu0 %v3123
      %3412 = vmatprep.subr.bf16.mxu0 0
      %3413 = vmatpush1.bf16.msra.mxu0 %v3124
      %3414 = vmatprep.subr.bf16.mxu0 0
      %3415 = vmatpush1.bf16.msra.mxu0 %v3125
      %3416 = vmatprep.subr.bf16.mxu0 0
      %3417 = vmatpush1.bf16.msra.mxu0 %v3126
      %3418 = vmatprep.subr.bf16.mxu0 0
      %3419 = vmatpush1.bf16.msra.mxu0 %v3127
      %3420 = vmatprep.subr.bf16.mxu0 0
      %3421 = vmatpush1.bf16.msra.mxu0 %v3128
      %3422 = vmatprep.subr.bf16.mxu0 0
      %3423 = vmatpush1.bf16.msra.mxu0 %v3129
      %3424 = vmatprep.subr.bf16.mxu0 0
      %3425 = vmatpush1.bf16.msra.mxu0 %v3130
      %3426 = vmatprep.subr.bf16.mxu0 0
      %3427 = vmatpush1.bf16.msra.mxu0 %v3131
      %3428 = vmatprep.subr.bf16.mxu0 0
      %3429 = vmatpush1.bf16.msra.mxu0 %v3132
      %3430 = vmatprep.mubr.bf16.mxu0 %v2313
      %3431 = vmatmul.mubr.bf16.gmra.mrb[0].mxu0 %v2312
      %v3432 = vpop.f32.mrb[0].mxu0
      %v3433 = vadd.f32 %v3392, %v3432
      %v3434 = vpop.f32.mrb[0].mxu0
      %v3435 = vpop.f32.mrb[0].mxu0
      %v3436 = vadd.f32 %v3395, %v3435
      %v3437 = vpop.f32.mrb[0].mxu0
      %3438 = vdwg.mxu0
      %3439 = vmatprep.subr.bf16.mxu0 0
      %3440 = vmatpush1.bf16.msra.mxu0 %v3133
      %3441 = vmatprep.subr.bf16.mxu0 0
      %3442 = vmatpush1.bf16.msra.mxu0 %v3134
      %3443 = vmatprep.subr.bf16.mxu0 0
      %3444 = vmatpush1.bf16.msra.mxu0 %v3135
      %3445 = vmatprep.subr.bf16.mxu0 0
      %3446 = vmatpush1.bf16.msra.mxu0 %v3136
      %3447 = vmatprep.subr.bf16.mxu0 0
      %3448 = vmatpush1.bf16.msra.mxu0 %v3137
      %3449 = vmatprep.subr.bf16.mxu0 0
      %3450 = vmatpush1.bf16.msra.mxu0 %v3138
      %3451 = vmatprep.subr.bf16.mxu0 0
      %3452 = vmatpush1.bf16.msra.mxu0 %v3139
      %3453 = vmatprep.subr.bf16.mxu0 0
      %3454 = vmatpush1.bf16.msra.mxu0 %v3140
      %3455 = vmatprep.subr.bf16.mxu0 0
      %3456 = vmatpush1.bf16.msra.mxu0 %v3141
      %3457 = vmatprep.subr.bf16.mxu0 0
      %3458 = vmatpush1.bf16.msra.mxu0 %v3142
      %3459 = vmatprep.subr.bf16.mxu0 0
      %3460 = vmatpush1.bf16.msra.mxu0 %v3143
      %3461 = vmatprep.subr.bf16.mxu0 0
      %3462 = vmatpush1.bf16.msra.mxu0 %v3144
      %3463 = vmatprep.subr.bf16.mxu0 0
      %3464 = vmatpush1.bf16.msra.mxu0 %v3145
      %3465 = vmatprep.subr.bf16.mxu0 0
      %3466 = vmatpush1.bf16.msra.mxu0 %v3146
      %3467 = vmatprep.subr.bf16.mxu0 0
      %3468 = vmatpush1.bf16.msra.mxu0 %v3147
      %3469 = vmatprep.subr.bf16.mxu0 0
      %3470 = vmatpush1.bf16.msra.mxu0 %v3148
      %3471 = vmatprep.mubr.bf16.mxu0 %v2315
      %3472 = vmatmul.mubr.bf16.gmra.mrb[0].mxu0 %v2314
      %v3473 = vpop.f32.mrb[0].mxu0
      %v3474 = vadd.f32 %v3433, %v3473
      %v3475 = vpop.f32.mrb[0].mxu0
      %v3476 = vpop.f32.mrb[0].mxu0
      %v3477 = vadd.f32 %v3436, %v3476
      %v3478 = vpop.f32.mrb[0].mxu0
      %3479 = vdwg.mxu0
      %3480 = vmatprep.subr.bf16.mxu0 0
      %3481 = vmatpush1.bf16.msra.mxu0 %v3149
      %3482 = vmatprep.subr.bf16.mxu0 0
      %3483 = vmatpush1.bf16.msra.mxu0 %v3150
      %3484 = vmatprep.subr.bf16.mxu0 0
      %3485 = vmatpush1.bf16.msra.mxu0 %v3151
      %3486 = vmatprep.subr.bf16.mxu0 0
      %3487 = vmatpush1.bf16.msra.mxu0 %v3152
      %3488 = vmatprep.subr.bf16.mxu0 0
      %3489 = vmatpush1.bf16.msra.mxu0 %v3153
      %3490 = vmatprep.subr.bf16.mxu0 0
      %3491 = vmatpush1.bf16.msra.mxu0 %v3154
      %3492 = vmatprep.subr.bf16.mxu0 0
      %3493 = vmatpush1.bf16.msra.mxu0 %v3155
      %3494 = vmatprep.subr.bf16.mxu0 0
      %3495 = vmatpush1.bf16.msra.mxu0 %v3156
      %3496 = vmatprep.subr.bf16.mxu0 0
      %3497 = vmatpush1.bf16.msra.mxu0 %v3157
      %3498 = vmatprep.subr.bf16.mxu0 0
      %3499 = vmatpush1.bf16.msra.mxu0 %v3158
      %3500 = vmatprep.subr.bf16.mxu0 0
      %3501 = vmatpush1.bf16.msra.mxu0 %v3159
      %3502 = vmatprep.subr.bf16.mxu0 0
      %3503 = vmatpush1.bf16.msra.mxu0 %v3160
      %3504 = vmatprep.subr.bf16.mxu0 0
      %3505 = vmatpush1.bf16.msra.mxu0 %v3161
      %3506 = vmatprep.subr.bf16.mxu0 0
      %3507 = vmatpush1.bf16.msra.mxu0 %v3162
      %3508 = vmatprep.subr.bf16.mxu0 0
      %3509 = vmatpush1.bf16.msra.mxu0 %v3163
      %3510 = vmatprep.subr.bf16.mxu0 0
      %3511 = vmatpush1.bf16.msra.mxu0 %v3164
      %3512 = vmatprep.mubr.bf16.mxu0 %v2317
      %3513 = vmatmul.mubr.bf16.gmra.mrb[0].mxu0 %v2316
      %v3514 = vpop.f32.mrb[0].mxu0
      %v3515 = vadd.f32 %v3474, %v3514
      %v3516 = vpop.f32.mrb[0].mxu0
      %v3517 = vpop.f32.mrb[0].mxu0
      %v3518 = vadd.f32 %v3477, %v3517
      %v3519 = vpop.f32.mrb[0].mxu0
      %3520 = vdwg.mxu0
      %3521 = vmatprep.subr.bf16.mxu0 0
      %3522 = vmatpush1.bf16.msra.mxu0 %v3165
      %3523 = vmatprep.subr.bf16.mxu0 0
      %3524 = vmatpush1.bf16.msra.mxu0 %v3166
      %3525 = vmatprep.subr.bf16.mxu0 0
      %3526 = vmatpush1.bf16.msra.mxu0 %v3167
      %3527 = vmatprep.subr.bf16.mxu0 0
      %3528 = vmatpush1.bf16.msra.mxu0 %v3168
      %3529 = vmatprep.subr.bf16.mxu0 0
      %3530 = vmatpush1.bf16.msra.mxu0 %v3169
      %3531 = vmatprep.subr.bf16.mxu0 0
      %3532 = vmatpush1.bf16.msra.mxu0 %v3170
      %3533 = vmatprep.subr.bf16.mxu0 0
      %3534 = vmatpush1.bf16.msra.mxu0 %v3171
      %3535 = vmatprep.subr.bf16.mxu0 0
      %3536 = vmatpush1.bf16.msra.mxu0 %v3172
      %3537 = vmatprep.subr.bf16.mxu0 0
      %3538 = vmatpush1.bf16.msra.mxu0 %v3173
      %3539 = vmatprep.subr.bf16.mxu0 0
      %3540 = vmatpush1.bf16.msra.mxu0 %v3174
      %3541 = vmatprep.subr.bf16.mxu0 0
      %3542 = vmatpush1.bf16.msra.mxu0 %v3175
      %3543 = vmatprep.subr.bf16.mxu0 0
      %3544 = vmatpush1.bf16.msra.mxu0 %v3176
      %3545 = vmatprep.subr.bf16.mxu0 0
      %3546 = vmatpush1.bf16.msra.mxu0 %v3177
      %3547 = vmatprep.subr.bf16.mxu0 0
      %3548 = vmatpush1.bf16.msra.mxu0 %v3178
      %3549 = vmatprep.subr.bf16.mxu0 0
      %3550 = vmatpush1.bf16.msra.mxu0 %v3179
      %3551 = vmatprep.subr.bf16.mxu0 0
      %3552 = vmatpush1.bf16.msra.mxu0 %v3180
      %3553 = vmatprep.mubr.bf16.mxu0 %v2319
      %3554 = vmatmul.mubr.bf16.gmra.mrb[0].mxu0 %v2318
      %v3555 = vpop.f32.mrb[0].mxu0
      %v3556 = vadd.f32 %v3515, %v3555
      %v3557 = vpop.f32.mrb[0].mxu0
      %v3558 = vpop.f32.mrb[0].mxu0
      %v3559 = vadd.f32 %v3518, %v3558
      %v3560 = vpop.f32.mrb[0].mxu0
      %3561 = vdwg.mxu0
      %3562 = vmatprep.subr.bf16.mxu0 0
      %3563 = vmatpush1.bf16.msra.mxu0 %v3181
      %3564 = vmatprep.subr.bf16.mxu0 0
      %3565 = vmatpush1.bf16.msra.mxu0 %v3182
      %3566 = vmatprep.subr.bf16.mxu0 0
      %3567 = vmatpush1.bf16.msra.mxu0 %v3183
      %3568 = vmatprep.subr.bf16.mxu0 0
      %3569 = vmatpush1.bf16.msra.mxu0 %v3184
      %3570 = vmatprep.subr.bf16.mxu0 0
      %3571 = vmatpush1.bf16.msra.mxu0 %v3185
      %3572 = vmatprep.subr.bf16.mxu0 0
      %3573 = vmatpush1.bf16.msra.mxu0 %v3186
      %3574 = vmatprep.subr.bf16.mxu0 0
      %3575 = vmatpush1.bf16.msra.mxu0 %v3187
      %3576 = vmatprep.subr.bf16.mxu0 0
      %3577 = vmatpush1.bf16.msra.mxu0 %v3188
      %3578 = vmatprep.subr.bf16.mxu0 0
      %3579 = vmatpush1.bf16.msra.mxu0 %v3189
      %3580 = vmatprep.subr.bf16.mxu0 0
      %3581 = vmatpush1.bf16.msra.mxu0 %v3190
      %3582 = vmatprep.subr.bf16.mxu0 0
      %3583 = vmatpush1.bf16.msra.mxu0 %v3191
      %3584 = vmatprep.subr.bf16.mxu0 0
      %3585 = vmatpush1.bf16.msra.mxu0 %v3192
      %3586 = vmatprep.subr.bf16.mxu0 0
      %3587 = vmatpush1.bf16.msra.mxu0 %v3193
      %3588 = vmatprep.subr.bf16.mxu0 0
      %3589 = vmatpush1.bf16.msra.mxu0 %v3194
      %3590 = vmatprep.subr.bf16.mxu0 0
      %3591 = vmatpush1.bf16.msra.mxu0 %v3195
      %3592 = vmatprep.subr.bf16.mxu0 0
      %3593 = vmatpush1.bf16.msra.mxu0 %v3196
      %3594 = vmatprep.mubr.bf16.mxu0 %v2321
      %3595 = vmatmul.mubr.bf16.gmra.mrb[0].mxu0 %v2320
      %v3596 = vpop.f32.mrb[0].mxu0
      %v3597 = vadd.f32 %v3556, %v3596
      %v3598 = vpop.f32.mrb[0].mxu0
      %v3599 = vpop.f32.mrb[0].mxu0
      %v3600 = vadd.f32 %v3559, %v3599
      %v3601 = vpop.f32.mrb[0].mxu0
      %3602 = vdwg.mxu0
      %3603 = vmatprep.subr.bf16.mxu0 0
      %3604 = vmatpush1.bf16.msra.mxu0 %v3197
      %3605 = vmatprep.subr.bf16.mxu0 0
      %3606 = vmatpush1.bf16.msra.mxu0 %v3198
      %3607 = vmatprep.subr.bf16.mxu0 0
      %3608 = vmatpush1.bf16.msra.mxu0 %v3199
      %3609 = vmatprep.subr.bf16.mxu0 0
      %3610 = vmatpush1.bf16.msra.mxu0 %v3200
      %3611 = vmatprep.subr.bf16.mxu0 0
      %3612 = vmatpush1.bf16.msra.mxu0 %v3201
      %3613 = vmatprep.subr.bf16.mxu0 0
      %3614 = vmatpush1.bf16.msra.mxu0 %v3202
      %3615 = vmatprep.subr.bf16.mxu0 0
      %3616 = vmatpush1.bf16.msra.mxu0 %v3203
      %3617 = vmatprep.subr.bf16.mxu0 0
      %3618 = vmatpush1.bf16.msra.mxu0 %v3204
      %3619 = vmatprep.subr.bf16.mxu0 0
      %3620 = vmatpush1.bf16.msra.mxu0 %v3205
      %3621 = vmatprep.subr.bf16.mxu0 0
      %3622 = vmatpush1.bf16.msra.mxu0 %v3206
      %3623 = vmatprep.subr.bf16.mxu0 0
      %3624 = vmatpush1.bf16.msra.mxu0 %v3207
      %3625 = vmatprep.subr.bf16.mxu0 0
      %3626 = vmatpush1.bf16.msra.mxu0 %v3208
      %3627 = vmatprep.subr.bf16.mxu0 0
      %3628 = vmatpush1.bf16.msra.mxu0 %v3209
      %3629 = vmatprep.subr.bf16.mxu0 0
      %3630 = vmatpush1.bf16.msra.mxu0 %v3210
      %3631 = vmatprep.subr.bf16.mxu0 0
      %3632 = vmatpush1.bf16.msra.mxu0 %v3211
      %3633 = vmatprep.subr.bf16.mxu0 0
      %3634 = vmatpush1.bf16.msra.mxu0 %v3212
      %3635 = vmatprep.mubr.bf16.mxu0 %v2323
      %3636 = vmatmul.mubr.bf16.gmra.mrb[0].mxu0 %v2322
      %v3637 = vpop.f32.mrb[0].mxu0
      %v3638 = vadd.f32 %v3597, %v3637
      %v3639 = vpop.f32.mrb[0].mxu0
      %v3640 = vpop.f32.mrb[0].mxu0
      %v3641 = vadd.f32 %v3600, %v3640
      %v3642 = vpop.f32.mrb[0].mxu0
      %3643 = vdwg.mxu0
      %3644 = vmatprep.subr.bf16.mxu0 0
      %3645 = vmatpush1.bf16.msra.mxu0 %v3213
      %3646 = vmatprep.subr.bf16.mxu0 0
      %3647 = vmatpush1.bf16.msra.mxu0 %v3214
      %3648 = vmatprep.subr.bf16.mxu0 0
      %3649 = vmatpush1.bf16.msra.mxu0 %v3215
      %3650 = vmatprep.subr.bf16.mxu0 0
      %3651 = vmatpush1.bf16.msra.mxu0 %v3216
      %3652 = vmatprep.subr.bf16.mxu0 0
      %3653 = vmatpush1.bf16.msra.mxu0 %v3217
      %3654 = vmatprep.subr.bf16.mxu0 0
      %3655 = vmatpush1.bf16.msra.mxu0 %v3218
      %3656 = vmatprep.subr.bf16.mxu0 0
      %3657 = vmatpush1.bf16.msra.mxu0 %v3219
      %3658 = vmatprep.subr.bf16.mxu0 0
      %3659 = vmatpush1.bf16.msra.mxu0 %v3220
      %3660 = vmatprep.subr.bf16.mxu0 0
      %3661 = vmatpush1.bf16.msra.mxu0 %v3221
      %3662 = vmatprep.subr.bf16.mxu0 0
      %3663 = vmatpush1.bf16.msra.mxu0 %v3222
      %3664 = vmatprep.subr.bf16.mxu0 0
      %3665 = vmatpush1.bf16.msra.mxu0 %v3223
      %3666 = vmatprep.subr.bf16.mxu0 0
      %3667 = vmatpush1.bf16.msra.mxu0 %v3224
      %3668 = vmatprep.subr.bf16.mxu0 0
      %3669 = vmatpush1.bf16.msra.mxu0 %v3225
      %3670 = vmatprep.subr.bf16.mxu0 0
      %3671 = vmatpush1.bf16.msra.mxu0 %v3226
      %3672 = vmatprep.subr.bf16.mxu0 0
      %3673 = vmatpush1.bf16.msra.mxu0 %v3227
      %3674 = vmatprep.subr.bf16.mxu0 0
      %3675 = vmatpush1.bf16.msra.mxu0 %v3228
      %3676 = vmatprep.mubr.bf16.mxu0 %v2325
      %3677 = vmatmul.mubr.bf16.gmra.mrb[0].mxu0 %v2324
      %v3678 = vpop.f32.mrb[0].mxu0
      %v3679 = vadd.f32 %v3638, %v3678
      %v3680 = vpop.f32.mrb[0].mxu0
      %v3681 = vpop.f32.mrb[0].mxu0
      %v3682 = vadd.f32 %v3641, %v3681
      %v3683 = vpop.f32.mrb[0].mxu0
      %3684 = vdwg.mxu0
      %v3685 = vadd.f32 %v1652, %v3679
      %v3686 = vadd.f32 %v1653, %v3682
      %v3687 = vsel %vm1339, %v3685, 0.0
      %3688 = vadd.xlane.f32.xlu0 %v3687
      %v3689 = vpop.xlane.xlu0 %3688
      %v3690 = vsel %vm1339, %v3686, 0.0
      %3691 = vadd.xlane.f32.xlu0 %v3690
      %v3692 = vpop.xlane.xlu0 %3691
      %v3693 = vmul.f32 %v3689, %v1588
      %v3694 = vmul.f32 %v3692, %v1588
      %v3695 = vmul.f32 %v3685, %v3685
      %v3696 = vmul.f32 %v3686, %v3686
      %v3697 = vsel %vm1339, %v3695, 0.0
      %3698 = vadd.xlane.f32.xlu0 %v3697
      %v3699 = vpop.xlane.xlu0 %3698
      %v3700 = vsel %vm1339, %v3696, 0.0
      %3701 = vadd.xlane.f32.xlu0 %v3700
      %v3702 = vpop.xlane.xlu0 %3701
      %v3703 = vmul.f32 %v3699, %v1588
      %v3704 = vmul.f32 %v3702, %v1588
      %v3705 = vmul.f32 %v3693, %v3693
      %v3706 = vmul.f32 %v3694, %v3694
      %v3707 = vsub.f32 %v3703, %v3705
      %v3708 = vsub.f32 %v3704, %v3706
      %v3709 = vmax.f32 %v3707, 0.0
      %v3710 = vmax.f32 %v3708, 0.0
      %3712 = vset.pattern.permute.xlu0 0
      %3713 = vperm.xlu0 %3712, %v3693
      %v3714 = vpop.permute.xlu0 %3713
      %3717 = vset.pattern.permute.xlu0 0
      %3718 = vperm.xlu0 %3717, %v3694
      %v3719 = vpop.permute.xlu0 %3718
      %v3721 = vsub.f32 %v3685, %v3714
      %v3722 = vsub.f32 %v3686, %v3719
      %v3723 = vadd.f32 %v3709, 1e-05
      %v3724 = vadd.f32 %v3710, 1e-05
      %v3725 = vrsqrt.pop %v3723
      %v3726 = vrsqrt.pop %v3724
      %3728 = vset.pattern.permute.xlu0 0
      %3729 = vperm.xlu0 %3728, %v3725
      %v3730 = vpop.permute.xlu0 %3729
      %3733 = vset.pattern.permute.xlu0 0
      %3734 = vperm.xlu0 %3733, %v3726
      %v3735 = vpop.permute.xlu0 %3734
      %v3737 = vmul.f32 %v3721, %v3730
      %v3738 = vmul.f32 %v3722, %v3735
      %v3739 = vld [vmem:[%s1206] sm:$0x1]
      %v3741 = vlaneseq
      %v3742 = vshrl.u32 %v3741, 7
      %v3743 = vsub.s32 0, %v3742
      %v3744 = vrot.slane %v3739, %v3743
      %v3746 = vmul.f32 %v3737, %v3744
      %v3747 = vmul.f32 %v3738, %v3744
      %v3748 = vld [vmem:[%s1209] sm:$0x1]
      %v3750 = vlaneseq
      %v3751 = vshrl.u32 %v3750, 7
      %v3752 = vsub.s32 0, %v3751
      %v3753 = vrot.slane %v3748, %v3752
      %v3755 = vadd.f32 %v3746, %v3753
      %v3756 = vadd.f32 %v3747, %v3753
      %v3757 = vpack.c.bf16 %v3756, %v3755
      %v3758 = vld [vmem:[%s1214] sm:$0xf]
      %v3759 = vld [vmem:[%s1214 + $0x4] sm:$0xf]
      %v3760 = vld [vmem:[%s1214 + $0x8] sm:$0xf]
      %v3761 = vld [vmem:[%s1214 + $0xc] sm:$0xf]
      %v3762 = vld [vmem:[%s1217] sm:$0x1]
      %v3764 = vlaneseq
      %v3765 = vshrl.u32 %v3764, 7
      %v3766 = vsub.s32 0, %v3765
      %v3767 = vrot.slane %v3762, %v3766
      %v3773 = vunpack.c.l.b16 %v3758
      %v3774 = vunpack.c.l.b16 %v3759
      %v3775 = vunpack.c.l.b16 %v3760
      %v3776 = vunpack.c.l.b16 %v3761
      %v3777 = vpack.c.b16 %v3774, %v3773
      %v3778 = vpack.c.b16 %v3776, %v3775
      %v3782 = vsel %vm1339, %v3757, 0
      %3784 = vmatprep.subr.bf16.mxu0 0
      %3785 = vmatpush1.bf16.msra.mxu0 %v3777
      %3786 = vmatprep.subr.bf16.mxu0 0
      %3787 = vmatpush1.bf16.msra.mxu0 %v3778
      %3788 = vmatprep.subr.bf16.mxu0 0
      %3789 = vmatpush1.bf16.msra.mxu0 0
      %3790 = vmatprep.subr.bf16.mxu0 0
      %3791 = vmatpush1.bf16.msra.mxu0 0
      %3792 = vmatprep.subr.bf16.mxu0 0
      %3793 = vmatpush1.bf16.msra.mxu0 0
      %3794 = vmatprep.subr.bf16.mxu0 0
      %3795 = vmatpush1.bf16.msra.mxu0 0
      %3796 = vmatprep.subr.bf16.mxu0 0
      %3797 = vmatpush1.bf16.msra.mxu0 0
      %3798 = vmatprep.subr.bf16.mxu0 0
      %3799 = vmatpush1.bf16.msra.mxu0 0
      %3800 = vmatprep.subr.bf16.mxu0 0
      %3801 = vmatpush1.bf16.msra.mxu0 0
      %3802 = vmatprep.subr.bf16.mxu0 0
      %3803 = vmatpush1.bf16.msra.mxu0 0
      %3804 = vmatprep.subr.bf16.mxu0 0
      %3805 = vmatpush1.bf16.msra.mxu0 0
      %3806 = vmatprep.subr.bf16.mxu0 0
      %3807 = vmatpush1.bf16.msra.mxu0 0
      %3808 = vmatprep.subr.bf16.mxu0 0
      %3809 = vmatpush1.bf16.msra.mxu0 0
      %3810 = vmatprep.subr.bf16.mxu0 0
      %3811 = vmatpush1.bf16.msra.mxu0 0
      %3812 = vmatprep.subr.bf16.mxu0 0
      %3813 = vmatpush1.bf16.msra.mxu0 0
      %3814 = vmatprep.subr.bf16.mxu0 0
      %3815 = vmatpush1.bf16.msra.mxu0 0
      %3816 = vmatprep.mubr.bf16.mxu0 0
      %3817 = vmatmul.mubr.bf16.gmra.mrb[0].mxu0 %v3782
      %v3818 = vpop.f32.mrb[0].mxu0
      %v3819 = vadd.f32 %v3767, %v3818
      %v3820 = vpop.f32.mrb[0].mxu0
      %v3821 = vpop.f32.mrb[0].mxu0
      %v3822 = vadd.f32 %v3767, %v3821
      %v3823 = vpop.f32.mrb[0].mxu0
      %3824 = vdwg.mxu0
      %v3825 = vpack.c.bf16 %v3822, %v3819
      %v3826 = vld [vmem:[%s1222] sm:$0xf]
      %v3827 = vld [vmem:[%s1222 + $0x4] sm:$0xf]
      %v3828 = vld [vmem:[%s1222 + $0x8] sm:$0xf]
      %v3829 = vld [vmem:[%s1222 + $0xc] sm:$0xf]
      %v3834 = vunpack.c.l.b16 %v3826
      %v3835 = vunpack.c.l.b16 %v3827
      %v3836 = vunpack.c.l.b16 %v3828
      %v3837 = vunpack.c.l.b16 %v3829
      %v3838 = vpack.c.b16 %v3835, %v3834
      %v3839 = vpack.c.b16 %v3837, %v3836
      %v3843 = vsel %vm1339, %v3825, 0
      %3845 = vmatprep.subr.bf16.mxu0 0
      %3846 = vmatpush1.bf16.msra.mxu0 %v3838
      %3847 = vmatprep.subr.bf16.mxu0 0
      %3848 = vmatpush1.bf16.msra.mxu0 %v3839
      %3849 = vmatprep.subr.bf16.mxu0 0
      %3850 = vmatpush1.bf16.msra.mxu0 0
      %3851 = vmatprep.subr.bf16.mxu0 0
      %3852 = vmatpush1.bf16.msra.mxu0 0
      %3853 = vmatprep.subr.bf16.mxu0 0
      %3854 = vmatpush1.bf16.msra.mxu0 0
      %3855 = vmatprep.subr.bf16.mxu0 0
      %3856 = vmatpush1.bf16.msra.mxu0 0
      %3857 = vmatprep.subr.bf16.mxu0 0
      %3858 = vmatpush1.bf16.msra.mxu0 0
      %3859 = vmatprep.subr.bf16.mxu0 0
      %3860 = vmatpush1.bf16.msra.mxu0 0
      %3861 = vmatprep.subr.bf16.mxu0 0
      %3862 = vmatpush1.bf16.msra.mxu0 0
      %3863 = vmatprep.subr.bf16.mxu0 0
      %3864 = vmatpush1.bf16.msra.mxu0 0
      %3865 = vmatprep.subr.bf16.mxu0 0
      %3866 = vmatpush1.bf16.msra.mxu0 0
      %3867 = vmatprep.subr.bf16.mxu0 0
      %3868 = vmatpush1.bf16.msra.mxu0 0
      %3869 = vmatprep.subr.bf16.mxu0 0
      %3870 = vmatpush1.bf16.msra.mxu0 0
      %3871 = vmatprep.subr.bf16.mxu0 0
      %3872 = vmatpush1.bf16.msra.mxu0 0
      %3873 = vmatprep.subr.bf16.mxu0 0
      %3874 = vmatpush1.bf16.msra.mxu0 0
      %3875 = vmatprep.subr.bf16.mxu0 0
      %3876 = vmatpush1.bf16.msra.mxu0 0
      %3877 = vmatprep.mubr.bf16.mxu0 0
      %3878 = vmatmul.mubr.bf16.gmra.mrb[0].mxu0 %v3843
      %v3879 = vpop.f32.mrb[0].mxu0
      %v3880 = vadd.f32 0.0, %v3879
      %v3881 = vpop.f32.mrb[0].mxu0
      %v3882 = vpop.f32.mrb[0].mxu0
      %v3883 = vadd.f32 0.0, %v3882
      %v3884 = vpop.f32.mrb[0].mxu0
      %3885 = vdwg.mxu0
      %v3886 = vpack.c.bf16 %v3883, %v3880
      %v3888 = vsel %vm1339, %v3886, 0
      %3890 = vmatprep.subr.bf16.mxu0 0
      %3891 = vmatpush1.bf16.xpose.msra.mxu0 %v3888
      %3892 = vmatprep.subr.bf16.mxu0 0
      %3893 = vmatpush1.bf16.xpose.msra.mxu0 0
      %3894 = vmatprep.subr.bf16.mxu0 0
      %3895 = vmatpush1.bf16.xpose.msra.mxu0 0
      %3896 = vmatprep.subr.bf16.mxu0 0
      %3897 = vmatpush1.bf16.xpose.msra.mxu0 0
      %3898 = vmatprep.subr.bf16.mxu0 0
      %3899 = vmatpush1.bf16.xpose.msra.mxu0 0
      %3900 = vmatprep.subr.bf16.mxu0 0
      %3901 = vmatpush1.bf16.xpose.msra.mxu0 0
      %3902 = vmatprep.subr.bf16.mxu0 0
      %3903 = vmatpush1.bf16.xpose.msra.mxu0 0
      %3904 = vmatprep.subr.bf16.mxu0 0
      %3905 = vmatpush1.bf16.xpose.msra.mxu0 0
      %3906 = vmatprep.subr.bf16.mxu0 0
      %3907 = vmatpush1.bf16.xpose.msra.mxu0 0
      %3908 = vmatprep.subr.bf16.mxu0 0
      %3909 = vmatpush1.bf16.xpose.msra.mxu0 0
      %3910 = vmatprep.subr.bf16.mxu0 0
      %3911 = vmatpush1.bf16.xpose.msra.mxu0 0
      %3912 = vmatprep.subr.bf16.mxu0 0
      %3913 = vmatpush1.bf16.xpose.msra.mxu0 0
      %3914 = vmatprep.subr.bf16.mxu0 0
      %3915 = vmatpush1.bf16.xpose.msra.mxu0 0
      %3916 = vmatprep.subr.bf16.mxu0 0
      %3917 = vmatpush1.bf16.xpose.msra.mxu0 0
      %3918 = vmatprep.subr.bf16.mxu0 0
      %3919 = vmatpush1.bf16.xpose.msra.mxu0 0
      %3920 = vmatprep.subr.bf16.mxu0 0
      %3921 = vmatpush1.bf16.xpose.msra.mxu0 0
      %3922 = vmatprep.mubr.bf16.mxu0 0
      %3923 = vmatmul.mubr.bf16.gmra.mrb[0].mxu0 %v3843
      %v3924 = vpop.f32.mrb[0].mxu0
      %v3925 = vadd.f32 0.0, %v3924
      %v3926 = vpop.f32.mrb[0].mxu0
      %v3927 = vpop.f32.mrb[0].mxu0
      %v3928 = vadd.f32 0.0, %v3927
      %v3929 = vpop.f32.mrb[0].mxu0
      %3930 = vdwg.mxu0
      %v3931 = vsel %vm1313, %v3925, -1e+30
      %v3932 = vsel %vm1314, %v3928, -1e+30
      %v3933 = vsel %vm1437, %v3931, -inf
      %v3934 = vsel %vm1437, %v3932, -inf
      %v3935 = vmax.f32 %v3933, %v3934
      %v3936 = vrot.slane %v3935, 4
      %v3937 = vmax.f32 %v3935, %v3936
      %v3938 = vrot.slane %v3937, 2
      %v3939 = vmax.f32 %v3937, %v3938
      %v3940 = vrot.slane %v3939, 1
      %v3941 = vmax.f32 %v3939, %v3940
      %v3942 = vsub.f32 %v3931, %v3941
      %v3943 = vsub.f32 %v3932, %v3941
      %v3944 = vmul.f32 %v3942, 1.442695
      %v3945 = vpow.pop %v3944
      %v3946 = vmul.f32 %v3943, 1.442695
      %v3947 = vpow.pop %v3946
      %v3948 = vsel %vm1313, 1, 0
      %v3949 = vsel %vm1314, 1, 0
      %v3950 = vcvt.s32.f32 %v3948
      %v3951 = vcvt.s32.f32 %v3949
      %v3952 = vmul.f32 %v3945, %v3950
      %v3953 = vmul.f32 %v3947, %v3951
      %v3954 = vsel %vm1437, %v3952, 0.0
      %v3955 = vsel %vm1437, %v3953, 0.0
      %v3956 = vadd.f32 %v3954, %v3955
      %v3957 = vrot.slane %v3956, 4
      %v3958 = vadd.f32 %v3956, %v3957
      %v3959 = vrot.slane %v3958, 2
      %v3960 = vadd.f32 %v3958, %v3959
      %v3961 = vrot.slane %v3960, 1
      %v3962 = vadd.f32 %v3960, %v3961
      %v3963 = vmax.f32 %v3962, 1e-30
      %v3964 = vrcp.pop %v3963
      %v3965 = vmul.f32 %v3952, %v3964
      %v3966 = vmul.f32 %v3953, %v3964
      %v3967 = vld [vmem:[%s3] sm:$0xf]
      %v3968 = vld [vmem:[%s3 + $0x4] sm:$0xf]
      %v3969 = vld [vmem:[%s3 + $0x8] sm:$0xf]
      %v3970 = vld [vmem:[%s3 + $0xc] sm:$0xf]
      %v3971 = vld [vmem:[%s3 + $0x10] sm:$0xf]
      %v3972 = vld [vmem:[%s3 + $0x14] sm:$0xf]
      %v3973 = vld [vmem:[%s3 + $0x18] sm:$0xf]
      %v3974 = vld [vmem:[%s3 + $0x1c] sm:$0xf]
      %v3975 = vld [vmem:[%s3 + $0x20] sm:$0xf]
      %v3976 = vld [vmem:[%s3 + $0x24] sm:$0xf]
      %v3977 = vld [vmem:[%s3 + $0x28] sm:$0xf]
      %v3978 = vld [vmem:[%s3 + $0x2c] sm:$0xf]
      %v3979 = vld [vmem:[%s3 + $0x30] sm:$0xf]
      %v3980 = vld [vmem:[%s3 + $0x34] sm:$0xf]
      %v3981 = vld [vmem:[%s3 + $0x38] sm:$0xf]
      %v3982 = vld [vmem:[%s3 + $0x3c] sm:$0xf]
      %v3999 = vunpack.c.l.b16 %v3967
      %v4000 = vunpack.c.l.b16 %v3968
      %v4001 = vunpack.c.l.b16 %v3969
      %v4002 = vunpack.c.l.b16 %v3970
      %v4003 = vunpack.c.l.b16 %v3971
      %v4004 = vunpack.c.l.b16 %v3972
      %v4005 = vunpack.c.l.b16 %v3973
      %v4006 = vunpack.c.l.b16 %v3974
      %v4007 = vunpack.c.l.b16 %v3975
      %v4008 = vunpack.c.l.b16 %v3976
      %v4009 = vunpack.c.l.b16 %v3977
      %v4010 = vunpack.c.l.b16 %v3978
      %v4011 = vunpack.c.l.b16 %v3979
      %v4012 = vunpack.c.l.b16 %v3980
      %v4013 = vunpack.c.l.b16 %v3981
      %v4014 = vunpack.c.l.b16 %v3982
      %v4015 = vpack.c.b16 %v4000, %v3999
      %v4016 = vpack.c.b16 %v4002, %v4001
      %v4017 = vpack.c.b16 %v4004, %v4003
      %v4018 = vpack.c.b16 %v4006, %v4005
      %v4019 = vpack.c.b16 %v4008, %v4007
      %v4020 = vpack.c.b16 %v4010, %v4009
      %v4021 = vpack.c.b16 %v4012, %v4011
      %v4022 = vpack.c.b16 %v4014, %v4013
      %v4024 = vsel %vm1437, %v4015, 0
      %v4027 = vsel %vm1437, %v4016, 0
      %v4030 = vsel %vm1437, %v4017, 0
      %v4033 = vsel %vm1437, %v4018, 0
      %v4036 = vsel %vm1437, %v4019, 0
      %v4039 = vsel %vm1437, %v4020, 0
      %v4042 = vsel %vm1437, %v4021, 0
      %v4045 = vsel %vm1437, %v4022, 0
      %4047 = vmatprep.subr.bf16.mxu0 0
      %4048 = vmatpush1.bf16.msra.mxu0 %v3825
      %4049 = vmatprep.subr.bf16.mxu0 0
      %4050 = vmatpush1.bf16.msra.mxu0 0
      %4051 = vmatprep.subr.bf16.mxu0 0
      %4052 = vmatpush1.bf16.msra.mxu0 0
      %4053 = vmatprep.subr.bf16.mxu0 0
      %4054 = vmatpush1.bf16.msra.mxu0 0
      %4055 = vmatprep.subr.bf16.mxu0 0
      %4056 = vmatpush1.bf16.msra.mxu0 0
      %4057 = vmatprep.subr.bf16.mxu0 0
      %4058 = vmatpush1.bf16.msra.mxu0 0
      %4059 = vmatprep.subr.bf16.mxu0 0
      %4060 = vmatpush1.bf16.msra.mxu0 0
      %4061 = vmatprep.subr.bf16.mxu0 0
      %4062 = vmatpush1.bf16.msra.mxu0 0
      %4063 = vmatprep.subr.bf16.mxu0 0
      %4064 = vmatpush1.bf16.msra.mxu0 0
      %4065 = vmatprep.subr.bf16.mxu0 0
      %4066 = vmatpush1.bf16.msra.mxu0 0
      %4067 = vmatprep.subr.bf16.mxu0 0
      %4068 = vmatpush1.bf16.msra.mxu0 0
      %4069 = vmatprep.subr.bf16.mxu0 0
      %4070 = vmatpush1.bf16.msra.mxu0 0
      %4071 = vmatprep.subr.bf16.mxu0 0
      %4072 = vmatpush1.bf16.msra.mxu0 0
      %4073 = vmatprep.subr.bf16.mxu0 0
      %4074 = vmatpush1.bf16.msra.mxu0 0
      %4075 = vmatprep.subr.bf16.mxu0 0
      %4076 = vmatpush1.bf16.msra.mxu0 0
      %4077 = vmatprep.subr.bf16.mxu0 0
      %4078 = vmatpush1.bf16.msra.mxu0 0
      %4079 = vmatprep.mubr.bf16.mxu0 0
      %4080 = vmatmul.mubr.bf16.gmra.mrb[0].mxu0 %v4024
      %v4081 = vpop.f32.mrb[0].mxu0
      %v4082 = vadd.f32 0.0, %v4081
      %v4083 = vpop.f32.mrb[0].mxu0
      %v4084 = vpop.f32.mrb[0].mxu0
      %v4085 = vadd.f32 0.0, %v4084
      %v4086 = vpop.f32.mrb[0].mxu0
      %4087 = vmatprep.mubr.bf16.mxu0 0
      %4088 = vmatmul.mubr.bf16.gmra.mrb[0].mxu0 %v4027
      %v4089 = vpop.f32.mrb[0].mxu0
      %v4090 = vadd.f32 0.0, %v4089
      %v4091 = vpop.f32.mrb[0].mxu0
      %v4092 = vpop.f32.mrb[0].mxu0
      %v4093 = vadd.f32 0.0, %v4092
      %v4094 = vpop.f32.mrb[0].mxu0
      %4095 = vmatprep.mubr.bf16.mxu0 0
      %4096 = vmatmul.mubr.bf16.gmra.mrb[0].mxu0 %v4030
      %v4097 = vpop.f32.mrb[0].mxu0
      %v4098 = vadd.f32 0.0, %v4097
      %v4099 = vpop.f32.mrb[0].mxu0
      %v4100 = vpop.f32.mrb[0].mxu0
      %v4101 = vadd.f32 0.0, %v4100
      %v4102 = vpop.f32.mrb[0].mxu0
      %4103 = vmatprep.mubr.bf16.mxu0 0
      %4104 = vmatmul.mubr.bf16.gmra.mrb[0].mxu0 %v4033
      %v4105 = vpop.f32.mrb[0].mxu0
      %v4106 = vadd.f32 0.0, %v4105
      %v4107 = vpop.f32.mrb[0].mxu0
      %v4108 = vpop.f32.mrb[0].mxu0
      %v4109 = vadd.f32 0.0, %v4108
      %v4110 = vpop.f32.mrb[0].mxu0
      %4111 = vmatprep.mubr.bf16.mxu0 0
      %4112 = vmatmul.mubr.bf16.gmra.mrb[0].mxu0 %v4036
      %v4113 = vpop.f32.mrb[0].mxu0
      %v4114 = vadd.f32 0.0, %v4113
      %v4115 = vpop.f32.mrb[0].mxu0
      %v4116 = vpop.f32.mrb[0].mxu0
      %v4117 = vadd.f32 0.0, %v4116
      %v4118 = vpop.f32.mrb[0].mxu0
      %4119 = vmatprep.mubr.bf16.mxu0 0
      %4120 = vmatmul.mubr.bf16.gmra.mrb[0].mxu0 %v4039
      %v4121 = vpop.f32.mrb[0].mxu0
      %v4122 = vadd.f32 0.0, %v4121
      %v4123 = vpop.f32.mrb[0].mxu0
      %v4124 = vpop.f32.mrb[0].mxu0
      %v4125 = vadd.f32 0.0, %v4124
      %v4126 = vpop.f32.mrb[0].mxu0
      %4127 = vmatprep.mubr.bf16.mxu0 0
      %4128 = vmatmul.mubr.bf16.gmra.mrb[0].mxu0 %v4042
      %v4129 = vpop.f32.mrb[0].mxu0
      %v4130 = vadd.f32 0.0, %v4129
      %v4131 = vpop.f32.mrb[0].mxu0
      %v4132 = vpop.f32.mrb[0].mxu0
      %v4133 = vadd.f32 0.0, %v4132
      %v4134 = vpop.f32.mrb[0].mxu0
      %4135 = vmatprep.mubr.bf16.mxu0 0
      %4136 = vmatmul.mubr.bf16.gmra.mrb[0].mxu0 %v4045
      %v4137 = vpop.f32.mrb[0].mxu0
      %v4138 = vadd.f32 0.0, %v4137
      %v4139 = vpop.f32.mrb[0].mxu0
      %v4140 = vpop.f32.mrb[0].mxu0
      %v4141 = vadd.f32 0.0, %v4140
      %v4142 = vpop.f32.mrb[0].mxu0
      %4143 = vdwg.mxu0
      %v4144 = vpack.c.bf16 %v4085, %v4082
      %v4145 = vpack.c.bf16 %v4093, %v4090
      %v4146 = vpack.c.bf16 %v4101, %v4098
      %v4147 = vpack.c.bf16 %v4109, %v4106
      %v4148 = vpack.c.bf16 %v4117, %v4114
      %v4149 = vpack.c.bf16 %v4125, %v4122
      %v4150 = vpack.c.bf16 %v4133, %v4130
      %v4151 = vpack.c.bf16 %v4141, %v4138
      %v4152 = vld [vmem:[%s1227] sm:$0xf]
      %v4153 = vld [vmem:[%s1227 + $0x4] sm:$0xf]
      %v4154 = vld [vmem:[%s1227 + $0x8] sm:$0xf]
      %v4155 = vld [vmem:[%s1227 + $0xc] sm:$0xf]
      %v4156 = vld [vmem:[%s1227 + $0x10] sm:$0xf]
      %v4157 = vld [vmem:[%s1227 + $0x14] sm:$0xf]
      %v4158 = vld [vmem:[%s1227 + $0x18] sm:$0xf]
      %v4159 = vld [vmem:[%s1227 + $0x1c] sm:$0xf]
      %v4160 = vld [vmem:[%s1227 + $0x20] sm:$0xf]
      %v4161 = vld [vmem:[%s1227 + $0x24] sm:$0xf]
      %v4162 = vld [vmem:[%s1227 + $0x28] sm:$0xf]
      %v4163 = vld [vmem:[%s1227 + $0x2c] sm:$0xf]
      %v4164 = vld [vmem:[%s1227 + $0x30] sm:$0xf]
      %v4165 = vld [vmem:[%s1227 + $0x34] sm:$0xf]
      %v4166 = vld [vmem:[%s1227 + $0x38] sm:$0xf]
      %v4167 = vld [vmem:[%s1227 + $0x3c] sm:$0xf]
      %v4168 = vld [vmem:[%s1227 + $0x40] sm:$0xf]
      %v4169 = vld [vmem:[%s1227 + $0x44] sm:$0xf]
      %v4170 = vld [vmem:[%s1227 + $0x48] sm:$0xf]
      %v4171 = vld [vmem:[%s1227 + $0x4c] sm:$0xf]
      %v4172 = vld [vmem:[%s1227 + $0x50] sm:$0xf]
      %v4173 = vld [vmem:[%s1227 + $0x54] sm:$0xf]
      %v4174 = vld [vmem:[%s1227 + $0x58] sm:$0xf]
      %v4175 = vld [vmem:[%s1227 + $0x5c] sm:$0xf]
      %v4176 = vld [vmem:[%s1227 + $0x60] sm:$0xf]
      %v4177 = vld [vmem:[%s1227 + $0x64] sm:$0xf]
      %v4178 = vld [vmem:[%s1227 + $0x68] sm:$0xf]
      %v4179 = vld [vmem:[%s1227 + $0x6c] sm:$0xf]
      %v4180 = vld [vmem:[%s1227 + $0x70] sm:$0xf]
      %v4181 = vld [vmem:[%s1227 + $0x74] sm:$0xf]
      %v4182 = vld [vmem:[%s1227 + $0x78] sm:$0xf]
      %v4183 = vld [vmem:[%s1227 + $0x7c] sm:$0xf]
      %v4188 = vunpack.c.l.b16 %v4152
      %v4189 = vunpack.c.l.b16 %v4153
      %v4190 = vunpack.c.l.b16 %v4154
      %v4191 = vunpack.c.l.b16 %v4155
      %v4192 = vpack.c.b16 %v4189, %v4188
      %v4193 = vpack.c.b16 %v4191, %v4190
      %v4197 = vsel %vm1339, %v4144, 0
      %4199 = vmatprep.subr.bf16.mxu0 0
      %4200 = vmatpush1.bf16.msra.mxu0 %v4192
      %4201 = vmatprep.subr.bf16.mxu0 0
      %4202 = vmatpush1.bf16.msra.mxu0 %v4193
      %4203 = vmatprep.subr.bf16.mxu0 0
      %4204 = vmatpush1.bf16.msra.mxu0 0
      %4205 = vmatprep.subr.bf16.mxu0 0
      %4206 = vmatpush1.bf16.msra.mxu0 0
      %4207 = vmatprep.subr.bf16.mxu0 0
      %4208 = vmatpush1.bf16.msra.mxu0 0
      %4209 = vmatprep.subr.bf16.mxu0 0
      %4210 = vmatpush1.bf16.msra.mxu0 0
      %4211 = vmatprep.subr.bf16.mxu0 0
      %4212 = vmatpush1.bf16.msra.mxu0 0
      %4213 = vmatprep.subr.bf16.mxu0 0
      %4214 = vmatpush1.bf16.msra.mxu0 0
      %4215 = vmatprep.subr.bf16.mxu0 0
      %4216 = vmatpush1.bf16.msra.mxu0 0
      %4217 = vmatprep.subr.bf16.mxu0 0
      %4218 = vmatpush1.bf16.msra.mxu0 0
      %4219 = vmatprep.subr.bf16.mxu0 0
      %4220 = vmatpush1.bf16.msra.mxu0 0
      %4221 = vmatprep.subr.bf16.mxu0 0
      %4222 = vmatpush1.bf16.msra.mxu0 0
      %4223 = vmatprep.subr.bf16.mxu0 0
      %4224 = vmatpush1.bf16.msra.mxu0 0
      %4225 = vmatprep.subr.bf16.mxu0 0
      %4226 = vmatpush1.bf16.msra.mxu0 0
      %4227 = vmatprep.subr.bf16.mxu0 0
      %4228 = vmatpush1.bf16.msra.mxu0 0
      %4229 = vmatprep.subr.bf16.mxu0 0
      %4230 = vmatpush1.bf16.msra.mxu0 0
      %4231 = vmatprep.mubr.bf16.mxu0 0
      %4232 = vmatmul.mubr.bf16.gmra.mrb[0].mxu0 %v4197
      %v4233 = vpop.f32.mrb[0].mxu0
      %v4234 = vadd.f32 0.0, %v4233
      %v4235 = vpop.f32.mrb[0].mxu0
      %v4236 = vpop.f32.mrb[0].mxu0
      %v4237 = vadd.f32 0.0, %v4236
      %v4238 = vpop.f32.mrb[0].mxu0
      %4239 = vdwg.mxu0
      %v4244 = vunpack.c.l.b16 %v4156
      %v4245 = vunpack.c.l.b16 %v4157
      %v4246 = vunpack.c.l.b16 %v4158
      %v4247 = vunpack.c.l.b16 %v4159
      %v4248 = vpack.c.b16 %v4245, %v4244
      %v4249 = vpack.c.b16 %v4247, %v4246
      %v4253 = vsel %vm1339, %v4145, 0
      %4255 = vmatprep.subr.bf16.mxu0 0
      %4256 = vmatpush1.bf16.msra.mxu0 %v4248
      %4257 = vmatprep.subr.bf16.mxu0 0
      %4258 = vmatpush1.bf16.msra.mxu0 %v4249
      %4259 = vmatprep.subr.bf16.mxu0 0
      %4260 = vmatpush1.bf16.msra.mxu0 0
      %4261 = vmatprep.subr.bf16.mxu0 0
      %4262 = vmatpush1.bf16.msra.mxu0 0
      %4263 = vmatprep.subr.bf16.mxu0 0
      %4264 = vmatpush1.bf16.msra.mxu0 0
      %4265 = vmatprep.subr.bf16.mxu0 0
      %4266 = vmatpush1.bf16.msra.mxu0 0
      %4267 = vmatprep.subr.bf16.mxu0 0
      %4268 = vmatpush1.bf16.msra.mxu0 0
      %4269 = vmatprep.subr.bf16.mxu0 0
      %4270 = vmatpush1.bf16.msra.mxu0 0
      %4271 = vmatprep.subr.bf16.mxu0 0
      %4272 = vmatpush1.bf16.msra.mxu0 0
      %4273 = vmatprep.subr.bf16.mxu0 0
      %4274 = vmatpush1.bf16.msra.mxu0 0
      %4275 = vmatprep.subr.bf16.mxu0 0
      %4276 = vmatpush1.bf16.msra.mxu0 0
      %4277 = vmatprep.subr.bf16.mxu0 0
      %4278 = vmatpush1.bf16.msra.mxu0 0
      %4279 = vmatprep.subr.bf16.mxu0 0
      %4280 = vmatpush1.bf16.msra.mxu0 0
      %4281 = vmatprep.subr.bf16.mxu0 0
      %4282 = vmatpush1.bf16.msra.mxu0 0
      %4283 = vmatprep.subr.bf16.mxu0 0
      %4284 = vmatpush1.bf16.msra.mxu0 0
      %4285 = vmatprep.subr.bf16.mxu0 0
      %4286 = vmatpush1.bf16.msra.mxu0 0
      %4287 = vmatprep.mubr.bf16.mxu0 0
      %4288 = vmatmul.mubr.bf16.gmra.mrb[0].mxu0 %v4253
      %v4289 = vpop.f32.mrb[0].mxu0
      %v4290 = vadd.f32 0.0, %v4289
      %v4291 = vpop.f32.mrb[0].mxu0
      %v4292 = vpop.f32.mrb[0].mxu0
      %v4293 = vadd.f32 0.0, %v4292
      %v4294 = vpop.f32.mrb[0].mxu0
      %4295 = vdwg.mxu0
      %v4300 = vunpack.c.l.b16 %v4160
      %v4301 = vunpack.c.l.b16 %v4161
      %v4302 = vunpack.c.l.b16 %v4162
      %v4303 = vunpack.c.l.b16 %v4163
      %v4304 = vpack.c.b16 %v4301, %v4300
      %v4305 = vpack.c.b16 %v4303, %v4302
      %v4309 = vsel %vm1339, %v4146, 0
      %4311 = vmatprep.subr.bf16.mxu0 0
      %4312 = vmatpush1.bf16.msra.mxu0 %v4304
      %4313 = vmatprep.subr.bf16.mxu0 0
      %4314 = vmatpush1.bf16.msra.mxu0 %v4305
      %4315 = vmatprep.subr.bf16.mxu0 0
      %4316 = vmatpush1.bf16.msra.mxu0 0
      %4317 = vmatprep.subr.bf16.mxu0 0
      %4318 = vmatpush1.bf16.msra.mxu0 0
      %4319 = vmatprep.subr.bf16.mxu0 0
      %4320 = vmatpush1.bf16.msra.mxu0 0
      %4321 = vmatprep.subr.bf16.mxu0 0
      %4322 = vmatpush1.bf16.msra.mxu0 0
      %4323 = vmatprep.subr.bf16.mxu0 0
      %4324 = vmatpush1.bf16.msra.mxu0 0
      %4325 = vmatprep.subr.bf16.mxu0 0
      %4326 = vmatpush1.bf16.msra.mxu0 0
      %4327 = vmatprep.subr.bf16.mxu0 0
      %4328 = vmatpush1.bf16.msra.mxu0 0
      %4329 = vmatprep.subr.bf16.mxu0 0
      %4330 = vmatpush1.bf16.msra.mxu0 0
      %4331 = vmatprep.subr.bf16.mxu0 0
      %4332 = vmatpush1.bf16.msra.mxu0 0
      %4333 = vmatprep.subr.bf16.mxu0 0
      %4334 = vmatpush1.bf16.msra.mxu0 0
      %4335 = vmatprep.subr.bf16.mxu0 0
      %4336 = vmatpush1.bf16.msra.mxu0 0
      %4337 = vmatprep.subr.bf16.mxu0 0
      %4338 = vmatpush1.bf16.msra.mxu0 0
      %4339 = vmatprep.subr.bf16.mxu0 0
      %4340 = vmatpush1.bf16.msra.mxu0 0
      %4341 = vmatprep.subr.bf16.mxu0 0
      %4342 = vmatpush1.bf16.msra.mxu0 0
      %4343 = vmatprep.mubr.bf16.mxu0 0
      %4344 = vmatmul.mubr.bf16.gmra.mrb[0].mxu0 %v4309
      %v4345 = vpop.f32.mrb[0].mxu0
      %v4346 = vadd.f32 0.0, %v4345
      %v4347 = vpop.f32.mrb[0].mxu0
      %v4348 = vpop.f32.mrb[0].mxu0
      %v4349 = vadd.f32 0.0, %v4348
      %v4350 = vpop.f32.mrb[0].mxu0
      %4351 = vdwg.mxu0
      %v4356 = vunpack.c.l.b16 %v4164
      %v4357 = vunpack.c.l.b16 %v4165
      %v4358 = vunpack.c.l.b16 %v4166
      %v4359 = vunpack.c.l.b16 %v4167
      %v4360 = vpack.c.b16 %v4357, %v4356
      %v4361 = vpack.c.b16 %v4359, %v4358
      %v4365 = vsel %vm1339, %v4147, 0
      %4367 = vmatprep.subr.bf16.mxu0 0
      %4368 = vmatpush1.bf16.msra.mxu0 %v4360
      %4369 = vmatprep.subr.bf16.mxu0 0
      %4370 = vmatpush1.bf16.msra.mxu0 %v4361
      %4371 = vmatprep.subr.bf16.mxu0 0
      %4372 = vmatpush1.bf16.msra.mxu0 0
      %4373 = vmatprep.subr.bf16.mxu0 0
      %4374 = vmatpush1.bf16.msra.mxu0 0
      %4375 = vmatprep.subr.bf16.mxu0 0
      %4376 = vmatpush1.bf16.msra.mxu0 0
      %4377 = vmatprep.subr.bf16.mxu0 0
      %4378 = vmatpush1.bf16.msra.mxu0 0
      %4379 = vmatprep.subr.bf16.mxu0 0
      %4380 = vmatpush1.bf16.msra.mxu0 0
      %4381 = vmatprep.subr.bf16.mxu0 0
      %4382 = vmatpush1.bf16.msra.mxu0 0
      %4383 = vmatprep.subr.bf16.mxu0 0
      %4384 = vmatpush1.bf16.msra.mxu0 0
      %4385 = vmatprep.subr.bf16.mxu0 0
      %4386 = vmatpush1.bf16.msra.mxu0 0
      %4387 = vmatprep.subr.bf16.mxu0 0
      %4388 = vmatpush1.bf16.msra.mxu0 0
      %4389 = vmatprep.subr.bf16.mxu0 0
      %4390 = vmatpush1.bf16.msra.mxu0 0
      %4391 = vmatprep.subr.bf16.mxu0 0
      %4392 = vmatpush1.bf16.msra.mxu0 0
      %4393 = vmatprep.subr.bf16.mxu0 0
      %4394 = vmatpush1.bf16.msra.mxu0 0
      %4395 = vmatprep.subr.bf16.mxu0 0
      %4396 = vmatpush1.bf16.msra.mxu0 0
      %4397 = vmatprep.subr.bf16.mxu0 0
      %4398 = vmatpush1.bf16.msra.mxu0 0
      %4399 = vmatprep.mubr.bf16.mxu0 0
      %4400 = vmatmul.mubr.bf16.gmra.mrb[0].mxu0 %v4365
      %v4401 = vpop.f32.mrb[0].mxu0
      %v4402 = vadd.f32 0.0, %v4401
      %v4403 = vpop.f32.mrb[0].mxu0
      %v4404 = vpop.f32.mrb[0].mxu0
      %v4405 = vadd.f32 0.0, %v4404
      %v4406 = vpop.f32.mrb[0].mxu0
      %4407 = vdwg.mxu0
      %v4412 = vunpack.c.l.b16 %v4168
      %v4413 = vunpack.c.l.b16 %v4169
      %v4414 = vunpack.c.l.b16 %v4170
      %v4415 = vunpack.c.l.b16 %v4171
      %v4416 = vpack.c.b16 %v4413, %v4412
      %v4417 = vpack.c.b16 %v4415, %v4414
      %v4421 = vsel %vm1339, %v4148, 0
      %4423 = vmatprep.subr.bf16.mxu0 0
      %4424 = vmatpush1.bf16.msra.mxu0 %v4416
      %4425 = vmatprep.subr.bf16.mxu0 0
      %4426 = vmatpush1.bf16.msra.mxu0 %v4417
      %4427 = vmatprep.subr.bf16.mxu0 0
      %4428 = vmatpush1.bf16.msra.mxu0 0
      %4429 = vmatprep.subr.bf16.mxu0 0
      %4430 = vmatpush1.bf16.msra.mxu0 0
      %4431 = vmatprep.subr.bf16.mxu0 0
      %4432 = vmatpush1.bf16.msra.mxu0 0
      %4433 = vmatprep.subr.bf16.mxu0 0
      %4434 = vmatpush1.bf16.msra.mxu0 0
      %4435 = vmatprep.subr.bf16.mxu0 0
      %4436 = vmatpush1.bf16.msra.mxu0 0
      %4437 = vmatprep.subr.bf16.mxu0 0
      %4438 = vmatpush1.bf16.msra.mxu0 0
      %4439 = vmatprep.subr.bf16.mxu0 0
      %4440 = vmatpush1.bf16.msra.mxu0 0
      %4441 = vmatprep.subr.bf16.mxu0 0
      %4442 = vmatpush1.bf16.msra.mxu0 0
      %4443 = vmatprep.subr.bf16.mxu0 0
      %4444 = vmatpush1.bf16.msra.mxu0 0
      %4445 = vmatprep.subr.bf16.mxu0 0
      %4446 = vmatpush1.bf16.msra.mxu0 0
      %4447 = vmatprep.subr.bf16.mxu0 0
      %4448 = vmatpush1.bf16.msra.mxu0 0
      %4449 = vmatprep.subr.bf16.mxu0 0
      %4450 = vmatpush1.bf16.msra.mxu0 0
      %4451 = vmatprep.subr.bf16.mxu0 0
      %4452 = vmatpush1.bf16.msra.mxu0 0
      %4453 = vmatprep.subr.bf16.mxu0 0
      %4454 = vmatpush1.bf16.msra.mxu0 0
      %4455 = vmatprep.mubr.bf16.mxu0 0
      %4456 = vmatmul.mubr.bf16.gmra.mrb[0].mxu0 %v4421
      %v4457 = vpop.f32.mrb[0].mxu0
      %v4458 = vadd.f32 0.0, %v4457
      %v4459 = vpop.f32.mrb[0].mxu0
      %v4460 = vpop.f32.mrb[0].mxu0
      %v4461 = vadd.f32 0.0, %v4460
      %v4462 = vpop.f32.mrb[0].mxu0
      %4463 = vdwg.mxu0
      %v4468 = vunpack.c.l.b16 %v4172
      %v4469 = vunpack.c.l.b16 %v4173
      %v4470 = vunpack.c.l.b16 %v4174
      %v4471 = vunpack.c.l.b16 %v4175
      %v4472 = vpack.c.b16 %v4469, %v4468
      %v4473 = vpack.c.b16 %v4471, %v4470
      %v4477 = vsel %vm1339, %v4149, 0
      %4479 = vmatprep.subr.bf16.mxu0 0
      %4480 = vmatpush1.bf16.msra.mxu0 %v4472
      %4481 = vmatprep.subr.bf16.mxu0 0
      %4482 = vmatpush1.bf16.msra.mxu0 %v4473
      %4483 = vmatprep.subr.bf16.mxu0 0
      %4484 = vmatpush1.bf16.msra.mxu0 0
      %4485 = vmatprep.subr.bf16.mxu0 0
      %4486 = vmatpush1.bf16.msra.mxu0 0
      %4487 = vmatprep.subr.bf16.mxu0 0
      %4488 = vmatpush1.bf16.msra.mxu0 0
      %4489 = vmatprep.subr.bf16.mxu0 0
      %4490 = vmatpush1.bf16.msra.mxu0 0
      %4491 = vmatprep.subr.bf16.mxu0 0
      %4492 = vmatpush1.bf16.msra.mxu0 0
      %4493 = vmatprep.subr.bf16.mxu0 0
      %4494 = vmatpush1.bf16.msra.mxu0 0
      %4495 = vmatprep.subr.bf16.mxu0 0
      %4496 = vmatpush1.bf16.msra.mxu0 0
      %4497 = vmatprep.subr.bf16.mxu0 0
      %4498 = vmatpush1.bf16.msra.mxu0 0
      %4499 = vmatprep.subr.bf16.mxu0 0
      %4500 = vmatpush1.bf16.msra.mxu0 0
      %4501 = vmatprep.subr.bf16.mxu0 0
      %4502 = vmatpush1.bf16.msra.mxu0 0
      %4503 = vmatprep.subr.bf16.mxu0 0
      %4504 = vmatpush1.bf16.msra.mxu0 0
      %4505 = vmatprep.subr.bf16.mxu0 0
      %4506 = vmatpush1.bf16.msra.mxu0 0
      %4507 = vmatprep.subr.bf16.mxu0 0
      %4508 = vmatpush1.bf16.msra.mxu0 0
      %4509 = vmatprep.subr.bf16.mxu0 0
      %4510 = vmatpush1.bf16.msra.mxu0 0
      %4511 = vmatprep.mubr.bf16.mxu0 0
      %4512 = vmatmul.mubr.bf16.gmra.mrb[0].mxu0 %v4477
      %v4513 = vpop.f32.mrb[0].mxu0
      %v4514 = vadd.f32 0.0, %v4513
      %v4515 = vpop.f32.mrb[0].mxu0
      %v4516 = vpop.f32.mrb[0].mxu0
      %v4517 = vadd.f32 0.0, %v4516
      %v4518 = vpop.f32.mrb[0].mxu0
      %4519 = vdwg.mxu0
      %v4524 = vunpack.c.l.b16 %v4176
      %v4525 = vunpack.c.l.b16 %v4177
      %v4526 = vunpack.c.l.b16 %v4178
      %v4527 = vunpack.c.l.b16 %v4179
      %v4528 = vpack.c.b16 %v4525, %v4524
      %v4529 = vpack.c.b16 %v4527, %v4526
      %v4533 = vsel %vm1339, %v4150, 0
      %4535 = vmatprep.subr.bf16.mxu0 0
      %4536 = vmatpush1.bf16.msra.mxu0 %v4528
      %4537 = vmatprep.subr.bf16.mxu0 0
      %4538 = vmatpush1.bf16.msra.mxu0 %v4529
      %4539 = vmatprep.subr.bf16.mxu0 0
      %4540 = vmatpush1.bf16.msra.mxu0 0
      %4541 = vmatprep.subr.bf16.mxu0 0
      %4542 = vmatpush1.bf16.msra.mxu0 0
      %4543 = vmatprep.subr.bf16.mxu0 0
      %4544 = vmatpush1.bf16.msra.mxu0 0
      %4545 = vmatprep.subr.bf16.mxu0 0
      %4546 = vmatpush1.bf16.msra.mxu0 0
      %4547 = vmatprep.subr.bf16.mxu0 0
      %4548 = vmatpush1.bf16.msra.mxu0 0
      %4549 = vmatprep.subr.bf16.mxu0 0
      %4550 = vmatpush1.bf16.msra.mxu0 0
      %4551 = vmatprep.subr.bf16.mxu0 0
      %4552 = vmatpush1.bf16.msra.mxu0 0
      %4553 = vmatprep.subr.bf16.mxu0 0
      %4554 = vmatpush1.bf16.msra.mxu0 0
      %4555 = vmatprep.subr.bf16.mxu0 0
      %4556 = vmatpush1.bf16.msra.mxu0 0
      %4557 = vmatprep.subr.bf16.mxu0 0
      %4558 = vmatpush1.bf16.msra.mxu0 0
      %4559 = vmatprep.subr.bf16.mxu0 0
      %4560 = vmatpush1.bf16.msra.mxu0 0
      %4561 = vmatprep.subr.bf16.mxu0 0
      %4562 = vmatpush1.bf16.msra.mxu0 0
      %4563 = vmatprep.subr.bf16.mxu0 0
      %4564 = vmatpush1.bf16.msra.mxu0 0
      %4565 = vmatprep.subr.bf16.mxu0 0
      %4566 = vmatpush1.bf16.msra.mxu0 0
      %4567 = vmatprep.mubr.bf16.mxu0 0
      %4568 = vmatmul.mubr.bf16.gmra.mrb[0].mxu0 %v4533
      %v4569 = vpop.f32.mrb[0].mxu0
      %v4570 = vadd.f32 0.0, %v4569
      %v4571 = vpop.f32.mrb[0].mxu0
      %v4572 = vpop.f32.mrb[0].mxu0
      %v4573 = vadd.f32 0.0, %v4572
      %v4574 = vpop.f32.mrb[0].mxu0
      %4575 = vdwg.mxu0
      %v4580 = vunpack.c.l.b16 %v4180
      %v4581 = vunpack.c.l.b16 %v4181
      %v4582 = vunpack.c.l.b16 %v4182
      %v4583 = vunpack.c.l.b16 %v4183
      %v4584 = vpack.c.b16 %v4581, %v4580
      %v4585 = vpack.c.b16 %v4583, %v4582
      %v4589 = vsel %vm1339, %v4151, 0
      %4591 = vmatprep.subr.bf16.mxu0 0
      %4592 = vmatpush1.bf16.msra.mxu0 %v4584
      %4593 = vmatprep.subr.bf16.mxu0 0
      %4594 = vmatpush1.bf16.msra.mxu0 %v4585
      %4595 = vmatprep.subr.bf16.mxu0 0
      %4596 = vmatpush1.bf16.msra.mxu0 0
      %4597 = vmatprep.subr.bf16.mxu0 0
      %4598 = vmatpush1.bf16.msra.mxu0 0
      %4599 = vmatprep.subr.bf16.mxu0 0
      %4600 = vmatpush1.bf16.msra.mxu0 0
      %4601 = vmatprep.subr.bf16.mxu0 0
      %4602 = vmatpush1.bf16.msra.mxu0 0
      %4603 = vmatprep.subr.bf16.mxu0 0
      %4604 = vmatpush1.bf16.msra.mxu0 0
      %4605 = vmatprep.subr.bf16.mxu0 0
      %4606 = vmatpush1.bf16.msra.mxu0 0
      %4607 = vmatprep.subr.bf16.mxu0 0
      %4608 = vmatpush1.bf16.msra.mxu0 0
      %4609 = vmatprep.subr.bf16.mxu0 0
      %4610 = vmatpush1.bf16.msra.mxu0 0
      %4611 = vmatprep.subr.bf16.mxu0 0
      %4612 = vmatpush1.bf16.msra.mxu0 0
      %4613 = vmatprep.subr.bf16.mxu0 0
      %4614 = vmatpush1.bf16.msra.mxu0 0
      %4615 = vmatprep.subr.bf16.mxu0 0
      %4616 = vmatpush1.bf16.msra.mxu0 0
      %4617 = vmatprep.subr.bf16.mxu0 0
      %4618 = vmatpush1.bf16.msra.mxu0 0
      %4619 = vmatprep.subr.bf16.mxu0 0
      %4620 = vmatpush1.bf16.msra.mxu0 0
      %4621 = vmatprep.subr.bf16.mxu0 0
      %4622 = vmatpush1.bf16.msra.mxu0 0
      %4623 = vmatprep.mubr.bf16.mxu0 0
      %4624 = vmatmul.mubr.bf16.gmra.mrb[0].mxu0 %v4589
      %v4625 = vpop.f32.mrb[0].mxu0
      %v4626 = vadd.f32 0.0, %v4625
      %v4627 = vpop.f32.mrb[0].mxu0
      %v4628 = vpop.f32.mrb[0].mxu0
      %v4629 = vadd.f32 0.0, %v4628
      %v4630 = vpop.f32.mrb[0].mxu0
      %4631 = vdwg.mxu0
      %v4632 = vld [vmem:[%s1232] sm:$0xf]
      %v4633 = vld [vmem:[%s1232 + $0x4] sm:$0xf]
      %v4634 = vld [vmem:[%s1232 + $0x8] sm:$0xf]
      %v4635 = vld [vmem:[%s1232 + $0xc] sm:$0xf]
      %v4636 = vld [vmem:[%s1235] sm:$0x1]
      %v4638 = vlaneseq
      %v4639 = vshrl.u32 %v4638, 7
      %v4640 = vsub.s32 0, %v4639
      %v4641 = vrot.slane %v4636, %v4640
      %v4647 = vunpack.c.l.b16 %v4632
      %v4648 = vunpack.c.l.b16 %v4633
      %v4649 = vunpack.c.l.b16 %v4634
      %v4650 = vunpack.c.l.b16 %v4635
      %v4651 = vpack.c.b16 %v4648, %v4647
      %v4652 = vpack.c.b16 %v4650, %v4649
      %4655 = vmatprep.subr.bf16.mxu0 0
      %4656 = vmatpush1.bf16.msra.mxu0 %v4651
      %4657 = vmatprep.subr.bf16.mxu0 0
      %4658 = vmatpush1.bf16.msra.mxu0 %v4652
      %4659 = vmatprep.subr.bf16.mxu0 0
      %4660 = vmatpush1.bf16.msra.mxu0 0
      %4661 = vmatprep.subr.bf16.mxu0 0
      %4662 = vmatpush1.bf16.msra.mxu0 0
      %4663 = vmatprep.subr.bf16.mxu0 0
      %4664 = vmatpush1.bf16.msra.mxu0 0
      %4665 = vmatprep.subr.bf16.mxu0 0
      %4666 = vmatpush1.bf16.msra.mxu0 0
      %4667 = vmatprep.subr.bf16.mxu0 0
      %4668 = vmatpush1.bf16.msra.mxu0 0
      %4669 = vmatprep.subr.bf16.mxu0 0
      %4670 = vmatpush1.bf16.msra.mxu0 0
      %4671 = vmatprep.subr.bf16.mxu0 0
      %4672 = vmatpush1.bf16.msra.mxu0 0
      %4673 = vmatprep.subr.bf16.mxu0 0
      %4674 = vmatpush1.bf16.msra.mxu0 0
      %4675 = vmatprep.subr.bf16.mxu0 0
      %4676 = vmatpush1.bf16.msra.mxu0 0
      %4677 = vmatprep.subr.bf16.mxu0 0
      %4678 = vmatpush1.bf16.msra.mxu0 0
      %4679 = vmatprep.subr.bf16.mxu0 0
      %4680 = vmatpush1.bf16.msra.mxu0 0
      %4681 = vmatprep.subr.bf16.mxu0 0
      %4682 = vmatpush1.bf16.msra.mxu0 0
      %4683 = vmatprep.subr.bf16.mxu0 0
      %4684 = vmatpush1.bf16.msra.mxu0 0
      %4685 = vmatprep.subr.bf16.mxu0 0
      %4686 = vmatpush1.bf16.msra.mxu0 0
      %4687 = vmatprep.mubr.bf16.mxu0 0
      %4688 = vmatmul.mubr.bf16.gmra.mrb[0].mxu0 %v3843
      %v4689 = vpop.f32.mrb[0].mxu0
      %v4690 = vadd.f32 %v4641, %v4689
      %v4691 = vpop.f32.mrb[0].mxu0
      %v4692 = vpop.f32.mrb[0].mxu0
      %v4693 = vadd.f32 %v4641, %v4692
      %v4694 = vpop.f32.mrb[0].mxu0
      %4695 = vdwg.mxu0
      %v4696 = vsel %vm1339, %v4234, 0.0
      %v4697 = vsel %vm1339, %v4290, 0.0
      %v4698 = vadd.f32 %v4696, %v4697
      %v4699 = vsel %vm1339, %v4346, 0.0
      %v4700 = vadd.f32 %v4698, %v4699
      %v4701 = vsel %vm1339, %v4402, 0.0
      %v4702 = vadd.f32 %v4700, %v4701
      %v4703 = vsel %vm1339, %v4458, 0.0
      %v4704 = vadd.f32 %v4702, %v4703
      %v4705 = vsel %vm1339, %v4514, 0.0
      %v4706 = vadd.f32 %v4704, %v4705
      %v4707 = vsel %vm1339, %v4570, 0.0
      %v4708 = vadd.f32 %v4706, %v4707
      %v4709 = vsel %vm1339, %v4626, 0.0
      %v4710 = vadd.f32 %v4708, %v4709
      %v4711 = vsel %vm1339, %v4237, 0.0
      %v4712 = vsel %vm1339, %v4293, 0.0
      %v4713 = vadd.f32 %v4711, %v4712
      %v4714 = vsel %vm1339, %v4349, 0.0
      %v4715 = vadd.f32 %v4713, %v4714
      %v4716 = vsel %vm1339, %v4405, 0.0
      %v4717 = vadd.f32 %v4715, %v4716
      %v4718 = vsel %vm1339, %v4461, 0.0
      %v4719 = vadd.f32 %v4717, %v4718
      %v4720 = vsel %vm1339, %v4517, 0.0
      %v4721 = vadd.f32 %v4719, %v4720
      %v4722 = vsel %vm1339, %v4573, 0.0
      %v4723 = vadd.f32 %v4721, %v4722
      %v4724 = vsel %vm1339, %v4629, 0.0
      %v4725 = vadd.f32 %v4723, %v4724
      %v4726 = vadd.f32 %v4690, %v4710
      %v4727 = vadd.f32 %v4693, %v4725
      %v4728 = vpack.c.bf16 %v3966, %v3965
      %v4729 = vpack.c.bf16 %v4727, %v4726
      %v4731 = vsel %vm1437, %v4728, 0
      %4733 = vmatprep.subr.bf16.mxu0 0
      %4734 = vmatpush1.bf16.msra.mxu0 %v4729
      %4735 = vmatprep.subr.bf16.mxu0 0
      %4736 = vmatpush1.bf16.msra.mxu0 0
      %4737 = vmatprep.subr.bf16.mxu0 0
      %4738 = vmatpush1.bf16.msra.mxu0 0
      %4739 = vmatprep.subr.bf16.mxu0 0
      %4740 = vmatpush1.bf16.msra.mxu0 0
      %4741 = vmatprep.subr.bf16.mxu0 0
      %4742 = vmatpush1.bf16.msra.mxu0 0
      %4743 = vmatprep.subr.bf16.mxu0 0
      %4744 = vmatpush1.bf16.msra.mxu0 0
      %4745 = vmatprep.subr.bf16.mxu0 0
      %4746 = vmatpush1.bf16.msra.mxu0 0
      %4747 = vmatprep.subr.bf16.mxu0 0
      %4748 = vmatpush1.bf16.msra.mxu0 0
      %4749 = vmatprep.subr.bf16.mxu0 0
      %4750 = vmatpush1.bf16.msra.mxu0 0
      %4751 = vmatprep.subr.bf16.mxu0 0
      %4752 = vmatpush1.bf16.msra.mxu0 0
      %4753 = vmatprep.subr.bf16.mxu0 0
      %4754 = vmatpush1.bf16.msra.mxu0 0
      %4755 = vmatprep.subr.bf16.mxu0 0
      %4756 = vmatpush1.bf16.msra.mxu0 0
      %4757 = vmatprep.subr.bf16.mxu0 0
      %4758 = vmatpush1.bf16.msra.mxu0 0
      %4759 = vmatprep.subr.bf16.mxu0 0
      %4760 = vmatpush1.bf16.msra.mxu0 0
      %4761 = vmatprep.subr.bf16.mxu0 0
      %4762 = vmatpush1.bf16.msra.mxu0 0
      %4763 = vmatprep.subr.bf16.mxu0 0
      %4764 = vmatpush1.bf16.msra.mxu0 0
      %4765 = vmatprep.mubr.bf16.mxu0 0
      %4766 = vmatmul.mubr.bf16.gmra.mrb[0].mxu0 %v4731
      %v4767 = vpop.f32.mrb[0].mxu0
      %v4768 = vadd.f32 0.0, %v4767
      %v4769 = vpop.f32.mrb[0].mxu0
      %v4770 = vpop.f32.mrb[0].mxu0
      %v4771 = vadd.f32 0.0, %v4770
      %v4772 = vpop.f32.mrb[0].mxu0
      %4773 = vdwg.mxu0
      %4776 = vrot.lane.b32.xlu0 %v4726, 32
      %v4777 = vpop.permute.xlu0 %4776
      %4778 = vrot.lane.b32.xlu0 %v4727, 32
      %v4779 = vpop.permute.xlu0 %4778
      %v4782 = vsel %vm1339, %v4768, %v4777
      %v4783 = vsel %vm1339, %v4771, %v4779
      %v4784 = vpack.c.bf16 %v4783, %v4782
      %v4785 = vld [vmem:[%s1240] sm:$0xf]
      %v4786 = vld [vmem:[%s1240 + $0x4] sm:$0xf]
      %v4787 = vld [vmem:[%s1240 + $0x8] sm:$0xf]
      %v4788 = vld [vmem:[%s1240 + $0xc] sm:$0xf]
      %v4789 = vld [vmem:[%s1240 + $0x10] sm:$0xf]
      %v4790 = vld [vmem:[%s1240 + $0x14] sm:$0xf]
      %v4791 = vld [vmem:[%s1240 + $0x18] sm:$0xf]
      %v4792 = vld [vmem:[%s1240 + $0x1c] sm:$0xf]
      %v4793 = vld [vmem:[%s1243] sm:$0x1]
      %v4795 = vlaneseq
      %v4796 = vshrl.u32 %v4795, 7
      %v4797 = vsub.s32 0, %v4796
      %v4798 = vrot.slane %v4793, %v4797
      %v4808 = vunpack.c.l.b16 %v4785
      %v4809 = vunpack.c.l.b16 %v4786
      %v4810 = vunpack.c.l.b16 %v4787
      %v4811 = vunpack.c.l.b16 %v4788
      %v4812 = vunpack.c.l.b16 %v4789
      %v4813 = vunpack.c.l.b16 %v4790
      %v4814 = vunpack.c.l.b16 %v4791
      %v4815 = vunpack.c.l.b16 %v4792
      %v4816 = vpack.c.b16 %v4809, %v4808
      %v4817 = vpack.c.b16 %v4811, %v4810
      %v4818 = vpack.c.b16 %v4813, %v4812
      %v4819 = vpack.c.b16 %v4815, %v4814
      %vm4824 = vcmask 523264
      %v4826 = vsel %vm4824, %v4784, 0
      %4828 = vmatprep.subr.bf16.mxu0 0
      %4829 = vmatpush1.bf16.msra.mxu0 %v4816
      %4830 = vmatprep.subr.bf16.mxu0 0
      %4831 = vmatpush1.bf16.msra.mxu0 %v4817
      %4832 = vmatprep.subr.bf16.mxu0 0
      %4833 = vmatpush1.bf16.msra.mxu0 %v4818
      %4834 = vmatprep.subr.bf16.mxu0 0
      %4835 = vmatpush1.bf16.msra.mxu0 %v4819
      %4836 = vmatprep.subr.bf16.mxu0 0
      %4837 = vmatpush1.bf16.msra.mxu0 0
      %4838 = vmatprep.subr.bf16.mxu0 0
      %4839 = vmatpush1.bf16.msra.mxu0 0
      %4840 = vmatprep.subr.bf16.mxu0 0
      %4841 = vmatpush1.bf16.msra.mxu0 0
      %4842 = vmatprep.subr.bf16.mxu0 0
      %4843 = vmatpush1.bf16.msra.mxu0 0
      %4844 = vmatprep.subr.bf16.mxu0 0
      %4845 = vmatpush1.bf16.msra.mxu0 0
      %4846 = vmatprep.subr.bf16.mxu0 0
      %4847 = vmatpush1.bf16.msra.mxu0 0
      %4848 = vmatprep.subr.bf16.mxu0 0
      %4849 = vmatpush1.bf16.msra.mxu0 0
      %4850 = vmatprep.subr.bf16.mxu0 0
      %4851 = vmatpush1.bf16.msra.mxu0 0
      %4852 = vmatprep.subr.bf16.mxu0 0
      %4853 = vmatpush1.bf16.msra.mxu0 0
      %4854 = vmatprep.subr.bf16.mxu0 0
      %4855 = vmatpush1.bf16.msra.mxu0 0
      %4856 = vmatprep.subr.bf16.mxu0 0
      %4857 = vmatpush1.bf16.msra.mxu0 0
      %4858 = vmatprep.subr.bf16.mxu0 0
      %4859 = vmatpush1.bf16.msra.mxu0 0
      %4860 = vmatprep.mubr.bf16.mxu0 0
      %4861 = vmatmul.mubr.bf16.gmra.mrb[0].mxu0 %v4826
      %v4862 = vpop.f32.mrb[0].mxu0
      %v4863 = vadd.f32 %v4798, %v4862
      %v4864 = vpop.f32.mrb[0].mxu0
      %v4865 = vpop.f32.mrb[0].mxu0
      %v4866 = vadd.f32 %v4798, %v4865
      %v4867 = vpop.f32.mrb[0].mxu0
      %4868 = vdwg.mxu0
      %4871 = vrot.lane.b32.xlu0 %v4863, 32
      %v4872 = vpop.permute.xlu0 %4871
      %4873 = vrot.lane.b32.xlu0 %v4866, 32
      %v4874 = vpop.permute.xlu0 %4873
      %v4877 = vsel %vm1339, %v3819, %v4872
      %v4878 = vsel %vm1339, %v3822, %v4874
      %v4879 = vpack.c.bf16 %v4878, %v4877
      %v4880 = vld [vmem:[%s1248] sm:$0xf]
      %v4881 = vld [vmem:[%s1248 + $0x4] sm:$0xf]
      %v4882 = vld [vmem:[%s1248 + $0x8] sm:$0xf]
      %v4883 = vld [vmem:[%s1248 + $0xc] sm:$0xf]
      %v4884 = vld [vmem:[%s1248 + $0x10] sm:$0xf]
      %v4885 = vld [vmem:[%s1248 + $0x14] sm:$0xf]
      %v4886 = vld [vmem:[%s1248 + $0x18] sm:$0xf]
      %v4887 = vld [vmem:[%s1248 + $0x1c] sm:$0xf]
      %v4888 = vld [vmem:[%s1251] sm:$0x1]
      %v4890 = vlaneseq
      %v4891 = vshrl.u32 %v4890, 7
      %v4892 = vsub.s32 0, %v4891
      %v4893 = vrot.slane %v4888, %v4892
      %v4903 = vunpack.c.l.b16 %v4880
      %v4904 = vunpack.c.l.b16 %v4881
      %v4905 = vunpack.c.l.b16 %v4882
      %v4906 = vunpack.c.l.b16 %v4883
      %v4907 = vunpack.c.l.b16 %v4884
      %v4908 = vunpack.c.l.b16 %v4885
      %v4909 = vunpack.c.l.b16 %v4886
      %v4910 = vunpack.c.l.b16 %v4887
      %v4911 = vpack.c.b16 %v4904, %v4903
      %v4912 = vpack.c.b16 %v4906, %v4905
      %v4913 = vpack.c.b16 %v4908, %v4907
      %v4914 = vpack.c.b16 %v4910, %v4909
      %v4920 = vsel %vm4824, %v4879, 0
      %4922 = vmatprep.subr.bf16.mxu0 0
      %4923 = vmatpush1.bf16.msra.mxu0 %v4911
      %4924 = vmatprep.subr.bf16.mxu0 0
      %4925 = vmatpush1.bf16.msra.mxu0 %v4912
      %4926 = vmatprep.subr.bf16.mxu0 0
      %4927 = vmatpush1.bf16.msra.mxu0 %v4913
      %4928 = vmatprep.subr.bf16.mxu0 0
      %4929 = vmatpush1.bf16.msra.mxu0 %v4914
      %4930 = vmatprep.subr.bf16.mxu0 0
      %4931 = vmatpush1.bf16.msra.mxu0 0
      %4932 = vmatprep.subr.bf16.mxu0 0
      %4933 = vmatpush1.bf16.msra.mxu0 0
      %4934 = vmatprep.subr.bf16.mxu0 0
      %4935 = vmatpush1.bf16.msra.mxu0 0
      %4936 = vmatprep.subr.bf16.mxu0 0
      %4937 = vmatpush1.bf16.msra.mxu0 0
      %4938 = vmatprep.subr.bf16.mxu0 0
      %4939 = vmatpush1.bf16.msra.mxu0 0
      %4940 = vmatprep.subr.bf16.mxu0 0
      %4941 = vmatpush1.bf16.msra.mxu0 0
      %4942 = vmatprep.subr.bf16.mxu0 0
      %4943 = vmatpush1.bf16.msra.mxu0 0
      %4944 = vmatprep.subr.bf16.mxu0 0
      %4945 = vmatpush1.bf16.msra.mxu0 0
      %4946 = vmatprep.subr.bf16.mxu0 0
      %4947 = vmatpush1.bf16.msra.mxu0 0
      %4948 = vmatprep.subr.bf16.mxu0 0
      %4949 = vmatpush1.bf16.msra.mxu0 0
      %4950 = vmatprep.subr.bf16.mxu0 0
      %4951 = vmatpush1.bf16.msra.mxu0 0
      %4952 = vmatprep.subr.bf16.mxu0 0
      %4953 = vmatpush1.bf16.msra.mxu0 0
      %4954 = vmatprep.mubr.bf16.mxu0 0
      %4955 = vmatmul.mubr.bf16.gmra.mrb[0].mxu0 %v4920
      %v4956 = vpop.f32.mrb[0].mxu0
      %v4957 = vadd.f32 %v4893, %v4956
      %v4958 = vpop.f32.mrb[0].mxu0
      %v4959 = vpop.f32.mrb[0].mxu0
      %v4960 = vadd.f32 %v4893, %v4959
      %v4961 = vpop.f32.mrb[0].mxu0
      %4962 = vdwg.mxu0
      %v4963 = vmax.f32 %v4957, 0.0
      %v4964 = vmax.f32 %v4960, 0.0
      %v4965 = vpack.c.bf16 %v4964, %v4963
      %v4966 = vld [vmem:[%s1256] sm:$0xf]
      %v4967 = vld [vmem:[%s1256 + $0x4] sm:$0xf]
      %v4968 = vld [vmem:[%s1256 + $0x8] sm:$0xf]
      %v4969 = vld [vmem:[%s1256 + $0xc] sm:$0xf]
      %v4970 = vld [vmem:[%s1259] sm:$0x1]
      %v4972 = vlaneseq
      %v4973 = vshrl.u32 %v4972, 7
      %v4974 = vsub.s32 0, %v4973
      %v4975 = vrot.slane %v4970, %v4974
      %v4981 = vunpack.c.l.b16 %v4966
      %v4982 = vunpack.c.l.b16 %v4967
      %v4983 = vunpack.c.l.b16 %v4968
      %v4984 = vunpack.c.l.b16 %v4969
      %v4985 = vpack.c.b16 %v4982, %v4981
      %v4986 = vpack.c.b16 %v4984, %v4983
      %v4990 = vsel %vm1339, %v4965, 0
      %4992 = vmatprep.subr.bf16.mxu0 0
      %4993 = vmatpush1.bf16.msra.mxu0 %v4985
      %4994 = vmatprep.subr.bf16.mxu0 0
      %4995 = vmatpush1.bf16.msra.mxu0 %v4986
      %4996 = vmatprep.subr.bf16.mxu0 0
      %4997 = vmatpush1.bf16.msra.mxu0 0
      %4998 = vmatprep.subr.bf16.mxu0 0
      %4999 = vmatpush1.bf16.msra.mxu0 0
      %5000 = vmatprep.subr.bf16.mxu0 0
      %5001 = vmatpush1.bf16.msra.mxu0 0
      %5002 = vmatprep.subr.bf16.mxu0 0
      %5003 = vmatpush1.bf16.msra.mxu0 0
      %5004 = vmatprep.subr.bf16.mxu0 0
      %5005 = vmatpush1.bf16.msra.mxu0 0
      %5006 = vmatprep.subr.bf16.mxu0 0
      %5007 = vmatpush1.bf16.msra.mxu0 0
      %5008 = vmatprep.subr.bf16.mxu0 0
      %5009 = vmatpush1.bf16.msra.mxu0 0
      %5010 = vmatprep.subr.bf16.mxu0 0
      %5011 = vmatpush1.bf16.msra.mxu0 0
      %5012 = vmatprep.subr.bf16.mxu0 0
      %5013 = vmatpush1.bf16.msra.mxu0 0
      %5014 = vmatprep.subr.bf16.mxu0 0
      %5015 = vmatpush1.bf16.msra.mxu0 0
      %5016 = vmatprep.subr.bf16.mxu0 0
      %5017 = vmatpush1.bf16.msra.mxu0 0
      %5018 = vmatprep.subr.bf16.mxu0 0
      %5019 = vmatpush1.bf16.msra.mxu0 0
      %5020 = vmatprep.subr.bf16.mxu0 0
      %5021 = vmatpush1.bf16.msra.mxu0 0
      %5022 = vmatprep.subr.bf16.mxu0 0
      %5023 = vmatpush1.bf16.msra.mxu0 0
      %5024 = vmatprep.mubr.bf16.mxu0 0
      %5025 = vmatmul.mubr.bf16.gmra.mrb[0].mxu0 %v4990
      %v5026 = vpop.f32.mrb[0].mxu0
      %v5027 = vadd.f32 %v4975, %v5026
      %v5028 = vpop.f32.mrb[0].mxu0
      %v5029 = vpop.f32.mrb[0].mxu0
      %v5030 = vadd.f32 %v4975, %v5029
      %v5031 = vpop.f32.mrb[0].mxu0
      %5032 = vdwg.mxu0
      %5033 = vst [vmem:[%s1264] sm:$0xff] %v5027
      %5034 = vst [vmem:[%s1264 + $0x8] sm:$0xff] %v5030
      %p5035 = scmp.lt.s32.totalorder %s39, 1
      %s5036 = scalar_select %p5035, %s39, 1
      %s5037 = smul.addr %s5036, 2
      %s5038 = smul.addr %s5037, 8
      %s5039 = scalar_lea.vmem %s28, %s5038
      // Predicated region
      $region133: #{fwd.1} parent=131 // pred_check
        %p5040 = pneg %p775
      $region134: #{fwd.1} parent=131 // pred_check_branch
        %5042 = sbr.rel (%p5040) target = $region136
      $region135: #{fwd.1} parent=131 // pred_region
        _
      $region136: #{fwd.1} parent=131 // pred_fallthru
        _
    $region132: #{fwd.1} parent=5 // pred_fallthru
      _
    %p5043 = scmp.le.s32.totalorder 2, %s34
    // Predicated region
    $region137: #{fwd.1} parent=5 // pred_check
      %p5044 = pneg %p5043
    $region138: #{fwd.1} parent=5 // pred_check_branch
      %5046 = sbr.rel (%p5044) target = $region140
    $region139: #{fwd.1} parent=5 // pred_region
      %s5047 = ssub.s32 %s34, 2
      // Predicated region
      $region141: #{fwd.1} parent=139 // pred_check
        %p5048 = pneg %p781
      $region142: #{fwd.1} parent=139 // pred_check_branch
        %5050 = sbr.rel (%p5048) target = $region144
      $region143: #{fwd.1} parent=139 // pred_region
        %p5051 = scmp.lt.s32.totalorder %s40, 1
        %s5052 = scalar_select %p5051, %s40, 1
        %s5053 = smul.addr %s5052, 2
        %s5054 = smul.addr %s5053, 8
        %s5055 = scalar_lea.vmem %s28, %s5054
      $region144: #{fwd.1} parent=139 // pred_fallthru
        _
    $region140: #{fwd.1} parent=5 // pred_fallthru
      _
  $region6: #{fwd.1} parent=0 // loop_footer
    %s38 = sadd.s32 1, %s34
  $region7: #{fwd.1} parent=0 // loop_footer_branch
    %33 = sbr.rel target = $region3
  $region8: #{fwd.1} parent=0 // loop_exit
    _

</llo_original>
